<compile_context>
chip_gen: v5e
topology: v5e:2x2
jax: 0.10.0
libtpu: 0.0.40
codegen_flags: <defaults>
</compile_context>

<pallas_src>
import functools

import jax
import jax.numpy as jnp
from jax import lax
from jax.experimental import pallas as pl
from jax.experimental.pallas import tpu as pltpu

KS = 3                      # temporal kernel size for the dilated branches
DILATIONS = (1, 2, 3, 4)
NB4 = len(DILATIONS)
NUM_BRANCHES = NB4 + 2
EPS = 1e-5                  # BatchNorm eps


# ---------------------------------------------------------------------------
# Kernel
# ---------------------------------------------------------------------------
def _mstcn_kernel(x_ref, wall_ref, ball_ref, msh_ref, s5sel_ref, out_ref, *,
                  V, rows_per_batch, bc):
    R = rows_per_batch                              # T * V rows per batch element
    x = x_ref[...]                                  # (rows, Cin)
    rows = x.shape[0]
    yw = (NB4 + 1) * bc                             # width of the ReLU'd 1x1 outputs

    # ONE fused matmul for every 1x1 conv (+ folded BN) and every residual slice.
    # All remaining biases (bt / sh5 / b6) are pre-folded into ball's residual part,
    # so this is the only bias add in the kernel.
    z = jnp.dot(x, wall_ref[...], preferred_element_type=jnp.float32) + ball_ref[...]

    yc = jnp.maximum(z[:, :yw], 0.0)                # 1x1 + BN + ReLU for branches 0..4
    res = z[:, yw:]                                 # residuals (+ folded biases), already
                                                    # in the final output column order

    # Row-index tensor, hoisted once.  `rpos` is the position inside one batch
    # element so shifts never leak across batch elements when batch is folded.
    rid = lax.broadcasted_iota(jnp.int32, (rows, 1), 0)
    rpos = rid if rows == R else lax.rem(rid, R)

    wdt = msh_ref.dtype

    def tshift(y, off):
        # result[r] = y[r + off] if row r+off lies in the same batch element, else 0.
        # Zero fill == the conv's zero padding; it is also valid for the max-pool
        # branch because y >= 0 after the ReLU (a 0 candidate never wins the max).
        rolled = pltpu.roll(y, (-off) % rows, axis=0)
        mask = (rpos < R - off) if off > 0 else (rpos >= -off)
        return jnp.where(mask, rolled, 0.0)

    # Temporal taps grouped by temporal offset: one block-sparse matmul per distinct
    # shift covers every dilated branch that uses that shift (9 matmuls total).
    acc = res + jnp.dot(yc.astype(wdt), msh_ref[NB4],
                        preferred_element_type=jnp.float32)
    up1 = tshift(yc, -V)                            # shared with the max-pool branch
    dn1 = tshift(yc, V)
    acc = acc + jnp.dot(up1.astype(wdt), msh_ref[NB4 - 1],
                        preferred_element_type=jnp.float32)
    acc = acc + jnp.dot(dn1.astype(wdt), msh_ref[NB4 + 1],
                        preferred_element_type=jnp.float32)
    for d in range(2, NB4 + 1):
        acc = acc + jnp.dot(tshift(yc, -d * V).astype(wdt), msh_ref[NB4 - d],
                            preferred_element_type=jnp.float32)
        acc = acc + jnp.dot(tshift(yc, d * V).astype(wdt), msh_ref[NB4 + d],
                            preferred_element_type=jnp.float32)

    # Max-pool branch: MaxPool((3,1), pad 1) on its ReLU'd 1x1 output; the post-pool
    # BN scale is applied via the (bc, Cout) placement matrix (shift already folded).
    y5 = yc[:, NB4 * bc:]
    m = jnp.maximum(jnp.maximum(up1[:, NB4 * bc:], y5), dn1[:, NB4 * bc:])
    acc = acc + jnp.dot(m.astype(wdt), s5sel_ref[...],
                        preferred_element_type=jnp.float32)

    out_ref[...] = acc                              # single lane-dense (rows, Cout) store


# ---------------------------------------------------------------------------
# Parameter packing (init-time folding / fusion)
# ---------------------------------------------------------------------------
def _pack_params(p, compute_dtype=jnp.float32):
    bc = p["w1"].shape[-1]
    Cout = NUM_BRANCHES * bc

    # Fused 1x1 weight: [ w1_b0..b3 | w5 | wr_b0..b4 | (wr_b5 + w6) ]  -> (Cin, 11*bc)
    wr_cols = [p["wr"][i] for i in range(NUM_BRANCHES)]
    wr_cols[5] = wr_cols[5] + p["w6"]          # plain-1x1 branch folded into its residual
    w_all = jnp.concatenate([p["w1"][i] for i in range(NB4)] + [p["w5"]] + wr_cols,
                            axis=1)

    # Fused bias: ReLU-side biases (b1, b5) + residual-side biases with bt / sh5 / b6
    # folded in, so the kernel applies exactly one bias add.
    br_cols = [p["br"][i] for i in range(NUM_BRANCHES)]
    for i in range(NB4):
        br_cols[i] = br_cols[i] + p["bt"][i]
    br_cols[4] = br_cols[4] + p["sh5"]
    br_cols[5] = br_cols[5] + p["b6"]
    b_all = jnp.concatenate([p["b1"][i] for i in range(NB4)] + [p["b5"]] + br_cols,
                            axis=1)

    # Temporal-tap weights grouped by shift: msh[NB4 + s] multiplies yc shifted by
    # s*V rows; each branch's (bc x bc) tap matrix sits block-diagonally.
    yw = (NB4 + 1) * bc
    msh = jnp.zeros((2 * NB4 + 1, yw, Cout), jnp.float32)
    for bi, d in enumerate(DILATIONS):
        r0 = c0 = bi * bc
        msh = msh.at[NB4 - d, r0:r0 + bc, c0:c0 + bc].set(p["wt"][bi, 0])
        msh = msh.at[NB4,     r0:r0 + bc, c0:c0 + bc].set(p["wt"][bi, 1])
        msh = msh.at[NB4 + d, r0:r0 + bc, c0:c0 + bc].set(p["wt"][bi, 2])

    # Max-pool branch: post-pool BN scale folded into a (bc, Cout) placement matrix.
    s5sel = jnp.zeros((bc, Cout), jnp.float32)
    s5sel = s5sel.at[:, NB4 * bc:(NB4 + 1) * bc].set(jnp.diag(p["s5"][0]))

    cdt = compute_dtype
    return dict(w_all=w_all.astype(cdt), b_all=b_all.astype(jnp.float32),
                msh=msh.astype(cdt), s5sel=s5sel.astype(cdt))


# ---------------------------------------------------------------------------
# Wrapper
# ---------------------------------------------------------------------------
def multiscale_temporal_conv(x_nchw, params, *, batch_per_block=1,
                             compute_dtype=jnp.float32, channels_last_out=False):
    """x_nchw: (N, Cin, T, V) -> (N, Cout, T, V)  (or (N, T, V, Cout) if channels_last_out).

    batch_per_block=1  : grid=(N,), "parallel" (one batch element per TC on v7x).
    batch_per_block=N  : single grid step (preferred on single-TC v5e / v6e).
    compute_dtype      : use jnp.bfloat16 on v6e/v7x at production sizes (f32 accum).
    """
    N, Cin, T, V = x_nchw.shape
    bc = params["w1"].shape[-1]
    Cout = NUM_BRANCHES * bc
    assert N % batch_per_block == 0
    R = T * V
    rows = batch_per_block * R

    p = _pack_params(params, compute_dtype)   # in a real model this is done once at init

    # NCHW -> channels-last, time-flattened.  (One HBM round trip; feed / return
    # channels-last end-to-end to avoid the transposes — see channels_last_out.)
    x2 = jnp.transpose(x_nchw, (0, 2, 3, 1)).reshape(N * R, Cin).astype(compute_dtype)

    def full_spec(a):
        return pl.BlockSpec(a.shape, lambda n, _nd=a.ndim: (0,) * _nd)

    flops = 2 * N * R * (Cin * p["w_all"].shape[1]
                         + (2 * NB4 + 1) * p["msh"].shape[1] * Cout
                         + bc * Cout)
    bytes_accessed = (int(x2.size) * x2.dtype.itemsize
                      + N * R * Cout * 4
                      + sum(int(p[k].size) * p[k].dtype.itemsize
                            for k in ("w_all", "b_all", "msh", "s5sel")))

    out2 = pl.pallas_call(
        functools.partial(_mstcn_kernel, V=V, rows_per_batch=R, bc=bc),
        out_shape=jax.ShapeDtypeStruct((N * R, Cout), jnp.float32),
        grid=(N // batch_per_block,),
        in_specs=[pl.BlockSpec((rows, Cin), lambda n: (n, 0)),
                  full_spec(p["w_all"]), full_spec(p["b_all"]),
                  full_spec(p["msh"]), full_spec(p["s5sel"])],
        out_specs=pl.BlockSpec((rows, Cout), lambda n: (n, 0)),
        compiler_params=pltpu.CompilerParams(dimension_semantics=("parallel",)),
        cost_estimate=pl.CostEstimate(flops=int(flops), transcendentals=0,
                                      bytes_accessed=int(bytes_accessed)),
    )(x2, p["w_all"], p["b_all"], p["msh"], p["s5sel"])

    out = out2.reshape(N, T, V, Cout)
    if channels_last_out:
        return out
    return jnp.transpose(out, (0, 3, 1, 2))


# ---------------------------------------------------------------------------
# Deterministic init (matches the module's __init__ shapes, BN folded, eval mode)
# ---------------------------------------------------------------------------
def init_params(key, in_channels, out_channels):
    assert out_channels % NUM_BRANCHES == 0
    bc = out_channels // NUM_BRANCHES
    ks = jax.random.split(key, 12)

    std1 = (2.0 / bc) ** 0.5             # kaiming fan_out, 1x1 conv
    stdt = (2.0 / (bc * KS)) ** 0.5      # kaiming fan_out, (KS,1) conv
    stdr = (2.0 / out_channels) ** 0.5   # residual 1x1 conv

    def gamma(k, shape):                 # BN weight ~ N(1, 0.02); running stats mean=0, var=1
        return 1.0 + 0.02 * jax.random.normal(k, shape)

    def bnscale(g):                      # eval-mode BN fold (beta = 0)
        return g / jnp.sqrt(1.0 + EPS)

    w1 = jax.random.normal(ks[0], (NB4, in_channels, bc)) * std1
    w1 = (w1 * bnscale(gamma(ks[1], (NB4, bc)))[:, None, :]).astype(jnp.float32)
    b1 = jnp.zeros((NB4, 1, bc), jnp.float32)

    wt = jax.random.normal(ks[2], (NB4, KS, bc, bc)) * stdt          # (branch, tap, in, out)
    wt = (wt * bnscale(gamma(ks[3], (NB4, bc)))[:, None, None, :]).astype(jnp.float32)
    bt = jnp.zeros((NB4, 1, bc), jnp.float32)

    w5 = jax.random.normal(ks[4], (in_channels, bc)) * std1
    w5 = (w5 * bnscale(gamma(ks[5], (bc,)))[None, :]).astype(jnp.float32)
    b5 = jnp.zeros((1, bc), jnp.float32)
    s5 = bnscale(gamma(ks[6], (bc,)))[None, :].astype(jnp.float32)   # post-maxpool BN
    sh5 = jnp.zeros((1, bc), jnp.float32)

    w6 = jax.random.normal(ks[7], (in_channels, bc)) * std1
    w6 = (w6 * bnscale(gamma(ks[8], (bc,)))[None, :]).astype(jnp.float32)
    b6 = jnp.zeros((1, bc), jnp.float32)

    # residual TemporalConv(in, out, ks=1) + BN, stored per output-branch slice
    wr = jax.random.normal(ks[9], (NUM_BRANCHES, in_channels, bc)) * stdr
    wr = (wr * bnscale(gamma(ks[10], (NUM_BRANCHES, bc)))[:, None, :]).astype(jnp.float32)
    br = jnp.zeros((NUM_BRANCHES, 1, bc), jnp.float32)

    return dict(w1=w1, b1=b1, wt=wt, bt=bt, w5=w5, b5=b5, s5=s5, sh5=sh5,
                w6=w6, b6=b6, wr=wr, br=br)


# ---------------------------------------------------------------------------
# Pure-JAX reference (unfused, same folded parameters)
# ---------------------------------------------------------------------------
def reference(x_nchw, p):
    x = jnp.transpose(x_nchw, (0, 2, 3, 1)).astype(jnp.float32)      # (N, T, V, Cin)

    def pw(w, b):
        return jnp.einsum("ntvc,co->ntvo", x, w) + b[0]

    outs = []
    for bi, d in enumerate(DILATIONS):
        y = jax.nn.relu(pw(p["w1"][bi], p["b1"][bi]))
        pad = (KS + (KS - 1) * (d - 1) - 1) // 2
        yc = lax.conv_general_dilated(
            y, p["wt"][bi][:, None, :, :], (1, 1),
            [(pad, pad), (0, 0)], rhs_dilation=(d, 1),
            dimension_numbers=("NHWC", "HWIO", "NHWC")) + p["bt"][bi][0]
        outs.append(yc)

    y = jax.nn.relu(pw(p["w5"], p["b5"]))
    m = lax.reduce_window(y, -jnp.inf, lax.max, (1, 3, 1, 1), (1, 1, 1, 1),
                          [(0, 0), (1, 1), (0, 0), (0, 0)])
    outs.append(m * p["s5"][0] + p["sh5"][0])
    outs.append(pw(p["w6"], p["b6"]))

    out = jnp.concatenate(outs, axis=-1)
    res = jnp.concatenate(
        [jnp.einsum("ntvc,co->ntvo", x, p["wr"][bi]) + p["br"][bi][0]
         for bi in range(NUM_BRANCHES)], axis=-1)
    return jnp.transpose(out + res, (0, 3, 1, 2))


if __name__ == "__main__":
    N, Cin, T, V = 2, 4, 16, 16
    Cout = 12                                    # must be a multiple of NUM_BRANCHES (6)

    key = jax.random.PRNGKey(0)
    kx, kp = jax.random.split(key)
    x = jax.random.normal(kx, (N, Cin, T, V), jnp.float32)
    params = init_params(kp, Cin, Cout)

    ref = reference(x, params)

    # grid=(N,) "parallel": one batch element per grid step (uses both TCs on v7x).
    out = jax.block_until_ready(multiscale_temporal_conv(x, params))
    assert out.shape == (N, Cout, T, V)
    err = float(jnp.max(jnp.abs(out - ref)))
    assert err < 1e-3, f"per-batch grid: max abs error {err}"

    # Whole batch folded into one grid step (preferred on single-TC v5e / v6e).
    out_f = jax.block_until_ready(
        multiscale_temporal_conv(x, params, batch_per_block=N))
    err_f = float(jnp.max(jnp.abs(out_f - ref)))
    assert err_f < 1e-3, f"batch-folded grid: max abs error {err_f}"

    print("KERNEL_OK")
</pallas_src>

<mosaic_0001>
module attributes {stable_mosaic.version = 11 : i64} {
  func.func @_mstcn_kernel(%arg0: i32, %arg1: memref<256x4xf32, #tpu.memory_space<vmem>>, %arg2: memref<4x22xf32, #tpu.memory_space<vmem>>, %arg3: memref<1x22xf32, #tpu.memory_space<vmem>>, %arg4: memref<9x10x12xf32, #tpu.memory_space<vmem>>, %arg5: memref<2x12xf32, #tpu.memory_space<vmem>>, %arg6: memref<256x12xf32, #tpu.memory_space<vmem>>) attributes {dimension_semantics = [#tpu.dimension_semantics<parallel>], iteration_bounds = array<i64: 2>, scalar_prefetch = 0 : i64, scratch_operands = 0 : i64, tpu.core_type = #tpu.core_type<tc>, window_params = [{transform_indices = @transform_0, window_bounds = array<i64: 256, 4>}, {pipeline_mode = #tpu.pipeline_mode<synchronous>, transform_indices = @transform_1, window_bounds = array<i64: 4, 22>}, {pipeline_mode = #tpu.pipeline_mode<synchronous>, transform_indices = @transform_2, window_bounds = array<i64: 1, 22>}, {pipeline_mode = #tpu.pipeline_mode<synchronous>, transform_indices = @transform_3, window_bounds = array<i64: 9, 10, 12>}, {pipeline_mode = #tpu.pipeline_mode<synchronous>, transform_indices = @transform_4, window_bounds = array<i64: 2, 12>}, {transform_indices = @transform_5, window_bounds = array<i64: 256, 12>}]} {
    %c0 = arith.constant 0 : index
    %c0_0 = arith.constant 0 : index
    %0 = vector.load %arg1[%c0, %c0_0] : memref<256x4xf32, #tpu.memory_space<vmem>>, vector<256x4xf32>
    %c0_1 = arith.constant 0 : index
    %c0_2 = arith.constant 0 : index
    %1 = vector.load %arg2[%c0_1, %c0_2] : memref<4x22xf32, #tpu.memory_space<vmem>>, vector<4x22xf32>
    %cst = arith.constant dense<0.000000e+00> : vector<256x22xf32>
    %2 = tpu.matmul %0, %1, %cst {dimension_numbers = #tpu.dot_dimension_numbers<[1], [0], [0], [1], [0, 0, 1, 1], [], []>} : vector<256x4xf32>, vector<4x22xf32>, vector<256x22xf32> -> vector<256x22xf32>
    %c0_3 = arith.constant 0 : index
    %c0_4 = arith.constant 0 : index
    %3 = vector.load %arg3[%c0_3, %c0_4] : memref<1x22xf32, #tpu.memory_space<vmem>>, vector<1x22xf32>
    %4 = vector.broadcast %3 : vector<1x22xf32> to vector<256x22xf32>
    %5 = arith.addf %2, %4 : vector<256x22xf32>
    %6 = vector.extract_strided_slice %5 {offsets = [0, 0], sizes = [256, 10], strides = [1, 1]} : vector<256x22xf32> to vector<256x10xf32>
    %cst_5 = arith.constant 0.000000e+00 : f32
    %7 = vector.broadcast %cst_5 : f32 to vector<256x10xf32>
    %8 = arith.maximumf %6, %7 : vector<256x10xf32>
    %9 = vector.extract_strided_slice %5 {offsets = [0, 10], sizes = [256, 12], strides = [1, 1]} : vector<256x22xf32> to vector<256x12xf32>
    %10 = tpu.iota {dimensions = array<i32: 0>} : vector<256x1xi32>
    %c4 = arith.constant 4 : index
    %c0_6 = arith.constant 0 : index
    %c0_7 = arith.constant 0 : index
    %11 = vector.load %arg4[%c4, %c0_6, %c0_7] : memref<9x10x12xf32, #tpu.memory_space<vmem>>, vector<1x10x12xf32>
    %12 = vector.shape_cast %11 : vector<1x10x12xf32> to vector<10x12xf32>
    %cst_8 = arith.constant dense<0.000000e+00> : vector<256x12xf32>
    %13 = tpu.matmul %8, %12, %cst_8 {dimension_numbers = #tpu.dot_dimension_numbers<[1], [0], [0], [1], [0, 0, 1, 1], [], []>} : vector<256x10xf32>, vector<10x12xf32>, vector<256x12xf32> -> vector<256x12xf32>
    %14 = arith.addf %9, %13 : vector<256x12xf32>
    %c16_i32 = arith.constant 16 : i32
    %15 = tpu.dynamic_rotate %8 by %c16_i32 dim 0 : vector<256x10xf32>, i32 -> vector<256x10xf32>
    %c16_i32_9 = arith.constant 16 : i32
    %16 = vector.broadcast %c16_i32_9 : i32 to vector<256x1xi32>
    %17 = arith.cmpi sge, %10, %16 : vector<256x1xi32>
    %cst_10 = arith.constant 0.000000e+00 : f32
    %18 = vector.shape_cast %17 : vector<256x1xi1> to vector<256x1xi1>
    %19 = vector.broadcast %18 : vector<256x1xi1> to vector<256x10xi1>
    %20 = vector.broadcast %cst_10 : f32 to vector<256x10xf32>
    %21 = arith.select %19, %15, %20 : vector<256x10xi1>, vector<256x10xf32>
    %c240_i32 = arith.constant 240 : i32
    %22 = tpu.dynamic_rotate %8 by %c240_i32 dim 0 : vector<256x10xf32>, i32 -> vector<256x10xf32>
    %c240_i32_11 = arith.constant 240 : i32
    %23 = vector.broadcast %c240_i32_11 : i32 to vector<256x1xi32>
    %24 = arith.cmpi slt, %10, %23 : vector<256x1xi32>
    %cst_12 = arith.constant 0.000000e+00 : f32
    %25 = vector.shape_cast %24 : vector<256x1xi1> to vector<256x1xi1>
    %26 = vector.broadcast %25 : vector<256x1xi1> to vector<256x10xi1>
    %27 = vector.broadcast %cst_12 : f32 to vector<256x10xf32>
    %28 = arith.select %26, %22, %27 : vector<256x10xi1>, vector<256x10xf32>
    %c3 = arith.constant 3 : index
    %c0_13 = arith.constant 0 : index
    %c0_14 = arith.constant 0 : index
    %29 = vector.load %arg4[%c3, %c0_13, %c0_14] : memref<9x10x12xf32, #tpu.memory_space<vmem>>, vector<1x10x12xf32>
    %30 = vector.shape_cast %29 : vector<1x10x12xf32> to vector<10x12xf32>
    %cst_15 = arith.constant dense<0.000000e+00> : vector<256x12xf32>
    %31 = tpu.matmul %21, %30, %cst_15 {dimension_numbers = #tpu.dot_dimension_numbers<[1], [0], [0], [1], [0, 0, 1, 1], [], []>} : vector<256x10xf32>, vector<10x12xf32>, vector<256x12xf32> -> vector<256x12xf32>
    %32 = arith.addf %14, %31 : vector<256x12xf32>
    %c5 = arith.constant 5 : index
    %c0_16 = arith.constant 0 : index
    %c0_17 = arith.constant 0 : index
    %33 = vector.load %arg4[%c5, %c0_16, %c0_17] : memref<9x10x12xf32, #tpu.memory_space<vmem>>, vector<1x10x12xf32>
    %34 = vector.shape_cast %33 : vector<1x10x12xf32> to vector<10x12xf32>
    %cst_18 = arith.constant dense<0.000000e+00> : vector<256x12xf32>
    %35 = tpu.matmul %28, %34, %cst_18 {dimension_numbers = #tpu.dot_dimension_numbers<[1], [0], [0], [1], [0, 0, 1, 1], [], []>} : vector<256x10xf32>, vector<10x12xf32>, vector<256x12xf32> -> vector<256x12xf32>
    %36 = arith.addf %32, %35 : vector<256x12xf32>
    %c32_i32 = arith.constant 32 : i32
    %37 = tpu.dynamic_rotate %8 by %c32_i32 dim 0 : vector<256x10xf32>, i32 -> vector<256x10xf32>
    %c32_i32_19 = arith.constant 32 : i32
    %38 = vector.broadcast %c32_i32_19 : i32 to vector<256x1xi32>
    %39 = arith.cmpi sge, %10, %38 : vector<256x1xi32>
    %cst_20 = arith.constant 0.000000e+00 : f32
    %40 = vector.shape_cast %39 : vector<256x1xi1> to vector<256x1xi1>
    %41 = vector.broadcast %40 : vector<256x1xi1> to vector<256x10xi1>
    %42 = vector.broadcast %cst_20 : f32 to vector<256x10xf32>
    %43 = arith.select %41, %37, %42 : vector<256x10xi1>, vector<256x10xf32>
    %c2 = arith.constant 2 : index
    %c0_21 = arith.constant 0 : index
    %c0_22 = arith.constant 0 : index
    %44 = vector.load %arg4[%c2, %c0_21, %c0_22] : memref<9x10x12xf32, #tpu.memory_space<vmem>>, vector<1x10x12xf32>
    %45 = vector.shape_cast %44 : vector<1x10x12xf32> to vector<10x12xf32>
    %cst_23 = arith.constant dense<0.000000e+00> : vector<256x12xf32>
    %46 = tpu.matmul %43, %45, %cst_23 {dimension_numbers = #tpu.dot_dimension_numbers<[1], [0], [0], [1], [0, 0, 1, 1], [], []>} : vector<256x10xf32>, vector<10x12xf32>, vector<256x12xf32> -> vector<256x12xf32>
    %47 = arith.addf %36, %46 : vector<256x12xf32>
    %c224_i32 = arith.constant 224 : i32
    %48 = tpu.dynamic_rotate %8 by %c224_i32 dim 0 : vector<256x10xf32>, i32 -> vector<256x10xf32>
    %c224_i32_24 = arith.constant 224 : i32
    %49 = vector.broadcast %c224_i32_24 : i32 to vector<256x1xi32>
    %50 = arith.cmpi slt, %10, %49 : vector<256x1xi32>
    %cst_25 = arith.constant 0.000000e+00 : f32
    %51 = vector.shape_cast %50 : vector<256x1xi1> to vector<256x1xi1>
    %52 = vector.broadcast %51 : vector<256x1xi1> to vector<256x10xi1>
    %53 = vector.broadcast %cst_25 : f32 to vector<256x10xf32>
    %54 = arith.select %52, %48, %53 : vector<256x10xi1>, vector<256x10xf32>
    %c6 = arith.constant 6 : index
    %c0_26 = arith.constant 0 : index
    %c0_27 = arith.constant 0 : index
    %55 = vector.load %arg4[%c6, %c0_26, %c0_27] : memref<9x10x12xf32, #tpu.memory_space<vmem>>, vector<1x10x12xf32>
    %56 = vector.shape_cast %55 : vector<1x10x12xf32> to vector<10x12xf32>
    %cst_28 = arith.constant dense<0.000000e+00> : vector<256x12xf32>
    %57 = tpu.matmul %54, %56, %cst_28 {dimension_numbers = #tpu.dot_dimension_numbers<[1], [0], [0], [1], [0, 0, 1, 1], [], []>} : vector<256x10xf32>, vector<10x12xf32>, vector<256x12xf32> -> vector<256x12xf32>
    %58 = arith.addf %47, %57 : vector<256x12xf32>
    %c48_i32 = arith.constant 48 : i32
    %59 = tpu.dynamic_rotate %8 by %c48_i32 dim 0 : vector<256x10xf32>, i32 -> vector<256x10xf32>
    %c48_i32_29 = arith.constant 48 : i32
    %60 = vector.broadcast %c48_i32_29 : i32 to vector<256x1xi32>
    %61 = arith.cmpi sge, %10, %60 : vector<256x1xi32>
    %cst_30 = arith.constant 0.000000e+00 : f32
    %62 = vector.shape_cast %61 : vector<256x1xi1> to vector<256x1xi1>
    %63 = vector.broadcast %62 : vector<256x1xi1> to vector<256x10xi1>
    %64 = vector.broadcast %cst_30 : f32 to vector<256x10xf32>
    %65 = arith.select %63, %59, %64 : vector<256x10xi1>, vector<256x10xf32>
    %c1 = arith.constant 1 : index
    %c0_31 = arith.constant 0 : index
    %c0_32 = arith.constant 0 : index
    %66 = vector.load %arg4[%c1, %c0_31, %c0_32] : memref<9x10x12xf32, #tpu.memory_space<vmem>>, vector<1x10x12xf32>
    %67 = vector.shape_cast %66 : vector<1x10x12xf32> to vector<10x12xf32>
    %cst_33 = arith.constant dense<0.000000e+00> : vector<256x12xf32>
    %68 = tpu.matmul %65, %67, %cst_33 {dimension_numbers = #tpu.dot_dimension_numbers<[1], [0], [0], [1], [0, 0, 1, 1], [], []>} : vector<256x10xf32>, vector<10x12xf32>, vector<256x12xf32> -> vector<256x12xf32>
    %69 = arith.addf %58, %68 : vector<256x12xf32>
    %c208_i32 = arith.constant 208 : i32
    %70 = tpu.dynamic_rotate %8 by %c208_i32 dim 0 : vector<256x10xf32>, i32 -> vector<256x10xf32>
    %c208_i32_34 = arith.constant 208 : i32
    %71 = vector.broadcast %c208_i32_34 : i32 to vector<256x1xi32>
    %72 = arith.cmpi slt, %10, %71 : vector<256x1xi32>
    %cst_35 = arith.constant 0.000000e+00 : f32
    %73 = vector.shape_cast %72 : vector<256x1xi1> to vector<256x1xi1>
    %74 = vector.broadcast %73 : vector<256x1xi1> to vector<256x10xi1>
    %75 = vector.broadcast %cst_35 : f32 to vector<256x10xf32>
    %76 = arith.select %74, %70, %75 : vector<256x10xi1>, vector<256x10xf32>
    %c7 = arith.constant 7 : index
    %c0_36 = arith.constant 0 : index
    %c0_37 = arith.constant 0 : index
    %77 = vector.load %arg4[%c7, %c0_36, %c0_37] : memref<9x10x12xf32, #tpu.memory_space<vmem>>, vector<1x10x12xf32>
    %78 = vector.shape_cast %77 : vector<1x10x12xf32> to vector<10x12xf32>
    %cst_38 = arith.constant dense<0.000000e+00> : vector<256x12xf32>
    %79 = tpu.matmul %76, %78, %cst_38 {dimension_numbers = #tpu.dot_dimension_numbers<[1], [0], [0], [1], [0, 0, 1, 1], [], []>} : vector<256x10xf32>, vector<10x12xf32>, vector<256x12xf32> -> vector<256x12xf32>
    %80 = arith.addf %69, %79 : vector<256x12xf32>
    %c64_i32 = arith.constant 64 : i32
    %81 = tpu.dynamic_rotate %8 by %c64_i32 dim 0 : vector<256x10xf32>, i32 -> vector<256x10xf32>
    %c64_i32_39 = arith.constant 64 : i32
    %82 = vector.broadcast %c64_i32_39 : i32 to vector<256x1xi32>
    %83 = arith.cmpi sge, %10, %82 : vector<256x1xi32>
    %cst_40 = arith.constant 0.000000e+00 : f32
    %84 = vector.shape_cast %83 : vector<256x1xi1> to vector<256x1xi1>
    %85 = vector.broadcast %84 : vector<256x1xi1> to vector<256x10xi1>
    %86 = vector.broadcast %cst_40 : f32 to vector<256x10xf32>
    %87 = arith.select %85, %81, %86 : vector<256x10xi1>, vector<256x10xf32>
    %c0_41 = arith.constant 0 : index
    %c0_42 = arith.constant 0 : index
    %c0_43 = arith.constant 0 : index
    %88 = vector.load %arg4[%c0_41, %c0_42, %c0_43] : memref<9x10x12xf32, #tpu.memory_space<vmem>>, vector<1x10x12xf32>
    %89 = vector.shape_cast %88 : vector<1x10x12xf32> to vector<10x12xf32>
    %cst_44 = arith.constant dense<0.000000e+00> : vector<256x12xf32>
    %90 = tpu.matmul %87, %89, %cst_44 {dimension_numbers = #tpu.dot_dimension_numbers<[1], [0], [0], [1], [0, 0, 1, 1], [], []>} : vector<256x10xf32>, vector<10x12xf32>, vector<256x12xf32> -> vector<256x12xf32>
    %91 = arith.addf %80, %90 : vector<256x12xf32>
    %c192_i32 = arith.constant 192 : i32
    %92 = tpu.dynamic_rotate %8 by %c192_i32 dim 0 : vector<256x10xf32>, i32 -> vector<256x10xf32>
    %c192_i32_45 = arith.constant 192 : i32
    %93 = vector.broadcast %c192_i32_45 : i32 to vector<256x1xi32>
    %94 = arith.cmpi slt, %10, %93 : vector<256x1xi32>
    %cst_46 = arith.constant 0.000000e+00 : f32
    %95 = vector.shape_cast %94 : vector<256x1xi1> to vector<256x1xi1>
    %96 = vector.broadcast %95 : vector<256x1xi1> to vector<256x10xi1>
    %97 = vector.broadcast %cst_46 : f32 to vector<256x10xf32>
    %98 = arith.select %96, %92, %97 : vector<256x10xi1>, vector<256x10xf32>
    %c8 = arith.constant 8 : index
    %c0_47 = arith.constant 0 : index
    %c0_48 = arith.constant 0 : index
    %99 = vector.load %arg4[%c8, %c0_47, %c0_48] : memref<9x10x12xf32, #tpu.memory_space<vmem>>, vector<1x10x12xf32>
    %100 = vector.shape_cast %99 : vector<1x10x12xf32> to vector<10x12xf32>
    %cst_49 = arith.constant dense<0.000000e+00> : vector<256x12xf32>
    %101 = tpu.matmul %98, %100, %cst_49 {dimension_numbers = #tpu.dot_dimension_numbers<[1], [0], [0], [1], [0, 0, 1, 1], [], []>} : vector<256x10xf32>, vector<10x12xf32>, vector<256x12xf32> -> vector<256x12xf32>
    %102 = arith.addf %91, %101 : vector<256x12xf32>
    %103 = vector.extract_strided_slice %8 {offsets = [0, 8], sizes = [256, 2], strides = [1, 1]} : vector<256x10xf32> to vector<256x2xf32>
    %104 = vector.extract_strided_slice %21 {offsets = [0, 8], sizes = [256, 2], strides = [1, 1]} : vector<256x10xf32> to vector<256x2xf32>
    %105 = arith.maximumf %104, %103 : vector<256x2xf32>
    %106 = vector.extract_strided_slice %28 {offsets = [0, 8], sizes = [256, 2], strides = [1, 1]} : vector<256x10xf32> to vector<256x2xf32>
    %107 = arith.maximumf %105, %106 : vector<256x2xf32>
    %c0_50 = arith.constant 0 : index
    %c0_51 = arith.constant 0 : index
    %108 = vector.load %arg5[%c0_50, %c0_51] : memref<2x12xf32, #tpu.memory_space<vmem>>, vector<2x12xf32>
    %cst_52 = arith.constant dense<0.000000e+00> : vector<256x12xf32>
    %109 = tpu.matmul %107, %108, %cst_52 {dimension_numbers = #tpu.dot_dimension_numbers<[1], [0], [0], [1], [0, 0, 1, 1], [], []>} : vector<256x2xf32>, vector<2x12xf32>, vector<256x12xf32> -> vector<256x12xf32>
    %110 = arith.addf %102, %109 : vector<256x12xf32>
    %c0_53 = arith.constant 0 : index
    %c0_54 = arith.constant 0 : index
    %111 = vector.load %arg6[%c0_53, %c0_54] : memref<256x12xf32, #tpu.memory_space<vmem>>, vector<256x12xf32>
    tpu.vector_store %arg6[%c0_53, %c0_54], %110 {strides = array<i32>} : memref<256x12xf32, #tpu.memory_space<vmem>>, vector<256x12xf32>,
    return
  }
  func.func @transform_0(%arg0: i32) -> (i32, i32) {
    %c0_i32 = arith.constant 0 : i32
    %c0_i32_0 = arith.constant 0 : i32
    return %arg0, %c0_i32 : i32, i32
  }
  func.func @transform_1(%arg0: i32) -> (i32, i32) {
    %c0_i32 = arith.constant 0 : i32
    %c0_i32_0 = arith.constant 0 : i32
    %c0_i32_1 = arith.constant 0 : i32
    return %c0_i32, %c0_i32_0 : i32, i32
  }
  func.func @transform_2(%arg0: i32) -> (i32, i32) {
    %c0_i32 = arith.constant 0 : i32
    %c0_i32_0 = arith.constant 0 : i32
    %c0_i32_1 = arith.constant 0 : i32
    return %c0_i32, %c0_i32_0 : i32, i32
  }
  func.func @transform_3(%arg0: i32) -> (i32, i32, i32) {
    %c0_i32 = arith.constant 0 : i32
    %c0_i32_0 = arith.constant 0 : i32
    %c0_i32_1 = arith.constant 0 : i32
    %c0_i32_2 = arith.constant 0 : i32
    return %c0_i32, %c0_i32_0, %c0_i32_1 : i32, i32, i32
  }
  func.func @transform_4(%arg0: i32) -> (i32, i32) {
    %c0_i32 = arith.constant 0 : i32
    %c0_i32_0 = arith.constant 0 : i32
    %c0_i32_1 = arith.constant 0 : i32
    return %c0_i32, %c0_i32_0 : i32, i32
  }
  func.func @transform_5(%arg0: i32) -> (i32, i32) {
    %c0_i32 = arith.constant 0 : i32
    %c0_i32_0 = arith.constant 0 : i32
    return %arg0, %c0_i32 : i32, i32
  }
}

</mosaic_0001>

<llo_original>
// kernel: tpu_custom_call.1
$region0: #{tpu_custom_call.1}
  #allocation0 [shape = 'u32[]', space=smem, size = 0x4, offset = 0x4, fixed_abs, tag = 'smem constant byte address 0x4 - core index']
  #allocation1 [shape = 'u32[72,128]{1,0:T(1,128)}', space=vmem, size = 0x9000, scoped, tag = 'internal scratch']
  %s0 = inlined_call_operand.vmem [shape: f32[512,4], index: 0, kind: input, shape index: {}]
  %s1 = inlined_call_operand.vmem [shape: f32[4,22], index: 1, kind: input, shape index: {}]
  %s2 = inlined_call_operand.vmem [shape: f32[1,22], index: 2, kind: input, shape index: {}]
  %s3 = inlined_call_operand.vmem [shape: f32[9,10,12], index: 3, kind: input, shape index: {}]
  %s4 = inlined_call_operand.vmem [shape: f32[2,12], index: 4, kind: input, shape index: {}]
  %s5 = inlined_call_operand.vmem [shape: f32[512,12], index: 5, kind: output, shape index: {}]
  %s6 = sld [smem:[#allocation0]]
  $region53: #{tpu_custom_call.1} parent=0
    _
  %s8 = ssub.s32 1, %s6
  %s9 = scalar_select 0, %s8, %s6
  loop: start=0, step=1, limit=4
  $region2: #{tpu_custom_call.1} parent=0 // loop_pre_header
    _
  $region3: #{tpu_custom_call.1} parent=0 // loop_header
    %s11 = sphi 0, %s15
    %p12 = scmp.ge.s32.totalorder %s11, 4
    %s21 = sphi 0, %s23
    %s24 = sphi 0, %s21
    %s25 = sphi 0, %s24
    %s41 = sphi 0, %s25
    %s45 = sphi 0, %s45
    %s47 = sphi 0, %s45
    %s48 = sphi 0, %s47
    %s62 = sphi 0, %s48
    %s66 = sphi 0, %s66
    %s68 = sphi 0, %s66
    %s69 = sphi 0, %s68
    %s83 = sphi 0, %s69
    %s87 = sphi 0, %s87
    %s89 = sphi 0, %s87
    %s90 = sphi 0, %s89
    %s104 = sphi 0, %s90
    %s108 = sphi 0, %s108
    %s110 = sphi 0, %s108
    %s111 = sphi 0, %s110
    %s125 = sphi 0, %s111
    %s131 = sphi 0, %s133
    %s134 = sphi 0, %s131
    %s135 = sphi 0, %s134
    %s151 = sphi 0, %s135
  $region4: #{tpu_custom_call.1} parent=0 // loop_header_branch
    %14 = sbr.rel (%p12) target = $region8
  $region5: #{tpu_custom_call.1} parent=0 // loop_body
    %s16 = ssub.s32 %s11, 1
    %s17 = ssub.s32 %s11, 2
    %s18 = sadd.s32 %s11, 1
    %s19 = ssub.s32 %s11, %s18
    %p20 = scmp.eq.s32.totalorder %s19, 0
    %s22 = sadd.s32 %s21, 1
    %s23 = scalar_select %p20, %s21, %s22
    %p26 = pneg %p20
    %p27 = scmp.eq.s32.totalorder %s11, 1
    %p28 = por %p26, %p27
    %p29 = scmp.ne.s32.totalorder %s21, %s24
    %p30 = scmp.eq.s32.totalorder %s11, 0
    %p31 = por %p29, %p30
    %p32 = scmp.ne.s32.totalorder %s21, %s24
    %p33 = scmp.eq.s32.totalorder %s16, 1
    %p34 = por %p32, %p33
    %p35 = scmp.ne.s32.totalorder %s24, %s25
    %p36 = scmp.eq.s32.totalorder %s16, 0
    %p37 = por %p35, %p36
    %p38 = scmp.ne.s32.totalorder %s24, %s25
    %p39 = scmp.eq.s32.totalorder %s17, 1
    %p40 = por %p38, %p39
    %p42 = scmp.ne.s32.totalorder %s25, %s41
    %p43 = scmp.eq.s32.totalorder %s17, 0
    %p44 = por %p42, %p43
    %s46 = sadd.s32 %s45, 1
    %p49 = scmp.eq.s32.totalorder %s11, 1
    %p50 = scmp.ne.s32.totalorder %s45, %s47
    %p51 = scmp.eq.s32.totalorder %s11, 0
    %p52 = por %p50, %p51
    %p53 = scmp.ne.s32.totalorder %s45, %s47
    %p54 = scmp.eq.s32.totalorder %s16, 1
    %p55 = por %p53, %p54
    %p56 = scmp.ne.s32.totalorder %s47, %s48
    %p57 = scmp.eq.s32.totalorder %s16, 0
    %p58 = por %p56, %p57
    %p59 = scmp.ne.s32.totalorder %s47, %s48
    %p60 = scmp.eq.s32.totalorder %s17, 1
    %p61 = por %p59, %p60
    %p63 = scmp.ne.s32.totalorder %s48, %s62
    %p64 = scmp.eq.s32.totalorder %s17, 0
    %p65 = por %p63, %p64
    %s67 = sadd.s32 %s66, 1
    %p70 = scmp.eq.s32.totalorder %s11, 1
    %p71 = scmp.ne.s32.totalorder %s66, %s68
    %p72 = scmp.eq.s32.totalorder %s11, 0
    %p73 = por %p71, %p72
    %p74 = scmp.ne.s32.totalorder %s66, %s68
    %p75 = scmp.eq.s32.totalorder %s16, 1
    %p76 = por %p74, %p75
    %p77 = scmp.ne.s32.totalorder %s68, %s69
    %p78 = scmp.eq.s32.totalorder %s16, 0
    %p79 = por %p77, %p78
    %p80 = scmp.ne.s32.totalorder %s68, %s69
    %p81 = scmp.eq.s32.totalorder %s17, 1
    %p82 = por %p80, %p81
    %p84 = scmp.ne.s32.totalorder %s69, %s83
    %p85 = scmp.eq.s32.totalorder %s17, 0
    %p86 = por %p84, %p85
    %s88 = sadd.s32 %s87, 1
    %p91 = scmp.eq.s32.totalorder %s11, 1
    %p92 = scmp.ne.s32.totalorder %s87, %s89
    %p93 = scmp.eq.s32.totalorder %s11, 0
    %p94 = por %p92, %p93
    %p95 = scmp.ne.s32.totalorder %s87, %s89
    %p96 = scmp.eq.s32.totalorder %s16, 1
    %p97 = por %p95, %p96
    %p98 = scmp.ne.s32.totalorder %s89, %s90
    %p99 = scmp.eq.s32.totalorder %s16, 0
    %p100 = por %p98, %p99
    %p101 = scmp.ne.s32.totalorder %s89, %s90
    %p102 = scmp.eq.s32.totalorder %s17, 1
    %p103 = por %p101, %p102
    %p105 = scmp.ne.s32.totalorder %s90, %s104
    %p106 = scmp.eq.s32.totalorder %s17, 0
    %p107 = por %p105, %p106
    %s109 = sadd.s32 %s108, 1
    %p112 = scmp.eq.s32.totalorder %s11, 1
    %p113 = scmp.ne.s32.totalorder %s108, %s110
    %p114 = scmp.eq.s32.totalorder %s11, 0
    %p115 = por %p113, %p114
    %p116 = scmp.ne.s32.totalorder %s108, %s110
    %p117 = scmp.eq.s32.totalorder %s16, 1
    %p118 = por %p116, %p117
    %p119 = scmp.ne.s32.totalorder %s110, %s111
    %p120 = scmp.eq.s32.totalorder %s16, 0
    %p121 = por %p119, %p120
    %p122 = scmp.ne.s32.totalorder %s110, %s111
    %p123 = scmp.eq.s32.totalorder %s17, 1
    %p124 = por %p122, %p123
    %p126 = scmp.ne.s32.totalorder %s111, %s125
    %p127 = scmp.eq.s32.totalorder %s17, 0
    %p128 = por %p126, %p127
    %s129 = ssub.s32 %s11, %s18
    %p130 = scmp.eq.s32.totalorder %s129, 0
    %s132 = sadd.s32 %s131, 1
    %s133 = scalar_select %p130, %s131, %s132
    %p136 = pneg %p130
    %p137 = scmp.eq.s32.totalorder %s11, 1
    %p138 = por %p136, %p137
    %p139 = scmp.ne.s32.totalorder %s131, %s134
    %p140 = scmp.eq.s32.totalorder %s11, 0
    %p141 = por %p139, %p140
    %p142 = scmp.ne.s32.totalorder %s131, %s134
    %p143 = scmp.eq.s32.totalorder %s16, 1
    %p144 = por %p142, %p143
    %p145 = scmp.ne.s32.totalorder %s134, %s135
    %p146 = scmp.eq.s32.totalorder %s16, 0
    %p147 = por %p145, %p146
    %p148 = scmp.ne.s32.totalorder %s134, %s135
    %p149 = scmp.eq.s32.totalorder %s17, 1
    %p150 = por %p148, %p149
    %p152 = scmp.ne.s32.totalorder %s135, %s151
    %p153 = scmp.eq.s32.totalorder %s17, 0
    %p154 = por %p152, %p153
    %p155 = scmp.le.s32.totalorder 1, %s11
    %p156 = scmp.lt.s32.totalorder %s11, 3
    %p157 = pnand %p155, %p156
    %p158 = pneg %p157
    // Predicated region
    $region9: #{tpu_custom_call.1} parent=5 // pred_check
      _
    $region10: #{tpu_custom_call.1} parent=5 // pred_check_branch
      %160 = sbr.rel (%p157) target = $region12
    $region11: #{tpu_custom_call.1} parent=5 // pred_region
      %s161 = ssub.s32 %s11, 1
      // Predicated region
      $region13: #{tpu_custom_call.1} parent=11 // pred_check
        %p162 = pneg %p58
      $region14: #{tpu_custom_call.1} parent=11 // pred_check_branch
        %164 = sbr.rel (%p162) target = $region16
      $region15: #{tpu_custom_call.1} parent=11 // pred_region
        _
      $region16: #{tpu_custom_call.1} parent=11 // pred_fallthru
        _
      // Predicated region
      $region17: #{tpu_custom_call.1} parent=11 // pred_check
        %p165 = pneg %p79
      $region18: #{tpu_custom_call.1} parent=11 // pred_check_branch
        %167 = sbr.rel (%p165) target = $region20
      $region19: #{tpu_custom_call.1} parent=11 // pred_region
        _
      $region20: #{tpu_custom_call.1} parent=11 // pred_fallthru
        _
      // Predicated region
      $region21: #{tpu_custom_call.1} parent=11 // pred_check
        %p168 = pneg %p100
      $region22: #{tpu_custom_call.1} parent=11 // pred_check_branch
        %170 = sbr.rel (%p168) target = $region24
      $region23: #{tpu_custom_call.1} parent=11 // pred_region
        _
      $region24: #{tpu_custom_call.1} parent=11 // pred_fallthru
        _
      // Predicated region
      $region25: #{tpu_custom_call.1} parent=11 // pred_check
        %p171 = pneg %p121
      $region26: #{tpu_custom_call.1} parent=11 // pred_check_branch
        %173 = sbr.rel (%p171) target = $region28
      $region27: #{tpu_custom_call.1} parent=11 // pred_region
        _
      $region28: #{tpu_custom_call.1} parent=11 // pred_fallthru
        _
    $region12: #{tpu_custom_call.1} parent=5 // pred_fallthru
      _
    %p174 = scmp.lt.s32.totalorder %s11, 2
    // Predicated region
    $region29: #{tpu_custom_call.1} parent=5 // pred_check
      %p175 = pneg %p174
    $region30: #{tpu_custom_call.1} parent=5 // pred_check_branch
      %177 = sbr.rel (%p175) target = $region32
    $region31: #{tpu_custom_call.1} parent=5 // pred_region
      // Predicated region
      $region33: #{tpu_custom_call.1} parent=31 // pred_check
        %p178 = pneg %p31
      $region34: #{tpu_custom_call.1} parent=31 // pred_check_branch
        %180 = sbr.rel (%p178) target = $region36
      $region35: #{tpu_custom_call.1} parent=31 // pred_region
        %s181 = smul.u32 32, %s11
        %p182 = scmp.lt.s32.totalorder %s181, 63
        %s183 = scalar_select %p182, %s181, 63
        %s184 = smul.addr %s183, 8
        %s185 = scalar_lea.vmem %s0, %s184
        %s186 = smul.u32 32, %s11
      $region36: #{tpu_custom_call.1} parent=31 // pred_fallthru
        _
    $region32: #{tpu_custom_call.1} parent=5 // pred_fallthru
      _
    %p187 = scmp.le.s32.totalorder 1, %s11
    %p188 = scmp.lt.s32.totalorder %s11, 3
    %p189 = pnand %p187, %p188
    %p190 = pneg %p189
    // Predicated region
    $region37: #{tpu_custom_call.1} parent=5 // pred_check
      _
    $region38: #{tpu_custom_call.1} parent=5 // pred_check_branch
      %192 = sbr.rel (%p189) target = $region40
    $region39: #{tpu_custom_call.1} parent=5 // pred_region
      %s193 = ssub.s32 %s11, 1
      %s194 = smul.u32 32, %s16
      %p195 = scmp.lt.s32.totalorder %s194, 63
      %s196 = scalar_select %p195, %s194, 63
      %s197 = smul.addr %s196, 8
      %s198 = scalar_lea.vmem %s0, %s197
      %p199 = pneg %p37
      %p200 = pneg %p34
      %p201 = pneg %p58
      %p202 = pneg %p55
      %p203 = pneg %p79
      %p204 = pneg %p76
      %p205 = pneg %p100
      %p206 = pneg %p97
      %p207 = pneg %p121
      %p208 = pneg %p118
      %p209 = pneg %p147
      %p210 = pneg %p144
      %s211 = smul.u32 32, %s16
      %p212 = scmp.lt.s32.totalorder %s211, 63
      %s213 = scalar_select %p212, %s211, 63
      %s214 = smul.addr %s213, 8
      %s215 = scalar_lea.vmem %s5, %s214
      %s216 = smul.u32 32, %s16
      %p217 = scmp.lt.s32.totalorder %s216, 63
      %s218 = scalar_select %p217, %s216, 63
      %s219 = smul.addr %s218, 8
      %s220 = scalar_lea.vmem %s0, %s219
      %s221 = smul.u32 32, %s16
      %s222 = smul.u32 32, %s16
      %p223 = scmp.lt.s32.totalorder %s222, 63
      %s224 = scalar_select %p223, %s222, 63
      %s225 = smul.addr %s224, 8
      %s226 = scalar_lea.vmem %s5, %s225
      %s227 = smul.u32 32, %s16
      %v228 = vld [vmem:[%s220] sm:$0xff]
      %v229 = vld [vmem:[%s220 + $0x8] sm:$0xff]
      %v230 = vld [vmem:[%s220 + $0x10] sm:$0xff]
      %v231 = vld [vmem:[%s220 + $0x18] sm:$0xff]
      %v232 = vld [vmem:[%s220 + $0x20] sm:$0xff]
      %v233 = vld [vmem:[%s220 + $0x28] sm:$0xff]
      %v234 = vld [vmem:[%s220 + $0x30] sm:$0xff]
      %v235 = vld [vmem:[%s220 + $0x38] sm:$0xff]
      %v236 = vld [vmem:[%s220 + $0x40] sm:$0xff]
      %v237 = vld [vmem:[%s220 + $0x48] sm:$0xff]
      %v238 = vld [vmem:[%s220 + $0x50] sm:$0xff]
      %v239 = vld [vmem:[%s220 + $0x58] sm:$0xff]
      %v240 = vld [vmem:[%s220 + $0x60] sm:$0xff]
      %v241 = vld [vmem:[%s220 + $0x68] sm:$0xff]
      %v242 = vld [vmem:[%s220 + $0x70] sm:$0xff]
      %v243 = vld [vmem:[%s220 + $0x78] sm:$0xff]
      %v244 = vld [vmem:[%s220 + $0x80] sm:$0xff]
      %v245 = vld [vmem:[%s220 + $0x88] sm:$0xff]
      %v246 = vld [vmem:[%s220 + $0x90] sm:$0xff]
      %v247 = vld [vmem:[%s220 + $0x98] sm:$0xff]
      %v248 = vld [vmem:[%s220 + $0xa0] sm:$0xff]
      %v249 = vld [vmem:[%s220 + $0xa8] sm:$0xff]
      %v250 = vld [vmem:[%s220 + $0xb0] sm:$0xff]
      %v251 = vld [vmem:[%s220 + $0xb8] sm:$0xff]
      %v252 = vld [vmem:[%s220 + $0xc0] sm:$0xff]
      %v253 = vld [vmem:[%s220 + $0xc8] sm:$0xff]
      %v254 = vld [vmem:[%s220 + $0xd0] sm:$0xff]
      %v255 = vld [vmem:[%s220 + $0xd8] sm:$0xff]
      %v256 = vld [vmem:[%s220 + $0xe0] sm:$0xff]
      %v257 = vld [vmem:[%s220 + $0xe8] sm:$0xff]
      %v258 = vld [vmem:[%s220 + $0xf0] sm:$0xff]
      %v259 = vld [vmem:[%s220 + $0xf8] sm:$0xff]
      %v260 = vld [vmem:[%s1] sm:$0xf]
      %v261 = vld [vmem:[%s2] sm:$0x1]
      %v263 = vperm.slane %v261, 0
      %vm265 = vcmask 31744
      %v267 = vsel %vm265, %v228, 0
      %v270 = vsel %vm265, %v229, 0
      %v273 = vsel %vm265, %v230, 0
      %v276 = vsel %vm265, %v231, 0
      %v279 = vsel %vm265, %v232, 0
      %v282 = vsel %vm265, %v233, 0
      %v285 = vsel %vm265, %v234, 0
      %v288 = vsel %vm265, %v235, 0
      %v291 = vsel %vm265, %v236, 0
      %v294 = vsel %vm265, %v237, 0
      %v297 = vsel %vm265, %v238, 0
      %v300 = vsel %vm265, %v239, 0
      %v303 = vsel %vm265, %v240, 0
      %v306 = vsel %vm265, %v241, 0
      %v309 = vsel %vm265, %v242, 0
      %v312 = vsel %vm265, %v243, 0
      %v315 = vsel %vm265, %v244, 0
      %v318 = vsel %vm265, %v245, 0
      %v321 = vsel %vm265, %v246, 0
      %v324 = vsel %vm265, %v247, 0
      %v327 = vsel %vm265, %v248, 0
      %v330 = vsel %vm265, %v249, 0
      %v333 = vsel %vm265, %v250, 0
      %v336 = vsel %vm265, %v251, 0
      %v339 = vsel %vm265, %v252, 0
      %v342 = vsel %vm265, %v253, 0
      %v345 = vsel %vm265, %v254, 0
      %v348 = vsel %vm265, %v255, 0
      %v351 = vsel %vm265, %v256, 0
      %v354 = vsel %vm265, %v257, 0
      %v357 = vsel %vm265, %v258, 0
      %v360 = vsel %vm265, %v259, 0
      %vm362 = vcmask 1043456
      %v364 = vsel %vm362, %v260, 0
      %366 = vmatpush.msra.mxu0 0.0
      %367 = vmatpush.msra.mxu0 0.0
      %368 = vmatpush.msra.mxu0 0.0
      %369 = vmatpush.msra.mxu0 0.0
      %370 = vmatpush.msra.mxu0 0.0
      %371 = vmatpush.msra.mxu0 0.0
      %372 = vmatpush.msra.mxu0 0.0
      %373 = vmatpush.msra.mxu0 0.0
      %374 = vmatpush.msra.mxu0 0.0
      %375 = vmatpush.msra.mxu0 0.0
      %376 = vmatpush.msra.mxu0 0.0
      %377 = vmatpush.msra.mxu0 0.0
      %378 = vmatpush.msra.mxu0 0.0
      %379 = vmatpush.msra.mxu0 0.0
      %380 = vmatpush.msra.mxu0 0.0
      %381 = vmatpush.msra.mxu0 %v364
      %382 = vmatmul.f32.gmra.mxu0 %v267
      %v383 = vpop.f32.mrf.mxu0
      %v384 = vadd.f32 %v263, %v383
      %385 = vmatmul.f32.gmra.mxu0 %v270
      %v386 = vpop.f32.mrf.mxu0
      %v387 = vadd.f32 %v263, %v386
      %388 = vmatmul.f32.gmra.mxu0 %v273
      %v389 = vpop.f32.mrf.mxu0
      %v390 = vadd.f32 %v263, %v389
      %391 = vmatmul.f32.gmra.mxu0 %v276
      %v392 = vpop.f32.mrf.mxu0
      %v393 = vadd.f32 %v263, %v392
      %394 = vmatmul.f32.gmra.mxu0 %v279
      %v395 = vpop.f32.mrf.mxu0
      %v396 = vadd.f32 %v263, %v395
      %397 = vmatmul.f32.gmra.mxu0 %v282
      %v398 = vpop.f32.mrf.mxu0
      %v399 = vadd.f32 %v263, %v398
      %400 = vmatmul.f32.gmra.mxu0 %v285
      %v401 = vpop.f32.mrf.mxu0
      %v402 = vadd.f32 %v263, %v401
      %403 = vmatmul.f32.gmra.mxu0 %v288
      %v404 = vpop.f32.mrf.mxu0
      %v405 = vadd.f32 %v263, %v404
      %406 = vmatmul.f32.gmra.mxu0 %v291
      %v407 = vpop.f32.mrf.mxu0
      %v408 = vadd.f32 %v263, %v407
      %409 = vmatmul.f32.gmra.mxu0 %v294
      %v410 = vpop.f32.mrf.mxu0
      %v411 = vadd.f32 %v263, %v410
      %412 = vmatmul.f32.gmra.mxu0 %v297
      %v413 = vpop.f32.mrf.mxu0
      %v414 = vadd.f32 %v263, %v413
      %415 = vmatmul.f32.gmra.mxu0 %v300
      %v416 = vpop.f32.mrf.mxu0
      %v417 = vadd.f32 %v263, %v416
      %418 = vmatmul.f32.gmra.mxu0 %v303
      %v419 = vpop.f32.mrf.mxu0
      %v420 = vadd.f32 %v263, %v419
      %421 = vmatmul.f32.gmra.mxu0 %v306
      %v422 = vpop.f32.mrf.mxu0
      %v423 = vadd.f32 %v263, %v422
      %424 = vmatmul.f32.gmra.mxu0 %v309
      %v425 = vpop.f32.mrf.mxu0
      %v426 = vadd.f32 %v263, %v425
      %427 = vmatmul.f32.gmra.mxu0 %v312
      %v428 = vpop.f32.mrf.mxu0
      %v429 = vadd.f32 %v263, %v428
      %430 = vmatmul.f32.gmra.mxu0 %v315
      %v431 = vpop.f32.mrf.mxu0
      %v432 = vadd.f32 %v263, %v431
      %433 = vmatmul.f32.gmra.mxu0 %v318
      %v434 = vpop.f32.mrf.mxu0
      %v435 = vadd.f32 %v263, %v434
      %436 = vmatmul.f32.gmra.mxu0 %v321
      %v437 = vpop.f32.mrf.mxu0
      %v438 = vadd.f32 %v263, %v437
      %439 = vmatmul.f32.gmra.mxu0 %v324
      %v440 = vpop.f32.mrf.mxu0
      %v441 = vadd.f32 %v263, %v440
      %442 = vmatmul.f32.gmra.mxu0 %v327
      %v443 = vpop.f32.mrf.mxu0
      %v444 = vadd.f32 %v263, %v443
      %445 = vmatmul.f32.gmra.mxu0 %v330
      %v446 = vpop.f32.mrf.mxu0
      %v447 = vadd.f32 %v263, %v446
      %448 = vmatmul.f32.gmra.mxu0 %v333
      %v449 = vpop.f32.mrf.mxu0
      %v450 = vadd.f32 %v263, %v449
      %451 = vmatmul.f32.gmra.mxu0 %v336
      %v452 = vpop.f32.mrf.mxu0
      %v453 = vadd.f32 %v263, %v452
      %454 = vmatmul.f32.gmra.mxu0 %v339
      %v455 = vpop.f32.mrf.mxu0
      %v456 = vadd.f32 %v263, %v455
      %457 = vmatmul.f32.gmra.mxu0 %v342
      %v458 = vpop.f32.mrf.mxu0
      %v459 = vadd.f32 %v263, %v458
      %460 = vmatmul.f32.gmra.mxu0 %v345
      %v461 = vpop.f32.mrf.mxu0
      %v462 = vadd.f32 %v263, %v461
      %463 = vmatmul.f32.gmra.mxu0 %v348
      %v464 = vpop.f32.mrf.mxu0
      %v465 = vadd.f32 %v263, %v464
      %466 = vmatmul.f32.gmra.mxu0 %v351
      %v467 = vpop.f32.mrf.mxu0
      %v468 = vadd.f32 %v263, %v467
      %469 = vmatmul.f32.gmra.mxu0 %v354
      %v470 = vpop.f32.mrf.mxu0
      %v471 = vadd.f32 %v263, %v470
      %472 = vmatmul.f32.gmra.mxu0 %v357
      %v473 = vpop.f32.mrf.mxu0
      %v474 = vadd.f32 %v263, %v473
      %475 = vmatmul.f32.gmra.mxu0 %v360
      %v476 = vpop.f32.mrf.mxu0
      %v477 = vadd.f32 %v263, %v476
      %478 = vdwg.mxu0
      %v479 = vmax.f32 %v384, 0.0
      %v480 = vmax.f32 %v387, 0.0
      %v481 = vmax.f32 %v390, 0.0
      %v482 = vmax.f32 %v393, 0.0
      %v483 = vmax.f32 %v396, 0.0
      %v484 = vmax.f32 %v399, 0.0
      %v485 = vmax.f32 %v402, 0.0
      %v486 = vmax.f32 %v405, 0.0
      %v487 = vmax.f32 %v408, 0.0
      %v488 = vmax.f32 %v411, 0.0
      %v489 = vmax.f32 %v414, 0.0
      %v490 = vmax.f32 %v417, 0.0
      %v491 = vmax.f32 %v420, 0.0
      %v492 = vmax.f32 %v423, 0.0
      %v493 = vmax.f32 %v426, 0.0
      %v494 = vmax.f32 %v429, 0.0
      %v495 = vmax.f32 %v432, 0.0
      %v496 = vmax.f32 %v435, 0.0
      %v497 = vmax.f32 %v438, 0.0
      %v498 = vmax.f32 %v441, 0.0
      %v499 = vmax.f32 %v444, 0.0
      %v500 = vmax.f32 %v447, 0.0
      %v501 = vmax.f32 %v450, 0.0
      %v502 = vmax.f32 %v453, 0.0
      %v503 = vmax.f32 %v456, 0.0
      %v504 = vmax.f32 %v459, 0.0
      %v505 = vmax.f32 %v462, 0.0
      %v506 = vmax.f32 %v465, 0.0
      %v507 = vmax.f32 %v468, 0.0
      %v508 = vmax.f32 %v471, 0.0
      %v509 = vmax.f32 %v474, 0.0
      %v510 = vmax.f32 %v477, 0.0
      %v511 = vlaneseq
      %v512 = vshrl.u32 %v511, 7
      %v513 = vadd.s32 %v512, 8
      %v514 = vadd.s32 %v512, 16
      %v515 = vadd.s32 %v512, 24
      %v516 = vadd.s32 %v512, 32
      %v517 = vadd.s32 %v512, 40
      %v518 = vadd.s32 %v512, 48
      %v519 = vadd.s32 %v512, 56
      %v520 = vadd.s32 %v512, 64
      %v521 = vadd.s32 %v512, 72
      %v522 = vadd.s32 %v512, 80
      %v523 = vadd.s32 %v512, 88
      %v524 = vadd.s32 %v512, 96
      %v525 = vadd.s32 %v512, 104
      %v526 = vadd.s32 %v512, 112
      %v527 = vadd.s32 %v512, 120
      %v528 = vadd.s32 %v512, 128
      %v529 = vadd.s32 %v512, 136
      %v530 = vadd.s32 %v512, 144
      %v531 = vadd.s32 %v512, 152
      %v532 = vadd.s32 %v512, 160
      %v533 = vadd.s32 %v512, 168
      %v534 = vadd.s32 %v512, 176
      %v535 = vadd.s32 %v512, 184
      %v536 = vadd.s32 %v512, 192
      %v537 = vadd.s32 %v512, 200
      %v538 = vadd.s32 %v512, 208
      %v539 = vadd.s32 %v512, 216
      %v540 = vadd.s32 %v512, 224
      %v541 = vadd.s32 %v512, 232
      %v542 = vadd.s32 %v512, 240
      %v543 = vadd.s32 %v512, 248
      %s544 = scalar_lea.vmem %s3, 64
      %v545 = vld [vmem:[%s544] sm:$0xff]
      %v546 = vld [vmem:[%s544 + $0x8] sm:$0x3]
      %vm547 = vcmask 80896
      %v549 = vsel %vm547, %v479, 0
      %v552 = vsel %vm547, %v480, 0
      %v555 = vsel %vm547, %v481, 0
      %v558 = vsel %vm547, %v482, 0
      %v561 = vsel %vm547, %v483, 0
      %v564 = vsel %vm547, %v484, 0
      %v567 = vsel %vm547, %v485, 0
      %v570 = vsel %vm547, %v486, 0
      %v573 = vsel %vm547, %v487, 0
      %v576 = vsel %vm547, %v488, 0
      %v579 = vsel %vm547, %v489, 0
      %v582 = vsel %vm547, %v490, 0
      %v585 = vsel %vm547, %v491, 0
      %v588 = vsel %vm547, %v492, 0
      %v591 = vsel %vm547, %v493, 0
      %v594 = vsel %vm547, %v494, 0
      %v597 = vsel %vm547, %v495, 0
      %v600 = vsel %vm547, %v496, 0
      %v603 = vsel %vm547, %v497, 0
      %v606 = vsel %vm547, %v498, 0
      %v609 = vsel %vm547, %v499, 0
      %v612 = vsel %vm547, %v500, 0
      %v615 = vsel %vm547, %v501, 0
      %v618 = vsel %vm547, %v502, 0
      %v621 = vsel %vm547, %v503, 0
      %v624 = vsel %vm547, %v504, 0
      %v627 = vsel %vm547, %v505, 0
      %v630 = vsel %vm547, %v506, 0
      %v633 = vsel %vm547, %v507, 0
      %v636 = vsel %vm547, %v508, 0
      %v639 = vsel %vm547, %v509, 0
      %v642 = vsel %vm547, %v510, 0
      %vm644 = vcmask 1041408
      %v646 = vsel %vm644, %v546, 0
      %648 = vmatpush.msra.mxu0 0.0
      %649 = vmatpush.msra.mxu0 0.0
      %650 = vmatpush.msra.mxu0 0.0
      %651 = vmatpush.msra.mxu0 0.0
      %652 = vmatpush.msra.mxu0 0.0
      %653 = vmatpush.msra.mxu0 0.0
      %654 = vmatpush.msra.mxu0 0.0
      %655 = vmatpush.msra.mxu0 0.0
      %656 = vmatpush.msra.mxu0 0.0
      %657 = vmatpush.msra.mxu0 0.0
      %658 = vmatpush.msra.mxu0 0.0
      %659 = vmatpush.msra.mxu0 0.0
      %660 = vmatpush.msra.mxu0 0.0
      %661 = vmatpush.msra.mxu0 0.0
      %662 = vmatpush.msra.mxu0 %v646
      %663 = vmatpush.msra.mxu0 %v545
      %664 = vmatmul.f32.gmra.mxu0 %v549
      %v665 = vpop.f32.mrf.mxu0
      %v666 = vadd.f32 0.0, %v665
      %667 = vmatmul.f32.gmra.mxu0 %v552
      %v668 = vpop.f32.mrf.mxu0
      %v669 = vadd.f32 0.0, %v668
      %670 = vmatmul.f32.gmra.mxu0 %v555
      %v671 = vpop.f32.mrf.mxu0
      %v672 = vadd.f32 0.0, %v671
      %673 = vmatmul.f32.gmra.mxu0 %v558
      %v674 = vpop.f32.mrf.mxu0
      %v675 = vadd.f32 0.0, %v674
      %676 = vmatmul.f32.gmra.mxu0 %v561
      %v677 = vpop.f32.mrf.mxu0
      %v678 = vadd.f32 0.0, %v677
      %679 = vmatmul.f32.gmra.mxu0 %v564
      %v680 = vpop.f32.mrf.mxu0
      %v681 = vadd.f32 0.0, %v680
      %682 = vmatmul.f32.gmra.mxu0 %v567
      %v683 = vpop.f32.mrf.mxu0
      %v684 = vadd.f32 0.0, %v683
      %685 = vmatmul.f32.gmra.mxu0 %v570
      %v686 = vpop.f32.mrf.mxu0
      %v687 = vadd.f32 0.0, %v686
      %688 = vmatmul.f32.gmra.mxu0 %v573
      %v689 = vpop.f32.mrf.mxu0
      %v690 = vadd.f32 0.0, %v689
      %691 = vmatmul.f32.gmra.mxu0 %v576
      %v692 = vpop.f32.mrf.mxu0
      %v693 = vadd.f32 0.0, %v692
      %694 = vmatmul.f32.gmra.mxu0 %v579
      %v695 = vpop.f32.mrf.mxu0
      %v696 = vadd.f32 0.0, %v695
      %697 = vmatmul.f32.gmra.mxu0 %v582
      %v698 = vpop.f32.mrf.mxu0
      %v699 = vadd.f32 0.0, %v698
      %700 = vmatmul.f32.gmra.mxu0 %v585
      %v701 = vpop.f32.mrf.mxu0
      %v702 = vadd.f32 0.0, %v701
      %703 = vmatmul.f32.gmra.mxu0 %v588
      %v704 = vpop.f32.mrf.mxu0
      %v705 = vadd.f32 0.0, %v704
      %706 = vmatmul.f32.gmra.mxu0 %v591
      %v707 = vpop.f32.mrf.mxu0
      %v708 = vadd.f32 0.0, %v707
      %709 = vmatmul.f32.gmra.mxu0 %v594
      %v710 = vpop.f32.mrf.mxu0
      %v711 = vadd.f32 0.0, %v710
      %712 = vmatmul.f32.gmra.mxu0 %v597
      %v713 = vpop.f32.mrf.mxu0
      %v714 = vadd.f32 0.0, %v713
      %715 = vmatmul.f32.gmra.mxu0 %v600
      %v716 = vpop.f32.mrf.mxu0
      %v717 = vadd.f32 0.0, %v716
      %718 = vmatmul.f32.gmra.mxu0 %v603
      %v719 = vpop.f32.mrf.mxu0
      %v720 = vadd.f32 0.0, %v719
      %721 = vmatmul.f32.gmra.mxu0 %v606
      %v722 = vpop.f32.mrf.mxu0
      %v723 = vadd.f32 0.0, %v722
      %724 = vmatmul.f32.gmra.mxu0 %v609
      %v725 = vpop.f32.mrf.mxu0
      %v726 = vadd.f32 0.0, %v725
      %727 = vmatmul.f32.gmra.mxu0 %v612
      %v728 = vpop.f32.mrf.mxu0
      %v729 = vadd.f32 0.0, %v728
      %730 = vmatmul.f32.gmra.mxu0 %v615
      %v731 = vpop.f32.mrf.mxu0
      %v732 = vadd.f32 0.0, %v731
      %733 = vmatmul.f32.gmra.mxu0 %v618
      %v734 = vpop.f32.mrf.mxu0
      %v735 = vadd.f32 0.0, %v734
      %736 = vmatmul.f32.gmra.mxu0 %v621
      %v737 = vpop.f32.mrf.mxu0
      %v738 = vadd.f32 0.0, %v737
      %739 = vmatmul.f32.gmra.mxu0 %v624
      %v740 = vpop.f32.mrf.mxu0
      %v741 = vadd.f32 0.0, %v740
      %742 = vmatmul.f32.gmra.mxu0 %v627
      %v743 = vpop.f32.mrf.mxu0
      %v744 = vadd.f32 0.0, %v743
      %745 = vmatmul.f32.gmra.mxu0 %v630
      %v746 = vpop.f32.mrf.mxu0
      %v747 = vadd.f32 0.0, %v746
      %748 = vmatmul.f32.gmra.mxu0 %v633
      %v749 = vpop.f32.mrf.mxu0
      %v750 = vadd.f32 0.0, %v749
      %751 = vmatmul.f32.gmra.mxu0 %v636
      %v752 = vpop.f32.mrf.mxu0
      %v753 = vadd.f32 0.0, %v752
      %754 = vmatmul.f32.gmra.mxu0 %v639
      %v755 = vpop.f32.mrf.mxu0
      %v756 = vadd.f32 0.0, %v755
      %757 = vmatmul.f32.gmra.mxu0 %v642
      %v758 = vpop.f32.mrf.mxu0
      %v759 = vadd.f32 0.0, %v758
      %760 = vdwg.mxu0
      %793 = vrot.lane.b32.xlu0 %v666, 10
      %v794 = vpop.permute.xlu0 %793
      %795 = vrot.lane.b32.xlu0 %v669, 10
      %v796 = vpop.permute.xlu0 %795
      %797 = vrot.lane.b32.xlu0 %v672, 10
      %v798 = vpop.permute.xlu0 %797
      %799 = vrot.lane.b32.xlu0 %v675, 10
      %v800 = vpop.permute.xlu0 %799
      %801 = vrot.lane.b32.xlu0 %v678, 10
      %v802 = vpop.permute.xlu0 %801
      %803 = vrot.lane.b32.xlu0 %v681, 10
      %v804 = vpop.permute.xlu0 %803
      %805 = vrot.lane.b32.xlu0 %v684, 10
      %v806 = vpop.permute.xlu0 %805
      %807 = vrot.lane.b32.xlu0 %v687, 10
      %v808 = vpop.permute.xlu0 %807
      %809 = vrot.lane.b32.xlu0 %v690, 10
      %v810 = vpop.permute.xlu0 %809
      %811 = vrot.lane.b32.xlu0 %v693, 10
      %v812 = vpop.permute.xlu0 %811
      %813 = vrot.lane.b32.xlu0 %v696, 10
      %v814 = vpop.permute.xlu0 %813
      %815 = vrot.lane.b32.xlu0 %v699, 10
      %v816 = vpop.permute.xlu0 %815
      %817 = vrot.lane.b32.xlu0 %v702, 10
      %v818 = vpop.permute.xlu0 %817
      %819 = vrot.lane.b32.xlu0 %v705, 10
      %v820 = vpop.permute.xlu0 %819
      %821 = vrot.lane.b32.xlu0 %v708, 10
      %v822 = vpop.permute.xlu0 %821
      %823 = vrot.lane.b32.xlu0 %v711, 10
      %v824 = vpop.permute.xlu0 %823
      %825 = vrot.lane.b32.xlu0 %v714, 10
      %v826 = vpop.permute.xlu0 %825
      %827 = vrot.lane.b32.xlu0 %v717, 10
      %v828 = vpop.permute.xlu0 %827
      %829 = vrot.lane.b32.xlu0 %v720, 10
      %v830 = vpop.permute.xlu0 %829
      %831 = vrot.lane.b32.xlu0 %v723, 10
      %v832 = vpop.permute.xlu0 %831
      %833 = vrot.lane.b32.xlu0 %v726, 10
      %v834 = vpop.permute.xlu0 %833
      %835 = vrot.lane.b32.xlu0 %v729, 10
      %v836 = vpop.permute.xlu0 %835
      %837 = vrot.lane.b32.xlu0 %v732, 10
      %v838 = vpop.permute.xlu0 %837
      %839 = vrot.lane.b32.xlu0 %v735, 10
      %v840 = vpop.permute.xlu0 %839
      %841 = vrot.lane.b32.xlu0 %v738, 10
      %v842 = vpop.permute.xlu0 %841
      %843 = vrot.lane.b32.xlu0 %v741, 10
      %v844 = vpop.permute.xlu0 %843
      %845 = vrot.lane.b32.xlu0 %v744, 10
      %v846 = vpop.permute.xlu0 %845
      %847 = vrot.lane.b32.xlu0 %v747, 10
      %v848 = vpop.permute.xlu0 %847
      %849 = vrot.lane.b32.xlu0 %v750, 10
      %v850 = vpop.permute.xlu0 %849
      %851 = vrot.lane.b32.xlu0 %v753, 10
      %v852 = vpop.permute.xlu0 %851
      %853 = vrot.lane.b32.xlu0 %v756, 10
      %v854 = vpop.permute.xlu0 %853
      %855 = vrot.lane.b32.xlu0 %v759, 10
      %v856 = vpop.permute.xlu0 %855
      %v889 = vadd.f32 %v384, %v794
      %v890 = vadd.f32 %v387, %v796
      %v891 = vadd.f32 %v390, %v798
      %v892 = vadd.f32 %v393, %v800
      %v893 = vadd.f32 %v396, %v802
      %v894 = vadd.f32 %v399, %v804
      %v895 = vadd.f32 %v402, %v806
      %v896 = vadd.f32 %v405, %v808
      %v897 = vadd.f32 %v408, %v810
      %v898 = vadd.f32 %v411, %v812
      %v899 = vadd.f32 %v414, %v814
      %v900 = vadd.f32 %v417, %v816
      %v901 = vadd.f32 %v420, %v818
      %v902 = vadd.f32 %v423, %v820
      %v903 = vadd.f32 %v426, %v822
      %v904 = vadd.f32 %v429, %v824
      %v905 = vadd.f32 %v432, %v826
      %v906 = vadd.f32 %v435, %v828
      %v907 = vadd.f32 %v438, %v830
      %v908 = vadd.f32 %v441, %v832
      %v909 = vadd.f32 %v444, %v834
      %v910 = vadd.f32 %v447, %v836
      %v911 = vadd.f32 %v450, %v838
      %v912 = vadd.f32 %v453, %v840
      %v913 = vadd.f32 %v456, %v842
      %v914 = vadd.f32 %v459, %v844
      %v915 = vadd.f32 %v462, %v846
      %v916 = vadd.f32 %v465, %v848
      %v917 = vadd.f32 %v468, %v850
      %v918 = vadd.f32 %v471, %v852
      %v919 = vadd.f32 %v474, %v854
      %v920 = vadd.f32 %v477, %v856
      %vm921 = vcmp.ge.s32.totalorder %v512, 16
      %vm922 = vcmp.ge.s32.totalorder %v513, 16
      %vm923 = vcmp.ge.s32.totalorder %v514, 16
      %vm924 = vcmp.ge.s32.totalorder %v515, 16
      %vm925 = vcmp.ge.s32.totalorder %v516, 16
      %vm926 = vcmp.ge.s32.totalorder %v517, 16
      %vm927 = vcmp.ge.s32.totalorder %v518, 16
      %vm928 = vcmp.ge.s32.totalorder %v519, 16
      %vm929 = vcmp.ge.s32.totalorder %v520, 16
      %vm930 = vcmp.ge.s32.totalorder %v521, 16
      %vm931 = vcmp.ge.s32.totalorder %v522, 16
      %vm932 = vcmp.ge.s32.totalorder %v523, 16
      %vm933 = vcmp.ge.s32.totalorder %v524, 16
      %vm934 = vcmp.ge.s32.totalorder %v525, 16
      %vm935 = vcmp.ge.s32.totalorder %v526, 16
      %vm936 = vcmp.ge.s32.totalorder %v527, 16
      %vm937 = vcmp.ge.s32.totalorder %v528, 16
      %vm938 = vcmp.ge.s32.totalorder %v529, 16
      %vm939 = vcmp.ge.s32.totalorder %v530, 16
      %vm940 = vcmp.ge.s32.totalorder %v531, 16
      %vm941 = vcmp.ge.s32.totalorder %v532, 16
      %vm942 = vcmp.ge.s32.totalorder %v533, 16
      %vm943 = vcmp.ge.s32.totalorder %v534, 16
      %vm944 = vcmp.ge.s32.totalorder %v535, 16
      %vm945 = vcmp.ge.s32.totalorder %v536, 16
      %vm946 = vcmp.ge.s32.totalorder %v537, 16
      %vm947 = vcmp.ge.s32.totalorder %v538, 16
      %vm948 = vcmp.ge.s32.totalorder %v539, 16
      %vm949 = vcmp.ge.s32.totalorder %v540, 16
      %vm950 = vcmp.ge.s32.totalorder %v541, 16
      %vm951 = vcmp.ge.s32.totalorder %v542, 16
      %vm952 = vcmp.ge.s32.totalorder %v543, 16
      %v953 = vsel %vm921, 1, 0
      %v954 = vsel %vm922, 1, 0
      %v955 = vsel %vm923, 1, 0
      %v956 = vsel %vm924, 1, 0
      %v957 = vsel %vm925, 1, 0
      %v958 = vsel %vm926, 1, 0
      %v959 = vsel %vm927, 1, 0
      %v960 = vsel %vm928, 1, 0
      %v961 = vsel %vm929, 1, 0
      %v962 = vsel %vm930, 1, 0
      %v963 = vsel %vm931, 1, 0
      %v964 = vsel %vm932, 1, 0
      %v965 = vsel %vm933, 1, 0
      %v966 = vsel %vm934, 1, 0
      %v967 = vsel %vm935, 1, 0
      %v968 = vsel %vm936, 1, 0
      %v969 = vsel %vm937, 1, 0
      %v970 = vsel %vm938, 1, 0
      %v971 = vsel %vm939, 1, 0
      %v972 = vsel %vm940, 1, 0
      %v973 = vsel %vm941, 1, 0
      %v974 = vsel %vm942, 1, 0
      %v975 = vsel %vm943, 1, 0
      %v976 = vsel %vm944, 1, 0
      %v977 = vsel %vm945, 1, 0
      %v978 = vsel %vm946, 1, 0
      %v979 = vsel %vm947, 1, 0
      %v980 = vsel %vm948, 1, 0
      %v981 = vsel %vm949, 1, 0
      %v982 = vsel %vm950, 1, 0
      %v983 = vsel %vm951, 1, 0
      %v984 = vsel %vm952, 1, 0
      %vm985 = vcmp.eq.s32.totalorder %v953, 1
      %vm986 = vcmp.eq.s32.totalorder %v954, 1
      %vm987 = vcmp.eq.s32.totalorder %v955, 1
      %vm988 = vcmp.eq.s32.totalorder %v956, 1
      %vm989 = vcmp.eq.s32.totalorder %v957, 1
      %vm990 = vcmp.eq.s32.totalorder %v958, 1
      %vm991 = vcmp.eq.s32.totalorder %v959, 1
      %vm992 = vcmp.eq.s32.totalorder %v960, 1
      %vm993 = vcmp.eq.s32.totalorder %v961, 1
      %vm994 = vcmp.eq.s32.totalorder %v962, 1
      %vm995 = vcmp.eq.s32.totalorder %v963, 1
      %vm996 = vcmp.eq.s32.totalorder %v964, 1
      %vm997 = vcmp.eq.s32.totalorder %v965, 1
      %vm998 = vcmp.eq.s32.totalorder %v966, 1
      %vm999 = vcmp.eq.s32.totalorder %v967, 1
      %vm1000 = vcmp.eq.s32.totalorder %v968, 1
      %vm1001 = vcmp.eq.s32.totalorder %v969, 1
      %vm1002 = vcmp.eq.s32.totalorder %v970, 1
      %vm1003 = vcmp.eq.s32.totalorder %v971, 1
      %vm1004 = vcmp.eq.s32.totalorder %v972, 1
      %vm1005 = vcmp.eq.s32.totalorder %v973, 1
      %vm1006 = vcmp.eq.s32.totalorder %v974, 1
      %vm1007 = vcmp.eq.s32.totalorder %v975, 1
      %vm1008 = vcmp.eq.s32.totalorder %v976, 1
      %vm1009 = vcmp.eq.s32.totalorder %v977, 1
      %vm1010 = vcmp.eq.s32.totalorder %v978, 1
      %vm1011 = vcmp.eq.s32.totalorder %v979, 1
      %vm1012 = vcmp.eq.s32.totalorder %v980, 1
      %vm1013 = vcmp.eq.s32.totalorder %v981, 1
      %vm1014 = vcmp.eq.s32.totalorder %v982, 1
      %vm1015 = vcmp.eq.s32.totalorder %v983, 1
      %vm1016 = vcmp.eq.s32.totalorder %v984, 1
      %v1017 = vsel %vm985, %v509, 0.0
      %v1018 = vsel %vm986, %v510, 0.0
      %v1019 = vsel %vm987, %v479, 0.0
      %v1020 = vsel %vm988, %v480, 0.0
      %v1021 = vsel %vm989, %v481, 0.0
      %v1022 = vsel %vm990, %v482, 0.0
      %v1023 = vsel %vm991, %v483, 0.0
      %v1024 = vsel %vm992, %v484, 0.0
      %v1025 = vsel %vm993, %v485, 0.0
      %v1026 = vsel %vm994, %v486, 0.0
      %v1027 = vsel %vm995, %v487, 0.0
      %v1028 = vsel %vm996, %v488, 0.0
      %v1029 = vsel %vm997, %v489, 0.0
      %v1030 = vsel %vm998, %v490, 0.0
      %v1031 = vsel %vm999, %v491, 0.0
      %v1032 = vsel %vm1000, %v492, 0.0
      %v1033 = vsel %vm1001, %v493, 0.0
      %v1034 = vsel %vm1002, %v494, 0.0
      %v1035 = vsel %vm1003, %v495, 0.0
      %v1036 = vsel %vm1004, %v496, 0.0
      %v1037 = vsel %vm1005, %v497, 0.0
      %v1038 = vsel %vm1006, %v498, 0.0
      %v1039 = vsel %vm1007, %v499, 0.0
      %v1040 = vsel %vm1008, %v500, 0.0
      %v1041 = vsel %vm1009, %v501, 0.0
      %v1042 = vsel %vm1010, %v502, 0.0
      %v1043 = vsel %vm1011, %v503, 0.0
      %v1044 = vsel %vm1012, %v504, 0.0
      %v1045 = vsel %vm1013, %v505, 0.0
      %v1046 = vsel %vm1014, %v506, 0.0
      %v1047 = vsel %vm1015, %v507, 0.0
      %v1048 = vsel %vm1016, %v508, 0.0
      %vm1049 = vcmp.lt.s32.totalorder %v512, 240
      %vm1050 = vcmp.lt.s32.totalorder %v513, 240
      %vm1051 = vcmp.lt.s32.totalorder %v514, 240
      %vm1052 = vcmp.lt.s32.totalorder %v515, 240
      %vm1053 = vcmp.lt.s32.totalorder %v516, 240
      %vm1054 = vcmp.lt.s32.totalorder %v517, 240
      %vm1055 = vcmp.lt.s32.totalorder %v518, 240
      %vm1056 = vcmp.lt.s32.totalorder %v519, 240
      %vm1057 = vcmp.lt.s32.totalorder %v520, 240
      %vm1058 = vcmp.lt.s32.totalorder %v521, 240
      %vm1059 = vcmp.lt.s32.totalorder %v522, 240
      %vm1060 = vcmp.lt.s32.totalorder %v523, 240
      %vm1061 = vcmp.lt.s32.totalorder %v524, 240
      %vm1062 = vcmp.lt.s32.totalorder %v525, 240
      %vm1063 = vcmp.lt.s32.totalorder %v526, 240
      %vm1064 = vcmp.lt.s32.totalorder %v527, 240
      %vm1065 = vcmp.lt.s32.totalorder %v528, 240
      %vm1066 = vcmp.lt.s32.totalorder %v529, 240
      %vm1067 = vcmp.lt.s32.totalorder %v530, 240
      %vm1068 = vcmp.lt.s32.totalorder %v531, 240
      %vm1069 = vcmp.lt.s32.totalorder %v532, 240
      %vm1070 = vcmp.lt.s32.totalorder %v533, 240
      %vm1071 = vcmp.lt.s32.totalorder %v534, 240
      %vm1072 = vcmp.lt.s32.totalorder %v535, 240
      %vm1073 = vcmp.lt.s32.totalorder %v536, 240
      %vm1074 = vcmp.lt.s32.totalorder %v537, 240
      %vm1075 = vcmp.lt.s32.totalorder %v538, 240
      %vm1076 = vcmp.lt.s32.totalorder %v539, 240
      %vm1077 = vcmp.lt.s32.totalorder %v540, 240
      %vm1078 = vcmp.lt.s32.totalorder %v541, 240
      %vm1079 = vcmp.lt.s32.totalorder %v542, 240
      %vm1080 = vcmp.lt.s32.totalorder %v543, 240
      %v1081 = vsel %vm1049, 1, 0
      %v1082 = vsel %vm1050, 1, 0
      %v1083 = vsel %vm1051, 1, 0
      %v1084 = vsel %vm1052, 1, 0
      %v1085 = vsel %vm1053, 1, 0
      %v1086 = vsel %vm1054, 1, 0
      %v1087 = vsel %vm1055, 1, 0
      %v1088 = vsel %vm1056, 1, 0
      %v1089 = vsel %vm1057, 1, 0
      %v1090 = vsel %vm1058, 1, 0
      %v1091 = vsel %vm1059, 1, 0
      %v1092 = vsel %vm1060, 1, 0
      %v1093 = vsel %vm1061, 1, 0
      %v1094 = vsel %vm1062, 1, 0
      %v1095 = vsel %vm1063, 1, 0
      %v1096 = vsel %vm1064, 1, 0
      %v1097 = vsel %vm1065, 1, 0
      %v1098 = vsel %vm1066, 1, 0
      %v1099 = vsel %vm1067, 1, 0
      %v1100 = vsel %vm1068, 1, 0
      %v1101 = vsel %vm1069, 1, 0
      %v1102 = vsel %vm1070, 1, 0
      %v1103 = vsel %vm1071, 1, 0
      %v1104 = vsel %vm1072, 1, 0
      %v1105 = vsel %vm1073, 1, 0
      %v1106 = vsel %vm1074, 1, 0
      %v1107 = vsel %vm1075, 1, 0
      %v1108 = vsel %vm1076, 1, 0
      %v1109 = vsel %vm1077, 1, 0
      %v1110 = vsel %vm1078, 1, 0
      %v1111 = vsel %vm1079, 1, 0
      %v1112 = vsel %vm1080, 1, 0
      %vm1113 = vcmp.eq.s32.totalorder %v1081, 1
      %vm1114 = vcmp.eq.s32.totalorder %v1082, 1
      %vm1115 = vcmp.eq.s32.totalorder %v1083, 1
      %vm1116 = vcmp.eq.s32.totalorder %v1084, 1
      %vm1117 = vcmp.eq.s32.totalorder %v1085, 1
      %vm1118 = vcmp.eq.s32.totalorder %v1086, 1
      %vm1119 = vcmp.eq.s32.totalorder %v1087, 1
      %vm1120 = vcmp.eq.s32.totalorder %v1088, 1
      %vm1121 = vcmp.eq.s32.totalorder %v1089, 1
      %vm1122 = vcmp.eq.s32.totalorder %v1090, 1
      %vm1123 = vcmp.eq.s32.totalorder %v1091, 1
      %vm1124 = vcmp.eq.s32.totalorder %v1092, 1
      %vm1125 = vcmp.eq.s32.totalorder %v1093, 1
      %vm1126 = vcmp.eq.s32.totalorder %v1094, 1
      %vm1127 = vcmp.eq.s32.totalorder %v1095, 1
      %vm1128 = vcmp.eq.s32.totalorder %v1096, 1
      %vm1129 = vcmp.eq.s32.totalorder %v1097, 1
      %vm1130 = vcmp.eq.s32.totalorder %v1098, 1
      %vm1131 = vcmp.eq.s32.totalorder %v1099, 1
      %vm1132 = vcmp.eq.s32.totalorder %v1100, 1
      %vm1133 = vcmp.eq.s32.totalorder %v1101, 1
      %vm1134 = vcmp.eq.s32.totalorder %v1102, 1
      %vm1135 = vcmp.eq.s32.totalorder %v1103, 1
      %vm1136 = vcmp.eq.s32.totalorder %v1104, 1
      %vm1137 = vcmp.eq.s32.totalorder %v1105, 1
      %vm1138 = vcmp.eq.s32.totalorder %v1106, 1
      %vm1139 = vcmp.eq.s32.totalorder %v1107, 1
      %vm1140 = vcmp.eq.s32.totalorder %v1108, 1
      %vm1141 = vcmp.eq.s32.totalorder %v1109, 1
      %vm1142 = vcmp.eq.s32.totalorder %v1110, 1
      %vm1143 = vcmp.eq.s32.totalorder %v1111, 1
      %vm1144 = vcmp.eq.s32.totalorder %v1112, 1
      %v1145 = vsel %vm1113, %v481, 0.0
      %v1146 = vsel %vm1114, %v482, 0.0
      %v1147 = vsel %vm1115, %v483, 0.0
      %v1148 = vsel %vm1116, %v484, 0.0
      %v1149 = vsel %vm1117, %v485, 0.0
      %v1150 = vsel %vm1118, %v486, 0.0
      %v1151 = vsel %vm1119, %v487, 0.0
      %v1152 = vsel %vm1120, %v488, 0.0
      %v1153 = vsel %vm1121, %v489, 0.0
      %v1154 = vsel %vm1122, %v490, 0.0
      %v1155 = vsel %vm1123, %v491, 0.0
      %v1156 = vsel %vm1124, %v492, 0.0
      %v1157 = vsel %vm1125, %v493, 0.0
      %v1158 = vsel %vm1126, %v494, 0.0
      %v1159 = vsel %vm1127, %v495, 0.0
      %v1160 = vsel %vm1128, %v496, 0.0
      %v1161 = vsel %vm1129, %v497, 0.0
      %v1162 = vsel %vm1130, %v498, 0.0
      %v1163 = vsel %vm1131, %v499, 0.0
      %v1164 = vsel %vm1132, %v500, 0.0
      %v1165 = vsel %vm1133, %v501, 0.0
      %v1166 = vsel %vm1134, %v502, 0.0
      %v1167 = vsel %vm1135, %v503, 0.0
      %v1168 = vsel %vm1136, %v504, 0.0
      %v1169 = vsel %vm1137, %v505, 0.0
      %v1170 = vsel %vm1138, %v506, 0.0
      %v1171 = vsel %vm1139, %v507, 0.0
      %v1172 = vsel %vm1140, %v508, 0.0
      %v1173 = vsel %vm1141, %v509, 0.0
      %v1174 = vsel %vm1142, %v510, 0.0
      %v1175 = vsel %vm1143, %v479, 0.0
      %v1176 = vsel %vm1144, %v480, 0.0
      %s1177 = scalar_lea.vmem %s3, 48
      %v1178 = vld [vmem:[%s1177] sm:$0xff]
      %v1179 = vld [vmem:[%s1177 + $0x8] sm:$0x3]
      %v1181 = vsel %vm547, %v1017, 0
      %v1184 = vsel %vm547, %v1018, 0
      %v1187 = vsel %vm547, %v1019, 0
      %v1190 = vsel %vm547, %v1020, 0
      %v1193 = vsel %vm547, %v1021, 0
      %v1196 = vsel %vm547, %v1022, 0
      %v1199 = vsel %vm547, %v1023, 0
      %v1202 = vsel %vm547, %v1024, 0
      %v1205 = vsel %vm547, %v1025, 0
      %v1208 = vsel %vm547, %v1026, 0
      %v1211 = vsel %vm547, %v1027, 0
      %v1214 = vsel %vm547, %v1028, 0
      %v1217 = vsel %vm547, %v1029, 0
      %v1220 = vsel %vm547, %v1030, 0
      %v1223 = vsel %vm547, %v1031, 0
      %v1226 = vsel %vm547, %v1032, 0
      %v1229 = vsel %vm547, %v1033, 0
      %v1232 = vsel %vm547, %v1034, 0
      %v1235 = vsel %vm547, %v1035, 0
      %v1238 = vsel %vm547, %v1036, 0
      %v1241 = vsel %vm547, %v1037, 0
      %v1244 = vsel %vm547, %v1038, 0
      %v1247 = vsel %vm547, %v1039, 0
      %v1250 = vsel %vm547, %v1040, 0
      %v1253 = vsel %vm547, %v1041, 0
      %v1256 = vsel %vm547, %v1042, 0
      %v1259 = vsel %vm547, %v1043, 0
      %v1262 = vsel %vm547, %v1044, 0
      %v1265 = vsel %vm547, %v1045, 0
      %v1268 = vsel %vm547, %v1046, 0
      %v1271 = vsel %vm547, %v1047, 0
      %v1274 = vsel %vm547, %v1048, 0
      %v1277 = vsel %vm644, %v1179, 0
      %1279 = vmatpush.msra.mxu0 0.0
      %1280 = vmatpush.msra.mxu0 0.0
      %1281 = vmatpush.msra.mxu0 0.0
      %1282 = vmatpush.msra.mxu0 0.0
      %1283 = vmatpush.msra.mxu0 0.0
      %1284 = vmatpush.msra.mxu0 0.0
      %1285 = vmatpush.msra.mxu0 0.0
      %1286 = vmatpush.msra.mxu0 0.0
      %1287 = vmatpush.msra.mxu0 0.0
      %1288 = vmatpush.msra.mxu0 0.0
      %1289 = vmatpush.msra.mxu0 0.0
      %1290 = vmatpush.msra.mxu0 0.0
      %1291 = vmatpush.msra.mxu0 0.0
      %1292 = vmatpush.msra.mxu0 0.0
      %1293 = vmatpush.msra.mxu0 %v1277
      %1294 = vmatpush.msra.mxu0 %v1178
      %1295 = vmatmul.f32.gmra.mxu0 %v1181
      %v1296 = vpop.f32.mrf.mxu0
      %v1297 = vadd.f32 0.0, %v1296
      %1298 = vmatmul.f32.gmra.mxu0 %v1184
      %v1299 = vpop.f32.mrf.mxu0
      %v1300 = vadd.f32 0.0, %v1299
      %1301 = vmatmul.f32.gmra.mxu0 %v1187
      %v1302 = vpop.f32.mrf.mxu0
      %v1303 = vadd.f32 0.0, %v1302
      %1304 = vmatmul.f32.gmra.mxu0 %v1190
      %v1305 = vpop.f32.mrf.mxu0
      %v1306 = vadd.f32 0.0, %v1305
      %1307 = vmatmul.f32.gmra.mxu0 %v1193
      %v1308 = vpop.f32.mrf.mxu0
      %v1309 = vadd.f32 0.0, %v1308
      %1310 = vmatmul.f32.gmra.mxu0 %v1196
      %v1311 = vpop.f32.mrf.mxu0
      %v1312 = vadd.f32 0.0, %v1311
      %1313 = vmatmul.f32.gmra.mxu0 %v1199
      %v1314 = vpop.f32.mrf.mxu0
      %v1315 = vadd.f32 0.0, %v1314
      %1316 = vmatmul.f32.gmra.mxu0 %v1202
      %v1317 = vpop.f32.mrf.mxu0
      %v1318 = vadd.f32 0.0, %v1317
      %1319 = vmatmul.f32.gmra.mxu0 %v1205
      %v1320 = vpop.f32.mrf.mxu0
      %v1321 = vadd.f32 0.0, %v1320
      %1322 = vmatmul.f32.gmra.mxu0 %v1208
      %v1323 = vpop.f32.mrf.mxu0
      %v1324 = vadd.f32 0.0, %v1323
      %1325 = vmatmul.f32.gmra.mxu0 %v1211
      %v1326 = vpop.f32.mrf.mxu0
      %v1327 = vadd.f32 0.0, %v1326
      %1328 = vmatmul.f32.gmra.mxu0 %v1214
      %v1329 = vpop.f32.mrf.mxu0
      %v1330 = vadd.f32 0.0, %v1329
      %1331 = vmatmul.f32.gmra.mxu0 %v1217
      %v1332 = vpop.f32.mrf.mxu0
      %v1333 = vadd.f32 0.0, %v1332
      %1334 = vmatmul.f32.gmra.mxu0 %v1220
      %v1335 = vpop.f32.mrf.mxu0
      %v1336 = vadd.f32 0.0, %v1335
      %1337 = vmatmul.f32.gmra.mxu0 %v1223
      %v1338 = vpop.f32.mrf.mxu0
      %v1339 = vadd.f32 0.0, %v1338
      %1340 = vmatmul.f32.gmra.mxu0 %v1226
      %v1341 = vpop.f32.mrf.mxu0
      %v1342 = vadd.f32 0.0, %v1341
      %1343 = vmatmul.f32.gmra.mxu0 %v1229
      %v1344 = vpop.f32.mrf.mxu0
      %v1345 = vadd.f32 0.0, %v1344
      %1346 = vmatmul.f32.gmra.mxu0 %v1232
      %v1347 = vpop.f32.mrf.mxu0
      %v1348 = vadd.f32 0.0, %v1347
      %1349 = vmatmul.f32.gmra.mxu0 %v1235
      %v1350 = vpop.f32.mrf.mxu0
      %v1351 = vadd.f32 0.0, %v1350
      %1352 = vmatmul.f32.gmra.mxu0 %v1238
      %v1353 = vpop.f32.mrf.mxu0
      %v1354 = vadd.f32 0.0, %v1353
      %1355 = vmatmul.f32.gmra.mxu0 %v1241
      %v1356 = vpop.f32.mrf.mxu0
      %v1357 = vadd.f32 0.0, %v1356
      %1358 = vmatmul.f32.gmra.mxu0 %v1244
      %v1359 = vpop.f32.mrf.mxu0
      %v1360 = vadd.f32 0.0, %v1359
      %1361 = vmatmul.f32.gmra.mxu0 %v1247
      %v1362 = vpop.f32.mrf.mxu0
      %v1363 = vadd.f32 0.0, %v1362
      %1364 = vmatmul.f32.gmra.mxu0 %v1250
      %v1365 = vpop.f32.mrf.mxu0
      %v1366 = vadd.f32 0.0, %v1365
      %1367 = vmatmul.f32.gmra.mxu0 %v1253
      %v1368 = vpop.f32.mrf.mxu0
      %v1369 = vadd.f32 0.0, %v1368
      %1370 = vmatmul.f32.gmra.mxu0 %v1256
      %v1371 = vpop.f32.mrf.mxu0
      %v1372 = vadd.f32 0.0, %v1371
      %1373 = vmatmul.f32.gmra.mxu0 %v1259
      %v1374 = vpop.f32.mrf.mxu0
      %v1375 = vadd.f32 0.0, %v1374
      %1376 = vmatmul.f32.gmra.mxu0 %v1262
      %v1377 = vpop.f32.mrf.mxu0
      %v1378 = vadd.f32 0.0, %v1377
      %1379 = vmatmul.f32.gmra.mxu0 %v1265
      %v1380 = vpop.f32.mrf.mxu0
      %v1381 = vadd.f32 0.0, %v1380
      %1382 = vmatmul.f32.gmra.mxu0 %v1268
      %v1383 = vpop.f32.mrf.mxu0
      %v1384 = vadd.f32 0.0, %v1383
      %1385 = vmatmul.f32.gmra.mxu0 %v1271
      %v1386 = vpop.f32.mrf.mxu0
      %v1387 = vadd.f32 0.0, %v1386
      %1388 = vmatmul.f32.gmra.mxu0 %v1274
      %v1389 = vpop.f32.mrf.mxu0
      %v1390 = vadd.f32 0.0, %v1389
      %1391 = vdwg.mxu0
      %1424 = vrot.lane.b32.xlu0 %v1297, 10
      %v1425 = vpop.permute.xlu0 %1424
      %1426 = vrot.lane.b32.xlu0 %v1300, 10
      %v1427 = vpop.permute.xlu0 %1426
      %1428 = vrot.lane.b32.xlu0 %v1303, 10
      %v1429 = vpop.permute.xlu0 %1428
      %1430 = vrot.lane.b32.xlu0 %v1306, 10
      %v1431 = vpop.permute.xlu0 %1430
      %1432 = vrot.lane.b32.xlu0 %v1309, 10
      %v1433 = vpop.permute.xlu0 %1432
      %1434 = vrot.lane.b32.xlu0 %v1312, 10
      %v1435 = vpop.permute.xlu0 %1434
      %1436 = vrot.lane.b32.xlu0 %v1315, 10
      %v1437 = vpop.permute.xlu0 %1436
      %1438 = vrot.lane.b32.xlu0 %v1318, 10
      %v1439 = vpop.permute.xlu0 %1438
      %1440 = vrot.lane.b32.xlu0 %v1321, 10
      %v1441 = vpop.permute.xlu0 %1440
      %1442 = vrot.lane.b32.xlu0 %v1324, 10
      %v1443 = vpop.permute.xlu0 %1442
      %1444 = vrot.lane.b32.xlu0 %v1327, 10
      %v1445 = vpop.permute.xlu0 %1444
      %1446 = vrot.lane.b32.xlu0 %v1330, 10
      %v1447 = vpop.permute.xlu0 %1446
      %1448 = vrot.lane.b32.xlu0 %v1333, 10
      %v1449 = vpop.permute.xlu0 %1448
      %1450 = vrot.lane.b32.xlu0 %v1336, 10
      %v1451 = vpop.permute.xlu0 %1450
      %1452 = vrot.lane.b32.xlu0 %v1339, 10
      %v1453 = vpop.permute.xlu0 %1452
      %1454 = vrot.lane.b32.xlu0 %v1342, 10
      %v1455 = vpop.permute.xlu0 %1454
      %1456 = vrot.lane.b32.xlu0 %v1345, 10
      %v1457 = vpop.permute.xlu0 %1456
      %1458 = vrot.lane.b32.xlu0 %v1348, 10
      %v1459 = vpop.permute.xlu0 %1458
      %1460 = vrot.lane.b32.xlu0 %v1351, 10
      %v1461 = vpop.permute.xlu0 %1460
      %1462 = vrot.lane.b32.xlu0 %v1354, 10
      %v1463 = vpop.permute.xlu0 %1462
      %1464 = vrot.lane.b32.xlu0 %v1357, 10
      %v1465 = vpop.permute.xlu0 %1464
      %1466 = vrot.lane.b32.xlu0 %v1360, 10
      %v1467 = vpop.permute.xlu0 %1466
      %1468 = vrot.lane.b32.xlu0 %v1363, 10
      %v1469 = vpop.permute.xlu0 %1468
      %1470 = vrot.lane.b32.xlu0 %v1366, 10
      %v1471 = vpop.permute.xlu0 %1470
      %1472 = vrot.lane.b32.xlu0 %v1369, 10
      %v1473 = vpop.permute.xlu0 %1472
      %1474 = vrot.lane.b32.xlu0 %v1372, 10
      %v1475 = vpop.permute.xlu0 %1474
      %1476 = vrot.lane.b32.xlu0 %v1375, 10
      %v1477 = vpop.permute.xlu0 %1476
      %1478 = vrot.lane.b32.xlu0 %v1378, 10
      %v1479 = vpop.permute.xlu0 %1478
      %1480 = vrot.lane.b32.xlu0 %v1381, 10
      %v1481 = vpop.permute.xlu0 %1480
      %1482 = vrot.lane.b32.xlu0 %v1384, 10
      %v1483 = vpop.permute.xlu0 %1482
      %1484 = vrot.lane.b32.xlu0 %v1387, 10
      %v1485 = vpop.permute.xlu0 %1484
      %1486 = vrot.lane.b32.xlu0 %v1390, 10
      %v1487 = vpop.permute.xlu0 %1486
      %v1520 = vadd.f32 %v889, %v1425
      %v1521 = vadd.f32 %v890, %v1427
      %v1522 = vadd.f32 %v891, %v1429
      %v1523 = vadd.f32 %v892, %v1431
      %v1524 = vadd.f32 %v893, %v1433
      %v1525 = vadd.f32 %v894, %v1435
      %v1526 = vadd.f32 %v895, %v1437
      %v1527 = vadd.f32 %v896, %v1439
      %v1528 = vadd.f32 %v897, %v1441
      %v1529 = vadd.f32 %v898, %v1443
      %v1530 = vadd.f32 %v899, %v1445
      %v1531 = vadd.f32 %v900, %v1447
      %v1532 = vadd.f32 %v901, %v1449
      %v1533 = vadd.f32 %v902, %v1451
      %v1534 = vadd.f32 %v903, %v1453
      %v1535 = vadd.f32 %v904, %v1455
      %v1536 = vadd.f32 %v905, %v1457
      %v1537 = vadd.f32 %v906, %v1459
      %v1538 = vadd.f32 %v907, %v1461
      %v1539 = vadd.f32 %v908, %v1463
      %v1540 = vadd.f32 %v909, %v1465
      %v1541 = vadd.f32 %v910, %v1467
      %v1542 = vadd.f32 %v911, %v1469
      %v1543 = vadd.f32 %v912, %v1471
      %v1544 = vadd.f32 %v913, %v1473
      %v1545 = vadd.f32 %v914, %v1475
      %v1546 = vadd.f32 %v915, %v1477
      %v1547 = vadd.f32 %v916, %v1479
      %v1548 = vadd.f32 %v917, %v1481
      %v1549 = vadd.f32 %v918, %v1483
      %v1550 = vadd.f32 %v919, %v1485
      %v1551 = vadd.f32 %v920, %v1487
      %s1552 = scalar_lea.vmem %s3, 80
      %v1553 = vld [vmem:[%s1552] sm:$0xff]
      %v1554 = vld [vmem:[%s1552 + $0x8] sm:$0x3]
      %v1556 = vsel %vm547, %v1145, 0
      %v1559 = vsel %vm547, %v1146, 0
      %v1562 = vsel %vm547, %v1147, 0
      %v1565 = vsel %vm547, %v1148, 0
      %v1568 = vsel %vm547, %v1149, 0
      %v1571 = vsel %vm547, %v1150, 0
      %v1574 = vsel %vm547, %v1151, 0
      %v1577 = vsel %vm547, %v1152, 0
      %v1580 = vsel %vm547, %v1153, 0
      %v1583 = vsel %vm547, %v1154, 0
      %v1586 = vsel %vm547, %v1155, 0
      %v1589 = vsel %vm547, %v1156, 0
      %v1592 = vsel %vm547, %v1157, 0
      %v1595 = vsel %vm547, %v1158, 0
      %v1598 = vsel %vm547, %v1159, 0
      %v1601 = vsel %vm547, %v1160, 0
      %v1604 = vsel %vm547, %v1161, 0
      %v1607 = vsel %vm547, %v1162, 0
      %v1610 = vsel %vm547, %v1163, 0
      %v1613 = vsel %vm547, %v1164, 0
      %v1616 = vsel %vm547, %v1165, 0
      %v1619 = vsel %vm547, %v1166, 0
      %v1622 = vsel %vm547, %v1167, 0
      %v1625 = vsel %vm547, %v1168, 0
      %v1628 = vsel %vm547, %v1169, 0
      %v1631 = vsel %vm547, %v1170, 0
      %v1634 = vsel %vm547, %v1171, 0
      %v1637 = vsel %vm547, %v1172, 0
      %v1640 = vsel %vm547, %v1173, 0
      %v1643 = vsel %vm547, %v1174, 0
      %v1646 = vsel %vm547, %v1175, 0
      %v1649 = vsel %vm547, %v1176, 0
      %v1652 = vsel %vm644, %v1554, 0
      %1654 = vmatpush.msra.mxu0 0.0
      %1655 = vmatpush.msra.mxu0 0.0
      %1656 = vmatpush.msra.mxu0 0.0
      %1657 = vmatpush.msra.mxu0 0.0
      %1658 = vmatpush.msra.mxu0 0.0
      %1659 = vmatpush.msra.mxu0 0.0
      %1660 = vmatpush.msra.mxu0 0.0
      %1661 = vmatpush.msra.mxu0 0.0
      %1662 = vmatpush.msra.mxu0 0.0
      %1663 = vmatpush.msra.mxu0 0.0
      %1664 = vmatpush.msra.mxu0 0.0
      %1665 = vmatpush.msra.mxu0 0.0
      %1666 = vmatpush.msra.mxu0 0.0
      %1667 = vmatpush.msra.mxu0 0.0
      %1668 = vmatpush.msra.mxu0 %v1652
      %1669 = vmatpush.msra.mxu0 %v1553
      %1670 = vmatmul.f32.gmra.mxu0 %v1556
      %v1671 = vpop.f32.mrf.mxu0
      %v1672 = vadd.f32 0.0, %v1671
      %1673 = vmatmul.f32.gmra.mxu0 %v1559
      %v1674 = vpop.f32.mrf.mxu0
      %v1675 = vadd.f32 0.0, %v1674
      %1676 = vmatmul.f32.gmra.mxu0 %v1562
      %v1677 = vpop.f32.mrf.mxu0
      %v1678 = vadd.f32 0.0, %v1677
      %1679 = vmatmul.f32.gmra.mxu0 %v1565
      %v1680 = vpop.f32.mrf.mxu0
      %v1681 = vadd.f32 0.0, %v1680
      %1682 = vmatmul.f32.gmra.mxu0 %v1568
      %v1683 = vpop.f32.mrf.mxu0
      %v1684 = vadd.f32 0.0, %v1683
      %1685 = vmatmul.f32.gmra.mxu0 %v1571
      %v1686 = vpop.f32.mrf.mxu0
      %v1687 = vadd.f32 0.0, %v1686
      %1688 = vmatmul.f32.gmra.mxu0 %v1574
      %v1689 = vpop.f32.mrf.mxu0
      %v1690 = vadd.f32 0.0, %v1689
      %1691 = vmatmul.f32.gmra.mxu0 %v1577
      %v1692 = vpop.f32.mrf.mxu0
      %v1693 = vadd.f32 0.0, %v1692
      %1694 = vmatmul.f32.gmra.mxu0 %v1580
      %v1695 = vpop.f32.mrf.mxu0
      %v1696 = vadd.f32 0.0, %v1695
      %1697 = vmatmul.f32.gmra.mxu0 %v1583
      %v1698 = vpop.f32.mrf.mxu0
      %v1699 = vadd.f32 0.0, %v1698
      %1700 = vmatmul.f32.gmra.mxu0 %v1586
      %v1701 = vpop.f32.mrf.mxu0
      %v1702 = vadd.f32 0.0, %v1701
      %1703 = vmatmul.f32.gmra.mxu0 %v1589
      %v1704 = vpop.f32.mrf.mxu0
      %v1705 = vadd.f32 0.0, %v1704
      %1706 = vmatmul.f32.gmra.mxu0 %v1592
      %v1707 = vpop.f32.mrf.mxu0
      %v1708 = vadd.f32 0.0, %v1707
      %1709 = vmatmul.f32.gmra.mxu0 %v1595
      %v1710 = vpop.f32.mrf.mxu0
      %v1711 = vadd.f32 0.0, %v1710
      %1712 = vmatmul.f32.gmra.mxu0 %v1598
      %v1713 = vpop.f32.mrf.mxu0
      %v1714 = vadd.f32 0.0, %v1713
      %1715 = vmatmul.f32.gmra.mxu0 %v1601
      %v1716 = vpop.f32.mrf.mxu0
      %v1717 = vadd.f32 0.0, %v1716
      %1718 = vmatmul.f32.gmra.mxu0 %v1604
      %v1719 = vpop.f32.mrf.mxu0
      %v1720 = vadd.f32 0.0, %v1719
      %1721 = vmatmul.f32.gmra.mxu0 %v1607
      %v1722 = vpop.f32.mrf.mxu0
      %v1723 = vadd.f32 0.0, %v1722
      %1724 = vmatmul.f32.gmra.mxu0 %v1610
      %v1725 = vpop.f32.mrf.mxu0
      %v1726 = vadd.f32 0.0, %v1725
      %1727 = vmatmul.f32.gmra.mxu0 %v1613
      %v1728 = vpop.f32.mrf.mxu0
      %v1729 = vadd.f32 0.0, %v1728
      %1730 = vmatmul.f32.gmra.mxu0 %v1616
      %v1731 = vpop.f32.mrf.mxu0
      %v1732 = vadd.f32 0.0, %v1731
      %1733 = vmatmul.f32.gmra.mxu0 %v1619
      %v1734 = vpop.f32.mrf.mxu0
      %v1735 = vadd.f32 0.0, %v1734
      %1736 = vmatmul.f32.gmra.mxu0 %v1622
      %v1737 = vpop.f32.mrf.mxu0
      %v1738 = vadd.f32 0.0, %v1737
      %1739 = vmatmul.f32.gmra.mxu0 %v1625
      %v1740 = vpop.f32.mrf.mxu0
      %v1741 = vadd.f32 0.0, %v1740
      %1742 = vmatmul.f32.gmra.mxu0 %v1628
      %v1743 = vpop.f32.mrf.mxu0
      %v1744 = vadd.f32 0.0, %v1743
      %1745 = vmatmul.f32.gmra.mxu0 %v1631
      %v1746 = vpop.f32.mrf.mxu0
      %v1747 = vadd.f32 0.0, %v1746
      %1748 = vmatmul.f32.gmra.mxu0 %v1634
      %v1749 = vpop.f32.mrf.mxu0
      %v1750 = vadd.f32 0.0, %v1749
      %1751 = vmatmul.f32.gmra.mxu0 %v1637
      %v1752 = vpop.f32.mrf.mxu0
      %v1753 = vadd.f32 0.0, %v1752
      %1754 = vmatmul.f32.gmra.mxu0 %v1640
      %v1755 = vpop.f32.mrf.mxu0
      %v1756 = vadd.f32 0.0, %v1755
      %1757 = vmatmul.f32.gmra.mxu0 %v1643
      %v1758 = vpop.f32.mrf.mxu0
      %v1759 = vadd.f32 0.0, %v1758
      %1760 = vmatmul.f32.gmra.mxu0 %v1646
      %v1761 = vpop.f32.mrf.mxu0
      %v1762 = vadd.f32 0.0, %v1761
      %1763 = vmatmul.f32.gmra.mxu0 %v1649
      %v1764 = vpop.f32.mrf.mxu0
      %v1765 = vadd.f32 0.0, %v1764
      %1766 = vdwg.mxu0
      %1799 = vrot.lane.b32.xlu0 %v1672, 10
      %v1800 = vpop.permute.xlu0 %1799
      %1801 = vrot.lane.b32.xlu0 %v1675, 10
      %v1802 = vpop.permute.xlu0 %1801
      %1803 = vrot.lane.b32.xlu0 %v1678, 10
      %v1804 = vpop.permute.xlu0 %1803
      %1805 = vrot.lane.b32.xlu0 %v1681, 10
      %v1806 = vpop.permute.xlu0 %1805
      %1807 = vrot.lane.b32.xlu0 %v1684, 10
      %v1808 = vpop.permute.xlu0 %1807
      %1809 = vrot.lane.b32.xlu0 %v1687, 10
      %v1810 = vpop.permute.xlu0 %1809
      %1811 = vrot.lane.b32.xlu0 %v1690, 10
      %v1812 = vpop.permute.xlu0 %1811
      %1813 = vrot.lane.b32.xlu0 %v1693, 10
      %v1814 = vpop.permute.xlu0 %1813
      %1815 = vrot.lane.b32.xlu0 %v1696, 10
      %v1816 = vpop.permute.xlu0 %1815
      %1817 = vrot.lane.b32.xlu0 %v1699, 10
      %v1818 = vpop.permute.xlu0 %1817
      %1819 = vrot.lane.b32.xlu0 %v1702, 10
      %v1820 = vpop.permute.xlu0 %1819
      %1821 = vrot.lane.b32.xlu0 %v1705, 10
      %v1822 = vpop.permute.xlu0 %1821
      %1823 = vrot.lane.b32.xlu0 %v1708, 10
      %v1824 = vpop.permute.xlu0 %1823
      %1825 = vrot.lane.b32.xlu0 %v1711, 10
      %v1826 = vpop.permute.xlu0 %1825
      %1827 = vrot.lane.b32.xlu0 %v1714, 10
      %v1828 = vpop.permute.xlu0 %1827
      %1829 = vrot.lane.b32.xlu0 %v1717, 10
      %v1830 = vpop.permute.xlu0 %1829
      %1831 = vrot.lane.b32.xlu0 %v1720, 10
      %v1832 = vpop.permute.xlu0 %1831
      %1833 = vrot.lane.b32.xlu0 %v1723, 10
      %v1834 = vpop.permute.xlu0 %1833
      %1835 = vrot.lane.b32.xlu0 %v1726, 10
      %v1836 = vpop.permute.xlu0 %1835
      %1837 = vrot.lane.b32.xlu0 %v1729, 10
      %v1838 = vpop.permute.xlu0 %1837
      %1839 = vrot.lane.b32.xlu0 %v1732, 10
      %v1840 = vpop.permute.xlu0 %1839
      %1841 = vrot.lane.b32.xlu0 %v1735, 10
      %v1842 = vpop.permute.xlu0 %1841
      %1843 = vrot.lane.b32.xlu0 %v1738, 10
      %v1844 = vpop.permute.xlu0 %1843
      %1845 = vrot.lane.b32.xlu0 %v1741, 10
      %v1846 = vpop.permute.xlu0 %1845
      %1847 = vrot.lane.b32.xlu0 %v1744, 10
      %v1848 = vpop.permute.xlu0 %1847
      %1849 = vrot.lane.b32.xlu0 %v1747, 10
      %v1850 = vpop.permute.xlu0 %1849
      %1851 = vrot.lane.b32.xlu0 %v1750, 10
      %v1852 = vpop.permute.xlu0 %1851
      %1853 = vrot.lane.b32.xlu0 %v1753, 10
      %v1854 = vpop.permute.xlu0 %1853
      %1855 = vrot.lane.b32.xlu0 %v1756, 10
      %v1856 = vpop.permute.xlu0 %1855
      %1857 = vrot.lane.b32.xlu0 %v1759, 10
      %v1858 = vpop.permute.xlu0 %1857
      %1859 = vrot.lane.b32.xlu0 %v1762, 10
      %v1860 = vpop.permute.xlu0 %1859
      %1861 = vrot.lane.b32.xlu0 %v1765, 10
      %v1862 = vpop.permute.xlu0 %1861
      %v1895 = vadd.f32 %v1520, %v1800
      %v1896 = vadd.f32 %v1521, %v1802
      %v1897 = vadd.f32 %v1522, %v1804
      %v1898 = vadd.f32 %v1523, %v1806
      %v1899 = vadd.f32 %v1524, %v1808
      %v1900 = vadd.f32 %v1525, %v1810
      %v1901 = vadd.f32 %v1526, %v1812
      %v1902 = vadd.f32 %v1527, %v1814
      %v1903 = vadd.f32 %v1528, %v1816
      %v1904 = vadd.f32 %v1529, %v1818
      %v1905 = vadd.f32 %v1530, %v1820
      %v1906 = vadd.f32 %v1531, %v1822
      %v1907 = vadd.f32 %v1532, %v1824
      %v1908 = vadd.f32 %v1533, %v1826
      %v1909 = vadd.f32 %v1534, %v1828
      %v1910 = vadd.f32 %v1535, %v1830
      %v1911 = vadd.f32 %v1536, %v1832
      %v1912 = vadd.f32 %v1537, %v1834
      %v1913 = vadd.f32 %v1538, %v1836
      %v1914 = vadd.f32 %v1539, %v1838
      %v1915 = vadd.f32 %v1540, %v1840
      %v1916 = vadd.f32 %v1541, %v1842
      %v1917 = vadd.f32 %v1542, %v1844
      %v1918 = vadd.f32 %v1543, %v1846
      %v1919 = vadd.f32 %v1544, %v1848
      %v1920 = vadd.f32 %v1545, %v1850
      %v1921 = vadd.f32 %v1546, %v1852
      %v1922 = vadd.f32 %v1547, %v1854
      %v1923 = vadd.f32 %v1548, %v1856
      %v1924 = vadd.f32 %v1549, %v1858
      %v1925 = vadd.f32 %v1550, %v1860
      %v1926 = vadd.f32 %v1551, %v1862
      %vm1927 = vcmp.ge.s32.totalorder %v512, 32
      %vm1928 = vcmp.ge.s32.totalorder %v513, 32
      %vm1929 = vcmp.ge.s32.totalorder %v514, 32
      %vm1930 = vcmp.ge.s32.totalorder %v515, 32
      %vm1931 = vcmp.ge.s32.totalorder %v516, 32
      %vm1932 = vcmp.ge.s32.totalorder %v517, 32
      %vm1933 = vcmp.ge.s32.totalorder %v518, 32
      %vm1934 = vcmp.ge.s32.totalorder %v519, 32
      %vm1935 = vcmp.ge.s32.totalorder %v520, 32
      %vm1936 = vcmp.ge.s32.totalorder %v521, 32
      %vm1937 = vcmp.ge.s32.totalorder %v522, 32
      %vm1938 = vcmp.ge.s32.totalorder %v523, 32
      %vm1939 = vcmp.ge.s32.totalorder %v524, 32
      %vm1940 = vcmp.ge.s32.totalorder %v525, 32
      %vm1941 = vcmp.ge.s32.totalorder %v526, 32
      %vm1942 = vcmp.ge.s32.totalorder %v527, 32
      %vm1943 = vcmp.ge.s32.totalorder %v528, 32
      %vm1944 = vcmp.ge.s32.totalorder %v529, 32
      %vm1945 = vcmp.ge.s32.totalorder %v530, 32
      %vm1946 = vcmp.ge.s32.totalorder %v531, 32
      %vm1947 = vcmp.ge.s32.totalorder %v532, 32
      %vm1948 = vcmp.ge.s32.totalorder %v533, 32
      %vm1949 = vcmp.ge.s32.totalorder %v534, 32
      %vm1950 = vcmp.ge.s32.totalorder %v535, 32
      %vm1951 = vcmp.ge.s32.totalorder %v536, 32
      %vm1952 = vcmp.ge.s32.totalorder %v537, 32
      %vm1953 = vcmp.ge.s32.totalorder %v538, 32
      %vm1954 = vcmp.ge.s32.totalorder %v539, 32
      %vm1955 = vcmp.ge.s32.totalorder %v540, 32
      %vm1956 = vcmp.ge.s32.totalorder %v541, 32
      %vm1957 = vcmp.ge.s32.totalorder %v542, 32
      %vm1958 = vcmp.ge.s32.totalorder %v543, 32
      %v1959 = vsel %vm1927, 1, 0
      %v1960 = vsel %vm1928, 1, 0
      %v1961 = vsel %vm1929, 1, 0
      %v1962 = vsel %vm1930, 1, 0
      %v1963 = vsel %vm1931, 1, 0
      %v1964 = vsel %vm1932, 1, 0
      %v1965 = vsel %vm1933, 1, 0
      %v1966 = vsel %vm1934, 1, 0
      %v1967 = vsel %vm1935, 1, 0
      %v1968 = vsel %vm1936, 1, 0
      %v1969 = vsel %vm1937, 1, 0
      %v1970 = vsel %vm1938, 1, 0
      %v1971 = vsel %vm1939, 1, 0
      %v1972 = vsel %vm1940, 1, 0
      %v1973 = vsel %vm1941, 1, 0
      %v1974 = vsel %vm1942, 1, 0
      %v1975 = vsel %vm1943, 1, 0
      %v1976 = vsel %vm1944, 1, 0
      %v1977 = vsel %vm1945, 1, 0
      %v1978 = vsel %vm1946, 1, 0
      %v1979 = vsel %vm1947, 1, 0
      %v1980 = vsel %vm1948, 1, 0
      %v1981 = vsel %vm1949, 1, 0
      %v1982 = vsel %vm1950, 1, 0
      %v1983 = vsel %vm1951, 1, 0
      %v1984 = vsel %vm1952, 1, 0
      %v1985 = vsel %vm1953, 1, 0
      %v1986 = vsel %vm1954, 1, 0
      %v1987 = vsel %vm1955, 1, 0
      %v1988 = vsel %vm1956, 1, 0
      %v1989 = vsel %vm1957, 1, 0
      %v1990 = vsel %vm1958, 1, 0
      %vm1991 = vcmp.eq.s32.totalorder %v1959, 1
      %vm1992 = vcmp.eq.s32.totalorder %v1960, 1
      %vm1993 = vcmp.eq.s32.totalorder %v1961, 1
      %vm1994 = vcmp.eq.s32.totalorder %v1962, 1
      %vm1995 = vcmp.eq.s32.totalorder %v1963, 1
      %vm1996 = vcmp.eq.s32.totalorder %v1964, 1
      %vm1997 = vcmp.eq.s32.totalorder %v1965, 1
      %vm1998 = vcmp.eq.s32.totalorder %v1966, 1
      %vm1999 = vcmp.eq.s32.totalorder %v1967, 1
      %vm2000 = vcmp.eq.s32.totalorder %v1968, 1
      %vm2001 = vcmp.eq.s32.totalorder %v1969, 1
      %vm2002 = vcmp.eq.s32.totalorder %v1970, 1
      %vm2003 = vcmp.eq.s32.totalorder %v1971, 1
      %vm2004 = vcmp.eq.s32.totalorder %v1972, 1
      %vm2005 = vcmp.eq.s32.totalorder %v1973, 1
      %vm2006 = vcmp.eq.s32.totalorder %v1974, 1
      %vm2007 = vcmp.eq.s32.totalorder %v1975, 1
      %vm2008 = vcmp.eq.s32.totalorder %v1976, 1
      %vm2009 = vcmp.eq.s32.totalorder %v1977, 1
      %vm2010 = vcmp.eq.s32.totalorder %v1978, 1
      %vm2011 = vcmp.eq.s32.totalorder %v1979, 1
      %vm2012 = vcmp.eq.s32.totalorder %v1980, 1
      %vm2013 = vcmp.eq.s32.totalorder %v1981, 1
      %vm2014 = vcmp.eq.s32.totalorder %v1982, 1
      %vm2015 = vcmp.eq.s32.totalorder %v1983, 1
      %vm2016 = vcmp.eq.s32.totalorder %v1984, 1
      %vm2017 = vcmp.eq.s32.totalorder %v1985, 1
      %vm2018 = vcmp.eq.s32.totalorder %v1986, 1
      %vm2019 = vcmp.eq.s32.totalorder %v1987, 1
      %vm2020 = vcmp.eq.s32.totalorder %v1988, 1
      %vm2021 = vcmp.eq.s32.totalorder %v1989, 1
      %vm2022 = vcmp.eq.s32.totalorder %v1990, 1
      %v2023 = vsel %vm1991, %v507, 0.0
      %v2024 = vsel %vm1992, %v508, 0.0
      %v2025 = vsel %vm1993, %v509, 0.0
      %v2026 = vsel %vm1994, %v510, 0.0
      %v2027 = vsel %vm1995, %v479, 0.0
      %v2028 = vsel %vm1996, %v480, 0.0
      %v2029 = vsel %vm1997, %v481, 0.0
      %v2030 = vsel %vm1998, %v482, 0.0
      %v2031 = vsel %vm1999, %v483, 0.0
      %v2032 = vsel %vm2000, %v484, 0.0
      %v2033 = vsel %vm2001, %v485, 0.0
      %v2034 = vsel %vm2002, %v486, 0.0
      %v2035 = vsel %vm2003, %v487, 0.0
      %v2036 = vsel %vm2004, %v488, 0.0
      %v2037 = vsel %vm2005, %v489, 0.0
      %v2038 = vsel %vm2006, %v490, 0.0
      %v2039 = vsel %vm2007, %v491, 0.0
      %v2040 = vsel %vm2008, %v492, 0.0
      %v2041 = vsel %vm2009, %v493, 0.0
      %v2042 = vsel %vm2010, %v494, 0.0
      %v2043 = vsel %vm2011, %v495, 0.0
      %v2044 = vsel %vm2012, %v496, 0.0
      %v2045 = vsel %vm2013, %v497, 0.0
      %v2046 = vsel %vm2014, %v498, 0.0
      %v2047 = vsel %vm2015, %v499, 0.0
      %v2048 = vsel %vm2016, %v500, 0.0
      %v2049 = vsel %vm2017, %v501, 0.0
      %v2050 = vsel %vm2018, %v502, 0.0
      %v2051 = vsel %vm2019, %v503, 0.0
      %v2052 = vsel %vm2020, %v504, 0.0
      %v2053 = vsel %vm2021, %v505, 0.0
      %v2054 = vsel %vm2022, %v506, 0.0
      %s2055 = scalar_lea.vmem %s3, 32
      %v2056 = vld [vmem:[%s2055] sm:$0xff]
      %v2057 = vld [vmem:[%s2055 + $0x8] sm:$0x3]
      %v2059 = vsel %vm547, %v2023, 0
      %v2062 = vsel %vm547, %v2024, 0
      %v2065 = vsel %vm547, %v2025, 0
      %v2068 = vsel %vm547, %v2026, 0
      %v2071 = vsel %vm547, %v2027, 0
      %v2074 = vsel %vm547, %v2028, 0
      %v2077 = vsel %vm547, %v2029, 0
      %v2080 = vsel %vm547, %v2030, 0
      %v2083 = vsel %vm547, %v2031, 0
      %v2086 = vsel %vm547, %v2032, 0
      %v2089 = vsel %vm547, %v2033, 0
      %v2092 = vsel %vm547, %v2034, 0
      %v2095 = vsel %vm547, %v2035, 0
      %v2098 = vsel %vm547, %v2036, 0
      %v2101 = vsel %vm547, %v2037, 0
      %v2104 = vsel %vm547, %v2038, 0
      %v2107 = vsel %vm547, %v2039, 0
      %v2110 = vsel %vm547, %v2040, 0
      %v2113 = vsel %vm547, %v2041, 0
      %v2116 = vsel %vm547, %v2042, 0
      %v2119 = vsel %vm547, %v2043, 0
      %v2122 = vsel %vm547, %v2044, 0
      %v2125 = vsel %vm547, %v2045, 0
      %v2128 = vsel %vm547, %v2046, 0
      %v2131 = vsel %vm547, %v2047, 0
      %v2134 = vsel %vm547, %v2048, 0
      %v2137 = vsel %vm547, %v2049, 0
      %v2140 = vsel %vm547, %v2050, 0
      %v2143 = vsel %vm547, %v2051, 0
      %v2146 = vsel %vm547, %v2052, 0
      %v2149 = vsel %vm547, %v2053, 0
      %v2152 = vsel %vm547, %v2054, 0
      %v2155 = vsel %vm644, %v2057, 0
      %2157 = vmatpush.msra.mxu0 0.0
      %2158 = vmatpush.msra.mxu0 0.0
      %2159 = vmatpush.msra.mxu0 0.0
      %2160 = vmatpush.msra.mxu0 0.0
      %2161 = vmatpush.msra.mxu0 0.0
      %2162 = vmatpush.msra.mxu0 0.0
      %2163 = vmatpush.msra.mxu0 0.0
      %2164 = vmatpush.msra.mxu0 0.0
      %2165 = vmatpush.msra.mxu0 0.0
      %2166 = vmatpush.msra.mxu0 0.0
      %2167 = vmatpush.msra.mxu0 0.0
      %2168 = vmatpush.msra.mxu0 0.0
      %2169 = vmatpush.msra.mxu0 0.0
      %2170 = vmatpush.msra.mxu0 0.0
      %2171 = vmatpush.msra.mxu0 %v2155
      %2172 = vmatpush.msra.mxu0 %v2056
      %2173 = vmatmul.f32.gmra.mxu0 %v2059
      %v2174 = vpop.f32.mrf.mxu0
      %v2175 = vadd.f32 0.0, %v2174
      %2176 = vmatmul.f32.gmra.mxu0 %v2062
      %v2177 = vpop.f32.mrf.mxu0
      %v2178 = vadd.f32 0.0, %v2177
      %2179 = vmatmul.f32.gmra.mxu0 %v2065
      %v2180 = vpop.f32.mrf.mxu0
      %v2181 = vadd.f32 0.0, %v2180
      %2182 = vmatmul.f32.gmra.mxu0 %v2068
      %v2183 = vpop.f32.mrf.mxu0
      %v2184 = vadd.f32 0.0, %v2183
      %2185 = vmatmul.f32.gmra.mxu0 %v2071
      %v2186 = vpop.f32.mrf.mxu0
      %v2187 = vadd.f32 0.0, %v2186
      %2188 = vmatmul.f32.gmra.mxu0 %v2074
      %v2189 = vpop.f32.mrf.mxu0
      %v2190 = vadd.f32 0.0, %v2189
      %2191 = vmatmul.f32.gmra.mxu0 %v2077
      %v2192 = vpop.f32.mrf.mxu0
      %v2193 = vadd.f32 0.0, %v2192
      %2194 = vmatmul.f32.gmra.mxu0 %v2080
      %v2195 = vpop.f32.mrf.mxu0
      %v2196 = vadd.f32 0.0, %v2195
      %2197 = vmatmul.f32.gmra.mxu0 %v2083
      %v2198 = vpop.f32.mrf.mxu0
      %v2199 = vadd.f32 0.0, %v2198
      %2200 = vmatmul.f32.gmra.mxu0 %v2086
      %v2201 = vpop.f32.mrf.mxu0
      %v2202 = vadd.f32 0.0, %v2201
      %2203 = vmatmul.f32.gmra.mxu0 %v2089
      %v2204 = vpop.f32.mrf.mxu0
      %v2205 = vadd.f32 0.0, %v2204
      %2206 = vmatmul.f32.gmra.mxu0 %v2092
      %v2207 = vpop.f32.mrf.mxu0
      %v2208 = vadd.f32 0.0, %v2207
      %2209 = vmatmul.f32.gmra.mxu0 %v2095
      %v2210 = vpop.f32.mrf.mxu0
      %v2211 = vadd.f32 0.0, %v2210
      %2212 = vmatmul.f32.gmra.mxu0 %v2098
      %v2213 = vpop.f32.mrf.mxu0
      %v2214 = vadd.f32 0.0, %v2213
      %2215 = vmatmul.f32.gmra.mxu0 %v2101
      %v2216 = vpop.f32.mrf.mxu0
      %v2217 = vadd.f32 0.0, %v2216
      %2218 = vmatmul.f32.gmra.mxu0 %v2104
      %v2219 = vpop.f32.mrf.mxu0
      %v2220 = vadd.f32 0.0, %v2219
      %2221 = vmatmul.f32.gmra.mxu0 %v2107
      %v2222 = vpop.f32.mrf.mxu0
      %v2223 = vadd.f32 0.0, %v2222
      %2224 = vmatmul.f32.gmra.mxu0 %v2110
      %v2225 = vpop.f32.mrf.mxu0
      %v2226 = vadd.f32 0.0, %v2225
      %2227 = vmatmul.f32.gmra.mxu0 %v2113
      %v2228 = vpop.f32.mrf.mxu0
      %v2229 = vadd.f32 0.0, %v2228
      %2230 = vmatmul.f32.gmra.mxu0 %v2116
      %v2231 = vpop.f32.mrf.mxu0
      %v2232 = vadd.f32 0.0, %v2231
      %2233 = vmatmul.f32.gmra.mxu0 %v2119
      %v2234 = vpop.f32.mrf.mxu0
      %v2235 = vadd.f32 0.0, %v2234
      %2236 = vmatmul.f32.gmra.mxu0 %v2122
      %v2237 = vpop.f32.mrf.mxu0
      %v2238 = vadd.f32 0.0, %v2237
      %2239 = vmatmul.f32.gmra.mxu0 %v2125
      %v2240 = vpop.f32.mrf.mxu0
      %v2241 = vadd.f32 0.0, %v2240
      %2242 = vmatmul.f32.gmra.mxu0 %v2128
      %v2243 = vpop.f32.mrf.mxu0
      %v2244 = vadd.f32 0.0, %v2243
      %2245 = vmatmul.f32.gmra.mxu0 %v2131
      %v2246 = vpop.f32.mrf.mxu0
      %v2247 = vadd.f32 0.0, %v2246
      %2248 = vmatmul.f32.gmra.mxu0 %v2134
      %v2249 = vpop.f32.mrf.mxu0
      %v2250 = vadd.f32 0.0, %v2249
      %2251 = vmatmul.f32.gmra.mxu0 %v2137
      %v2252 = vpop.f32.mrf.mxu0
      %v2253 = vadd.f32 0.0, %v2252
      %2254 = vmatmul.f32.gmra.mxu0 %v2140
      %v2255 = vpop.f32.mrf.mxu0
      %v2256 = vadd.f32 0.0, %v2255
      %2257 = vmatmul.f32.gmra.mxu0 %v2143
      %v2258 = vpop.f32.mrf.mxu0
      %v2259 = vadd.f32 0.0, %v2258
      %2260 = vmatmul.f32.gmra.mxu0 %v2146
      %v2261 = vpop.f32.mrf.mxu0
      %v2262 = vadd.f32 0.0, %v2261
      %2263 = vmatmul.f32.gmra.mxu0 %v2149
      %v2264 = vpop.f32.mrf.mxu0
      %v2265 = vadd.f32 0.0, %v2264
      %2266 = vmatmul.f32.gmra.mxu0 %v2152
      %v2267 = vpop.f32.mrf.mxu0
      %v2268 = vadd.f32 0.0, %v2267
      %2269 = vdwg.mxu0
      %2302 = vrot.lane.b32.xlu0 %v2175, 10
      %v2303 = vpop.permute.xlu0 %2302
      %2304 = vrot.lane.b32.xlu0 %v2178, 10
      %v2305 = vpop.permute.xlu0 %2304
      %2306 = vrot.lane.b32.xlu0 %v2181, 10
      %v2307 = vpop.permute.xlu0 %2306
      %2308 = vrot.lane.b32.xlu0 %v2184, 10
      %v2309 = vpop.permute.xlu0 %2308
      %2310 = vrot.lane.b32.xlu0 %v2187, 10
      %v2311 = vpop.permute.xlu0 %2310
      %2312 = vrot.lane.b32.xlu0 %v2190, 10
      %v2313 = vpop.permute.xlu0 %2312
      %2314 = vrot.lane.b32.xlu0 %v2193, 10
      %v2315 = vpop.permute.xlu0 %2314
      %2316 = vrot.lane.b32.xlu0 %v2196, 10
      %v2317 = vpop.permute.xlu0 %2316
      %2318 = vrot.lane.b32.xlu0 %v2199, 10
      %v2319 = vpop.permute.xlu0 %2318
      %2320 = vrot.lane.b32.xlu0 %v2202, 10
      %v2321 = vpop.permute.xlu0 %2320
      %2322 = vrot.lane.b32.xlu0 %v2205, 10
      %v2323 = vpop.permute.xlu0 %2322
      %2324 = vrot.lane.b32.xlu0 %v2208, 10
      %v2325 = vpop.permute.xlu0 %2324
      %2326 = vrot.lane.b32.xlu0 %v2211, 10
      %v2327 = vpop.permute.xlu0 %2326
      %2328 = vrot.lane.b32.xlu0 %v2214, 10
      %v2329 = vpop.permute.xlu0 %2328
      %2330 = vrot.lane.b32.xlu0 %v2217, 10
      %v2331 = vpop.permute.xlu0 %2330
      %2332 = vrot.lane.b32.xlu0 %v2220, 10
      %v2333 = vpop.permute.xlu0 %2332
      %2334 = vrot.lane.b32.xlu0 %v2223, 10
      %v2335 = vpop.permute.xlu0 %2334
      %2336 = vrot.lane.b32.xlu0 %v2226, 10
      %v2337 = vpop.permute.xlu0 %2336
      %2338 = vrot.lane.b32.xlu0 %v2229, 10
      %v2339 = vpop.permute.xlu0 %2338
      %2340 = vrot.lane.b32.xlu0 %v2232, 10
      %v2341 = vpop.permute.xlu0 %2340
      %2342 = vrot.lane.b32.xlu0 %v2235, 10
      %v2343 = vpop.permute.xlu0 %2342
      %2344 = vrot.lane.b32.xlu0 %v2238, 10
      %v2345 = vpop.permute.xlu0 %2344
      %2346 = vrot.lane.b32.xlu0 %v2241, 10
      %v2347 = vpop.permute.xlu0 %2346
      %2348 = vrot.lane.b32.xlu0 %v2244, 10
      %v2349 = vpop.permute.xlu0 %2348
      %2350 = vrot.lane.b32.xlu0 %v2247, 10
      %v2351 = vpop.permute.xlu0 %2350
      %2352 = vrot.lane.b32.xlu0 %v2250, 10
      %v2353 = vpop.permute.xlu0 %2352
      %2354 = vrot.lane.b32.xlu0 %v2253, 10
      %v2355 = vpop.permute.xlu0 %2354
      %2356 = vrot.lane.b32.xlu0 %v2256, 10
      %v2357 = vpop.permute.xlu0 %2356
      %2358 = vrot.lane.b32.xlu0 %v2259, 10
      %v2359 = vpop.permute.xlu0 %2358
      %2360 = vrot.lane.b32.xlu0 %v2262, 10
      %v2361 = vpop.permute.xlu0 %2360
      %2362 = vrot.lane.b32.xlu0 %v2265, 10
      %v2363 = vpop.permute.xlu0 %2362
      %2364 = vrot.lane.b32.xlu0 %v2268, 10
      %v2365 = vpop.permute.xlu0 %2364
      %v2398 = vadd.f32 %v1895, %v2303
      %v2399 = vadd.f32 %v1896, %v2305
      %v2400 = vadd.f32 %v1897, %v2307
      %v2401 = vadd.f32 %v1898, %v2309
      %v2402 = vadd.f32 %v1899, %v2311
      %v2403 = vadd.f32 %v1900, %v2313
      %v2404 = vadd.f32 %v1901, %v2315
      %v2405 = vadd.f32 %v1902, %v2317
      %v2406 = vadd.f32 %v1903, %v2319
      %v2407 = vadd.f32 %v1904, %v2321
      %v2408 = vadd.f32 %v1905, %v2323
      %v2409 = vadd.f32 %v1906, %v2325
      %v2410 = vadd.f32 %v1907, %v2327
      %v2411 = vadd.f32 %v1908, %v2329
      %v2412 = vadd.f32 %v1909, %v2331
      %v2413 = vadd.f32 %v1910, %v2333
      %v2414 = vadd.f32 %v1911, %v2335
      %v2415 = vadd.f32 %v1912, %v2337
      %v2416 = vadd.f32 %v1913, %v2339
      %v2417 = vadd.f32 %v1914, %v2341
      %v2418 = vadd.f32 %v1915, %v2343
      %v2419 = vadd.f32 %v1916, %v2345
      %v2420 = vadd.f32 %v1917, %v2347
      %v2421 = vadd.f32 %v1918, %v2349
      %v2422 = vadd.f32 %v1919, %v2351
      %v2423 = vadd.f32 %v1920, %v2353
      %v2424 = vadd.f32 %v1921, %v2355
      %v2425 = vadd.f32 %v1922, %v2357
      %v2426 = vadd.f32 %v1923, %v2359
      %v2427 = vadd.f32 %v1924, %v2361
      %v2428 = vadd.f32 %v1925, %v2363
      %v2429 = vadd.f32 %v1926, %v2365
      %vm2430 = vcmp.lt.s32.totalorder %v512, 224
      %vm2431 = vcmp.lt.s32.totalorder %v513, 224
      %vm2432 = vcmp.lt.s32.totalorder %v514, 224
      %vm2433 = vcmp.lt.s32.totalorder %v515, 224
      %vm2434 = vcmp.lt.s32.totalorder %v516, 224
      %vm2435 = vcmp.lt.s32.totalorder %v517, 224
      %vm2436 = vcmp.lt.s32.totalorder %v518, 224
      %vm2437 = vcmp.lt.s32.totalorder %v519, 224
      %vm2438 = vcmp.lt.s32.totalorder %v520, 224
      %vm2439 = vcmp.lt.s32.totalorder %v521, 224
      %vm2440 = vcmp.lt.s32.totalorder %v522, 224
      %vm2441 = vcmp.lt.s32.totalorder %v523, 224
      %vm2442 = vcmp.lt.s32.totalorder %v524, 224
      %vm2443 = vcmp.lt.s32.totalorder %v525, 224
      %vm2444 = vcmp.lt.s32.totalorder %v526, 224
      %vm2445 = vcmp.lt.s32.totalorder %v527, 224
      %vm2446 = vcmp.lt.s32.totalorder %v528, 224
      %vm2447 = vcmp.lt.s32.totalorder %v529, 224
      %vm2448 = vcmp.lt.s32.totalorder %v530, 224
      %vm2449 = vcmp.lt.s32.totalorder %v531, 224
      %vm2450 = vcmp.lt.s32.totalorder %v532, 224
      %vm2451 = vcmp.lt.s32.totalorder %v533, 224
      %vm2452 = vcmp.lt.s32.totalorder %v534, 224
      %vm2453 = vcmp.lt.s32.totalorder %v535, 224
      %vm2454 = vcmp.lt.s32.totalorder %v536, 224
      %vm2455 = vcmp.lt.s32.totalorder %v537, 224
      %vm2456 = vcmp.lt.s32.totalorder %v538, 224
      %vm2457 = vcmp.lt.s32.totalorder %v539, 224
      %vm2458 = vcmp.lt.s32.totalorder %v540, 224
      %vm2459 = vcmp.lt.s32.totalorder %v541, 224
      %vm2460 = vcmp.lt.s32.totalorder %v542, 224
      %vm2461 = vcmp.lt.s32.totalorder %v543, 224
      %v2462 = vsel %vm2430, 1, 0
      %v2463 = vsel %vm2431, 1, 0
      %v2464 = vsel %vm2432, 1, 0
      %v2465 = vsel %vm2433, 1, 0
      %v2466 = vsel %vm2434, 1, 0
      %v2467 = vsel %vm2435, 1, 0
      %v2468 = vsel %vm2436, 1, 0
      %v2469 = vsel %vm2437, 1, 0
      %v2470 = vsel %vm2438, 1, 0
      %v2471 = vsel %vm2439, 1, 0
      %v2472 = vsel %vm2440, 1, 0
      %v2473 = vsel %vm2441, 1, 0
      %v2474 = vsel %vm2442, 1, 0
      %v2475 = vsel %vm2443, 1, 0
      %v2476 = vsel %vm2444, 1, 0
      %v2477 = vsel %vm2445, 1, 0
      %v2478 = vsel %vm2446, 1, 0
      %v2479 = vsel %vm2447, 1, 0
      %v2480 = vsel %vm2448, 1, 0
      %v2481 = vsel %vm2449, 1, 0
      %v2482 = vsel %vm2450, 1, 0
      %v2483 = vsel %vm2451, 1, 0
      %v2484 = vsel %vm2452, 1, 0
      %v2485 = vsel %vm2453, 1, 0
      %v2486 = vsel %vm2454, 1, 0
      %v2487 = vsel %vm2455, 1, 0
      %v2488 = vsel %vm2456, 1, 0
      %v2489 = vsel %vm2457, 1, 0
      %v2490 = vsel %vm2458, 1, 0
      %v2491 = vsel %vm2459, 1, 0
      %v2492 = vsel %vm2460, 1, 0
      %v2493 = vsel %vm2461, 1, 0
      %vm2494 = vcmp.eq.s32.totalorder %v2462, 1
      %vm2495 = vcmp.eq.s32.totalorder %v2463, 1
      %vm2496 = vcmp.eq.s32.totalorder %v2464, 1
      %vm2497 = vcmp.eq.s32.totalorder %v2465, 1
      %vm2498 = vcmp.eq.s32.totalorder %v2466, 1
      %vm2499 = vcmp.eq.s32.totalorder %v2467, 1
      %vm2500 = vcmp.eq.s32.totalorder %v2468, 1
      %vm2501 = vcmp.eq.s32.totalorder %v2469, 1
      %vm2502 = vcmp.eq.s32.totalorder %v2470, 1
      %vm2503 = vcmp.eq.s32.totalorder %v2471, 1
      %vm2504 = vcmp.eq.s32.totalorder %v2472, 1
      %vm2505 = vcmp.eq.s32.totalorder %v2473, 1
      %vm2506 = vcmp.eq.s32.totalorder %v2474, 1
      %vm2507 = vcmp.eq.s32.totalorder %v2475, 1
      %vm2508 = vcmp.eq.s32.totalorder %v2476, 1
      %vm2509 = vcmp.eq.s32.totalorder %v2477, 1
      %vm2510 = vcmp.eq.s32.totalorder %v2478, 1
      %vm2511 = vcmp.eq.s32.totalorder %v2479, 1
      %vm2512 = vcmp.eq.s32.totalorder %v2480, 1
      %vm2513 = vcmp.eq.s32.totalorder %v2481, 1
      %vm2514 = vcmp.eq.s32.totalorder %v2482, 1
      %vm2515 = vcmp.eq.s32.totalorder %v2483, 1
      %vm2516 = vcmp.eq.s32.totalorder %v2484, 1
      %vm2517 = vcmp.eq.s32.totalorder %v2485, 1
      %vm2518 = vcmp.eq.s32.totalorder %v2486, 1
      %vm2519 = vcmp.eq.s32.totalorder %v2487, 1
      %vm2520 = vcmp.eq.s32.totalorder %v2488, 1
      %vm2521 = vcmp.eq.s32.totalorder %v2489, 1
      %vm2522 = vcmp.eq.s32.totalorder %v2490, 1
      %vm2523 = vcmp.eq.s32.totalorder %v2491, 1
      %vm2524 = vcmp.eq.s32.totalorder %v2492, 1
      %vm2525 = vcmp.eq.s32.totalorder %v2493, 1
      %v2526 = vsel %vm2494, %v483, 0.0
      %v2527 = vsel %vm2495, %v484, 0.0
      %v2528 = vsel %vm2496, %v485, 0.0
      %v2529 = vsel %vm2497, %v486, 0.0
      %v2530 = vsel %vm2498, %v487, 0.0
      %v2531 = vsel %vm2499, %v488, 0.0
      %v2532 = vsel %vm2500, %v489, 0.0
      %v2533 = vsel %vm2501, %v490, 0.0
      %v2534 = vsel %vm2502, %v491, 0.0
      %v2535 = vsel %vm2503, %v492, 0.0
      %v2536 = vsel %vm2504, %v493, 0.0
      %v2537 = vsel %vm2505, %v494, 0.0
      %v2538 = vsel %vm2506, %v495, 0.0
      %v2539 = vsel %vm2507, %v496, 0.0
      %v2540 = vsel %vm2508, %v497, 0.0
      %v2541 = vsel %vm2509, %v498, 0.0
      %v2542 = vsel %vm2510, %v499, 0.0
      %v2543 = vsel %vm2511, %v500, 0.0
      %v2544 = vsel %vm2512, %v501, 0.0
      %v2545 = vsel %vm2513, %v502, 0.0
      %v2546 = vsel %vm2514, %v503, 0.0
      %v2547 = vsel %vm2515, %v504, 0.0
      %v2548 = vsel %vm2516, %v505, 0.0
      %v2549 = vsel %vm2517, %v506, 0.0
      %v2550 = vsel %vm2518, %v507, 0.0
      %v2551 = vsel %vm2519, %v508, 0.0
      %v2552 = vsel %vm2520, %v509, 0.0
      %v2553 = vsel %vm2521, %v510, 0.0
      %v2554 = vsel %vm2522, %v479, 0.0
      %v2555 = vsel %vm2523, %v480, 0.0
      %v2556 = vsel %vm2524, %v481, 0.0
      %v2557 = vsel %vm2525, %v482, 0.0
      %s2558 = scalar_lea.vmem %s3, 96
      %v2559 = vld [vmem:[%s2558] sm:$0xff]
      %v2560 = vld [vmem:[%s2558 + $0x8] sm:$0x3]
      %v2562 = vsel %vm547, %v2526, 0
      %v2565 = vsel %vm547, %v2527, 0
      %v2568 = vsel %vm547, %v2528, 0
      %v2571 = vsel %vm547, %v2529, 0
      %v2574 = vsel %vm547, %v2530, 0
      %v2577 = vsel %vm547, %v2531, 0
      %v2580 = vsel %vm547, %v2532, 0
      %v2583 = vsel %vm547, %v2533, 0
      %v2586 = vsel %vm547, %v2534, 0
      %v2589 = vsel %vm547, %v2535, 0
      %v2592 = vsel %vm547, %v2536, 0
      %v2595 = vsel %vm547, %v2537, 0
      %v2598 = vsel %vm547, %v2538, 0
      %v2601 = vsel %vm547, %v2539, 0
      %v2604 = vsel %vm547, %v2540, 0
      %v2607 = vsel %vm547, %v2541, 0
      %v2610 = vsel %vm547, %v2542, 0
      %v2613 = vsel %vm547, %v2543, 0
      %v2616 = vsel %vm547, %v2544, 0
      %v2619 = vsel %vm547, %v2545, 0
      %v2622 = vsel %vm547, %v2546, 0
      %v2625 = vsel %vm547, %v2547, 0
      %v2628 = vsel %vm547, %v2548, 0
      %v2631 = vsel %vm547, %v2549, 0
      %v2634 = vsel %vm547, %v2550, 0
      %v2637 = vsel %vm547, %v2551, 0
      %v2640 = vsel %vm547, %v2552, 0
      %v2643 = vsel %vm547, %v2553, 0
      %v2646 = vsel %vm547, %v2554, 0
      %v2649 = vsel %vm547, %v2555, 0
      %v2652 = vsel %vm547, %v2556, 0
      %v2655 = vsel %vm547, %v2557, 0
      %v2658 = vsel %vm644, %v2560, 0
      %2660 = vmatpush.msra.mxu0 0.0
      %2661 = vmatpush.msra.mxu0 0.0
      %2662 = vmatpush.msra.mxu0 0.0
      %2663 = vmatpush.msra.mxu0 0.0
      %2664 = vmatpush.msra.mxu0 0.0
      %2665 = vmatpush.msra.mxu0 0.0
      %2666 = vmatpush.msra.mxu0 0.0
      %2667 = vmatpush.msra.mxu0 0.0
      %2668 = vmatpush.msra.mxu0 0.0
      %2669 = vmatpush.msra.mxu0 0.0
      %2670 = vmatpush.msra.mxu0 0.0
      %2671 = vmatpush.msra.mxu0 0.0
      %2672 = vmatpush.msra.mxu0 0.0
      %2673 = vmatpush.msra.mxu0 0.0
      %2674 = vmatpush.msra.mxu0 %v2658
      %2675 = vmatpush.msra.mxu0 %v2559
      %2676 = vmatmul.f32.gmra.mxu0 %v2562
      %v2677 = vpop.f32.mrf.mxu0
      %v2678 = vadd.f32 0.0, %v2677
      %2679 = vmatmul.f32.gmra.mxu0 %v2565
      %v2680 = vpop.f32.mrf.mxu0
      %v2681 = vadd.f32 0.0, %v2680
      %2682 = vmatmul.f32.gmra.mxu0 %v2568
      %v2683 = vpop.f32.mrf.mxu0
      %v2684 = vadd.f32 0.0, %v2683
      %2685 = vmatmul.f32.gmra.mxu0 %v2571
      %v2686 = vpop.f32.mrf.mxu0
      %v2687 = vadd.f32 0.0, %v2686
      %2688 = vmatmul.f32.gmra.mxu0 %v2574
      %v2689 = vpop.f32.mrf.mxu0
      %v2690 = vadd.f32 0.0, %v2689
      %2691 = vmatmul.f32.gmra.mxu0 %v2577
      %v2692 = vpop.f32.mrf.mxu0
      %v2693 = vadd.f32 0.0, %v2692
      %2694 = vmatmul.f32.gmra.mxu0 %v2580
      %v2695 = vpop.f32.mrf.mxu0
      %v2696 = vadd.f32 0.0, %v2695
      %2697 = vmatmul.f32.gmra.mxu0 %v2583
      %v2698 = vpop.f32.mrf.mxu0
      %v2699 = vadd.f32 0.0, %v2698
      %2700 = vmatmul.f32.gmra.mxu0 %v2586
      %v2701 = vpop.f32.mrf.mxu0
      %v2702 = vadd.f32 0.0, %v2701
      %2703 = vmatmul.f32.gmra.mxu0 %v2589
      %v2704 = vpop.f32.mrf.mxu0
      %v2705 = vadd.f32 0.0, %v2704
      %2706 = vmatmul.f32.gmra.mxu0 %v2592
      %v2707 = vpop.f32.mrf.mxu0
      %v2708 = vadd.f32 0.0, %v2707
      %2709 = vmatmul.f32.gmra.mxu0 %v2595
      %v2710 = vpop.f32.mrf.mxu0
      %v2711 = vadd.f32 0.0, %v2710
      %2712 = vmatmul.f32.gmra.mxu0 %v2598
      %v2713 = vpop.f32.mrf.mxu0
      %v2714 = vadd.f32 0.0, %v2713
      %2715 = vmatmul.f32.gmra.mxu0 %v2601
      %v2716 = vpop.f32.mrf.mxu0
      %v2717 = vadd.f32 0.0, %v2716
      %2718 = vmatmul.f32.gmra.mxu0 %v2604
      %v2719 = vpop.f32.mrf.mxu0
      %v2720 = vadd.f32 0.0, %v2719
      %2721 = vmatmul.f32.gmra.mxu0 %v2607
      %v2722 = vpop.f32.mrf.mxu0
      %v2723 = vadd.f32 0.0, %v2722
      %2724 = vmatmul.f32.gmra.mxu0 %v2610
      %v2725 = vpop.f32.mrf.mxu0
      %v2726 = vadd.f32 0.0, %v2725
      %2727 = vmatmul.f32.gmra.mxu0 %v2613
      %v2728 = vpop.f32.mrf.mxu0
      %v2729 = vadd.f32 0.0, %v2728
      %2730 = vmatmul.f32.gmra.mxu0 %v2616
      %v2731 = vpop.f32.mrf.mxu0
      %v2732 = vadd.f32 0.0, %v2731
      %2733 = vmatmul.f32.gmra.mxu0 %v2619
      %v2734 = vpop.f32.mrf.mxu0
      %v2735 = vadd.f32 0.0, %v2734
      %2736 = vmatmul.f32.gmra.mxu0 %v2622
      %v2737 = vpop.f32.mrf.mxu0
      %v2738 = vadd.f32 0.0, %v2737
      %2739 = vmatmul.f32.gmra.mxu0 %v2625
      %v2740 = vpop.f32.mrf.mxu0
      %v2741 = vadd.f32 0.0, %v2740
      %2742 = vmatmul.f32.gmra.mxu0 %v2628
      %v2743 = vpop.f32.mrf.mxu0
      %v2744 = vadd.f32 0.0, %v2743
      %2745 = vmatmul.f32.gmra.mxu0 %v2631
      %v2746 = vpop.f32.mrf.mxu0
      %v2747 = vadd.f32 0.0, %v2746
      %2748 = vmatmul.f32.gmra.mxu0 %v2634
      %v2749 = vpop.f32.mrf.mxu0
      %v2750 = vadd.f32 0.0, %v2749
      %2751 = vmatmul.f32.gmra.mxu0 %v2637
      %v2752 = vpop.f32.mrf.mxu0
      %v2753 = vadd.f32 0.0, %v2752
      %2754 = vmatmul.f32.gmra.mxu0 %v2640
      %v2755 = vpop.f32.mrf.mxu0
      %v2756 = vadd.f32 0.0, %v2755
      %2757 = vmatmul.f32.gmra.mxu0 %v2643
      %v2758 = vpop.f32.mrf.mxu0
      %v2759 = vadd.f32 0.0, %v2758
      %2760 = vmatmul.f32.gmra.mxu0 %v2646
      %v2761 = vpop.f32.mrf.mxu0
      %v2762 = vadd.f32 0.0, %v2761
      %2763 = vmatmul.f32.gmra.mxu0 %v2649
      %v2764 = vpop.f32.mrf.mxu0
      %v2765 = vadd.f32 0.0, %v2764
      %2766 = vmatmul.f32.gmra.mxu0 %v2652
      %v2767 = vpop.f32.mrf.mxu0
      %v2768 = vadd.f32 0.0, %v2767
      %2769 = vmatmul.f32.gmra.mxu0 %v2655
      %v2770 = vpop.f32.mrf.mxu0
      %v2771 = vadd.f32 0.0, %v2770
      %2772 = vdwg.mxu0
      %2805 = vrot.lane.b32.xlu0 %v2678, 10
      %v2806 = vpop.permute.xlu0 %2805
      %2807 = vrot.lane.b32.xlu0 %v2681, 10
      %v2808 = vpop.permute.xlu0 %2807
      %2809 = vrot.lane.b32.xlu0 %v2684, 10
      %v2810 = vpop.permute.xlu0 %2809
      %2811 = vrot.lane.b32.xlu0 %v2687, 10
      %v2812 = vpop.permute.xlu0 %2811
      %2813 = vrot.lane.b32.xlu0 %v2690, 10
      %v2814 = vpop.permute.xlu0 %2813
      %2815 = vrot.lane.b32.xlu0 %v2693, 10
      %v2816 = vpop.permute.xlu0 %2815
      %2817 = vrot.lane.b32.xlu0 %v2696, 10
      %v2818 = vpop.permute.xlu0 %2817
      %2819 = vrot.lane.b32.xlu0 %v2699, 10
      %v2820 = vpop.permute.xlu0 %2819
      %2821 = vrot.lane.b32.xlu0 %v2702, 10
      %v2822 = vpop.permute.xlu0 %2821
      %2823 = vrot.lane.b32.xlu0 %v2705, 10
      %v2824 = vpop.permute.xlu0 %2823
      %2825 = vrot.lane.b32.xlu0 %v2708, 10
      %v2826 = vpop.permute.xlu0 %2825
      %2827 = vrot.lane.b32.xlu0 %v2711, 10
      %v2828 = vpop.permute.xlu0 %2827
      %2829 = vrot.lane.b32.xlu0 %v2714, 10
      %v2830 = vpop.permute.xlu0 %2829
      %2831 = vrot.lane.b32.xlu0 %v2717, 10
      %v2832 = vpop.permute.xlu0 %2831
      %2833 = vrot.lane.b32.xlu0 %v2720, 10
      %v2834 = vpop.permute.xlu0 %2833
      %2835 = vrot.lane.b32.xlu0 %v2723, 10
      %v2836 = vpop.permute.xlu0 %2835
      %2837 = vrot.lane.b32.xlu0 %v2726, 10
      %v2838 = vpop.permute.xlu0 %2837
      %2839 = vrot.lane.b32.xlu0 %v2729, 10
      %v2840 = vpop.permute.xlu0 %2839
      %2841 = vrot.lane.b32.xlu0 %v2732, 10
      %v2842 = vpop.permute.xlu0 %2841
      %2843 = vrot.lane.b32.xlu0 %v2735, 10
      %v2844 = vpop.permute.xlu0 %2843
      %2845 = vrot.lane.b32.xlu0 %v2738, 10
      %v2846 = vpop.permute.xlu0 %2845
      %2847 = vrot.lane.b32.xlu0 %v2741, 10
      %v2848 = vpop.permute.xlu0 %2847
      %2849 = vrot.lane.b32.xlu0 %v2744, 10
      %v2850 = vpop.permute.xlu0 %2849
      %2851 = vrot.lane.b32.xlu0 %v2747, 10
      %v2852 = vpop.permute.xlu0 %2851
      %2853 = vrot.lane.b32.xlu0 %v2750, 10
      %v2854 = vpop.permute.xlu0 %2853
      %2855 = vrot.lane.b32.xlu0 %v2753, 10
      %v2856 = vpop.permute.xlu0 %2855
      %2857 = vrot.lane.b32.xlu0 %v2756, 10
      %v2858 = vpop.permute.xlu0 %2857
      %2859 = vrot.lane.b32.xlu0 %v2759, 10
      %v2860 = vpop.permute.xlu0 %2859
      %2861 = vrot.lane.b32.xlu0 %v2762, 10
      %v2862 = vpop.permute.xlu0 %2861
      %2863 = vrot.lane.b32.xlu0 %v2765, 10
      %v2864 = vpop.permute.xlu0 %2863
      %2865 = vrot.lane.b32.xlu0 %v2768, 10
      %v2866 = vpop.permute.xlu0 %2865
      %2867 = vrot.lane.b32.xlu0 %v2771, 10
      %v2868 = vpop.permute.xlu0 %2867
      %v2901 = vadd.f32 %v2398, %v2806
      %v2902 = vadd.f32 %v2399, %v2808
      %v2903 = vadd.f32 %v2400, %v2810
      %v2904 = vadd.f32 %v2401, %v2812
      %v2905 = vadd.f32 %v2402, %v2814
      %v2906 = vadd.f32 %v2403, %v2816
      %v2907 = vadd.f32 %v2404, %v2818
      %v2908 = vadd.f32 %v2405, %v2820
      %v2909 = vadd.f32 %v2406, %v2822
      %v2910 = vadd.f32 %v2407, %v2824
      %v2911 = vadd.f32 %v2408, %v2826
      %v2912 = vadd.f32 %v2409, %v2828
      %v2913 = vadd.f32 %v2410, %v2830
      %v2914 = vadd.f32 %v2411, %v2832
      %v2915 = vadd.f32 %v2412, %v2834
      %v2916 = vadd.f32 %v2413, %v2836
      %v2917 = vadd.f32 %v2414, %v2838
      %v2918 = vadd.f32 %v2415, %v2840
      %v2919 = vadd.f32 %v2416, %v2842
      %v2920 = vadd.f32 %v2417, %v2844
      %v2921 = vadd.f32 %v2418, %v2846
      %v2922 = vadd.f32 %v2419, %v2848
      %v2923 = vadd.f32 %v2420, %v2850
      %v2924 = vadd.f32 %v2421, %v2852
      %v2925 = vadd.f32 %v2422, %v2854
      %v2926 = vadd.f32 %v2423, %v2856
      %v2927 = vadd.f32 %v2424, %v2858
      %v2928 = vadd.f32 %v2425, %v2860
      %v2929 = vadd.f32 %v2426, %v2862
      %v2930 = vadd.f32 %v2427, %v2864
      %v2931 = vadd.f32 %v2428, %v2866
      %v2932 = vadd.f32 %v2429, %v2868
      %vm2933 = vcmp.ge.s32.totalorder %v512, 48
      %vm2934 = vcmp.ge.s32.totalorder %v513, 48
      %vm2935 = vcmp.ge.s32.totalorder %v514, 48
      %vm2936 = vcmp.ge.s32.totalorder %v515, 48
      %vm2937 = vcmp.ge.s32.totalorder %v516, 48
      %vm2938 = vcmp.ge.s32.totalorder %v517, 48
      %vm2939 = vcmp.ge.s32.totalorder %v518, 48
      %vm2940 = vcmp.ge.s32.totalorder %v519, 48
      %vm2941 = vcmp.ge.s32.totalorder %v520, 48
      %vm2942 = vcmp.ge.s32.totalorder %v521, 48
      %vm2943 = vcmp.ge.s32.totalorder %v522, 48
      %vm2944 = vcmp.ge.s32.totalorder %v523, 48
      %vm2945 = vcmp.ge.s32.totalorder %v524, 48
      %vm2946 = vcmp.ge.s32.totalorder %v525, 48
      %vm2947 = vcmp.ge.s32.totalorder %v526, 48
      %vm2948 = vcmp.ge.s32.totalorder %v527, 48
      %vm2949 = vcmp.ge.s32.totalorder %v528, 48
      %vm2950 = vcmp.ge.s32.totalorder %v529, 48
      %vm2951 = vcmp.ge.s32.totalorder %v530, 48
      %vm2952 = vcmp.ge.s32.totalorder %v531, 48
      %vm2953 = vcmp.ge.s32.totalorder %v532, 48
      %vm2954 = vcmp.ge.s32.totalorder %v533, 48
      %vm2955 = vcmp.ge.s32.totalorder %v534, 48
      %vm2956 = vcmp.ge.s32.totalorder %v535, 48
      %vm2957 = vcmp.ge.s32.totalorder %v536, 48
      %vm2958 = vcmp.ge.s32.totalorder %v537, 48
      %vm2959 = vcmp.ge.s32.totalorder %v538, 48
      %vm2960 = vcmp.ge.s32.totalorder %v539, 48
      %vm2961 = vcmp.ge.s32.totalorder %v540, 48
      %vm2962 = vcmp.ge.s32.totalorder %v541, 48
      %vm2963 = vcmp.ge.s32.totalorder %v542, 48
      %vm2964 = vcmp.ge.s32.totalorder %v543, 48
      %v2965 = vsel %vm2933, 1, 0
      %v2966 = vsel %vm2934, 1, 0
      %v2967 = vsel %vm2935, 1, 0
      %v2968 = vsel %vm2936, 1, 0
      %v2969 = vsel %vm2937, 1, 0
      %v2970 = vsel %vm2938, 1, 0
      %v2971 = vsel %vm2939, 1, 0
      %v2972 = vsel %vm2940, 1, 0
      %v2973 = vsel %vm2941, 1, 0
      %v2974 = vsel %vm2942, 1, 0
      %v2975 = vsel %vm2943, 1, 0
      %v2976 = vsel %vm2944, 1, 0
      %v2977 = vsel %vm2945, 1, 0
      %v2978 = vsel %vm2946, 1, 0
      %v2979 = vsel %vm2947, 1, 0
      %v2980 = vsel %vm2948, 1, 0
      %v2981 = vsel %vm2949, 1, 0
      %v2982 = vsel %vm2950, 1, 0
      %v2983 = vsel %vm2951, 1, 0
      %v2984 = vsel %vm2952, 1, 0
      %v2985 = vsel %vm2953, 1, 0
      %v2986 = vsel %vm2954, 1, 0
      %v2987 = vsel %vm2955, 1, 0
      %v2988 = vsel %vm2956, 1, 0
      %v2989 = vsel %vm2957, 1, 0
      %v2990 = vsel %vm2958, 1, 0
      %v2991 = vsel %vm2959, 1, 0
      %v2992 = vsel %vm2960, 1, 0
      %v2993 = vsel %vm2961, 1, 0
      %v2994 = vsel %vm2962, 1, 0
      %v2995 = vsel %vm2963, 1, 0
      %v2996 = vsel %vm2964, 1, 0
      %vm2997 = vcmp.eq.s32.totalorder %v2965, 1
      %vm2998 = vcmp.eq.s32.totalorder %v2966, 1
      %vm2999 = vcmp.eq.s32.totalorder %v2967, 1
      %vm3000 = vcmp.eq.s32.totalorder %v2968, 1
      %vm3001 = vcmp.eq.s32.totalorder %v2969, 1
      %vm3002 = vcmp.eq.s32.totalorder %v2970, 1
      %vm3003 = vcmp.eq.s32.totalorder %v2971, 1
      %vm3004 = vcmp.eq.s32.totalorder %v2972, 1
      %vm3005 = vcmp.eq.s32.totalorder %v2973, 1
      %vm3006 = vcmp.eq.s32.totalorder %v2974, 1
      %vm3007 = vcmp.eq.s32.totalorder %v2975, 1
      %vm3008 = vcmp.eq.s32.totalorder %v2976, 1
      %vm3009 = vcmp.eq.s32.totalorder %v2977, 1
      %vm3010 = vcmp.eq.s32.totalorder %v2978, 1
      %vm3011 = vcmp.eq.s32.totalorder %v2979, 1
      %vm3012 = vcmp.eq.s32.totalorder %v2980, 1
      %vm3013 = vcmp.eq.s32.totalorder %v2981, 1
      %vm3014 = vcmp.eq.s32.totalorder %v2982, 1
      %vm3015 = vcmp.eq.s32.totalorder %v2983, 1
      %vm3016 = vcmp.eq.s32.totalorder %v2984, 1
      %vm3017 = vcmp.eq.s32.totalorder %v2985, 1
      %vm3018 = vcmp.eq.s32.totalorder %v2986, 1
      %vm3019 = vcmp.eq.s32.totalorder %v2987, 1
      %vm3020 = vcmp.eq.s32.totalorder %v2988, 1
      %vm3021 = vcmp.eq.s32.totalorder %v2989, 1
      %vm3022 = vcmp.eq.s32.totalorder %v2990, 1
      %vm3023 = vcmp.eq.s32.totalorder %v2991, 1
      %vm3024 = vcmp.eq.s32.totalorder %v2992, 1
      %vm3025 = vcmp.eq.s32.totalorder %v2993, 1
      %vm3026 = vcmp.eq.s32.totalorder %v2994, 1
      %vm3027 = vcmp.eq.s32.totalorder %v2995, 1
      %vm3028 = vcmp.eq.s32.totalorder %v2996, 1
      %v3029 = vsel %vm2997, %v505, 0.0
      %v3030 = vsel %vm2998, %v506, 0.0
      %v3031 = vsel %vm2999, %v507, 0.0
      %v3032 = vsel %vm3000, %v508, 0.0
      %v3033 = vsel %vm3001, %v509, 0.0
      %v3034 = vsel %vm3002, %v510, 0.0
      %v3035 = vsel %vm3003, %v479, 0.0
      %v3036 = vsel %vm3004, %v480, 0.0
      %v3037 = vsel %vm3005, %v481, 0.0
      %v3038 = vsel %vm3006, %v482, 0.0
      %v3039 = vsel %vm3007, %v483, 0.0
      %v3040 = vsel %vm3008, %v484, 0.0
      %v3041 = vsel %vm3009, %v485, 0.0
      %v3042 = vsel %vm3010, %v486, 0.0
      %v3043 = vsel %vm3011, %v487, 0.0
      %v3044 = vsel %vm3012, %v488, 0.0
      %v3045 = vsel %vm3013, %v489, 0.0
      %v3046 = vsel %vm3014, %v490, 0.0
      %v3047 = vsel %vm3015, %v491, 0.0
      %v3048 = vsel %vm3016, %v492, 0.0
      %v3049 = vsel %vm3017, %v493, 0.0
      %v3050 = vsel %vm3018, %v494, 0.0
      %v3051 = vsel %vm3019, %v495, 0.0
      %v3052 = vsel %vm3020, %v496, 0.0
      %v3053 = vsel %vm3021, %v497, 0.0
      %v3054 = vsel %vm3022, %v498, 0.0
      %v3055 = vsel %vm3023, %v499, 0.0
      %v3056 = vsel %vm3024, %v500, 0.0
      %v3057 = vsel %vm3025, %v501, 0.0
      %v3058 = vsel %vm3026, %v502, 0.0
      %v3059 = vsel %vm3027, %v503, 0.0
      %v3060 = vsel %vm3028, %v504, 0.0
      %s3061 = scalar_lea.vmem %s3, 16
      %v3062 = vld [vmem:[%s3061] sm:$0xff]
      %v3063 = vld [vmem:[%s3061 + $0x8] sm:$0x3]
      %v3065 = vsel %vm547, %v3029, 0
      %v3068 = vsel %vm547, %v3030, 0
      %v3071 = vsel %vm547, %v3031, 0
      %v3074 = vsel %vm547, %v3032, 0
      %v3077 = vsel %vm547, %v3033, 0
      %v3080 = vsel %vm547, %v3034, 0
      %v3083 = vsel %vm547, %v3035, 0
      %v3086 = vsel %vm547, %v3036, 0
      %v3089 = vsel %vm547, %v3037, 0
      %v3092 = vsel %vm547, %v3038, 0
      %v3095 = vsel %vm547, %v3039, 0
      %v3098 = vsel %vm547, %v3040, 0
      %v3101 = vsel %vm547, %v3041, 0
      %v3104 = vsel %vm547, %v3042, 0
      %v3107 = vsel %vm547, %v3043, 0
      %v3110 = vsel %vm547, %v3044, 0
      %v3113 = vsel %vm547, %v3045, 0
      %v3116 = vsel %vm547, %v3046, 0
      %v3119 = vsel %vm547, %v3047, 0
      %v3122 = vsel %vm547, %v3048, 0
      %v3125 = vsel %vm547, %v3049, 0
      %v3128 = vsel %vm547, %v3050, 0
      %v3131 = vsel %vm547, %v3051, 0
      %v3134 = vsel %vm547, %v3052, 0
      %v3137 = vsel %vm547, %v3053, 0
      %v3140 = vsel %vm547, %v3054, 0
      %v3143 = vsel %vm547, %v3055, 0
      %v3146 = vsel %vm547, %v3056, 0
      %v3149 = vsel %vm547, %v3057, 0
      %v3152 = vsel %vm547, %v3058, 0
      %v3155 = vsel %vm547, %v3059, 0
      %v3158 = vsel %vm547, %v3060, 0
      %v3161 = vsel %vm644, %v3063, 0
      %3163 = vmatpush.msra.mxu0 0.0
      %3164 = vmatpush.msra.mxu0 0.0
      %3165 = vmatpush.msra.mxu0 0.0
      %3166 = vmatpush.msra.mxu0 0.0
      %3167 = vmatpush.msra.mxu0 0.0
      %3168 = vmatpush.msra.mxu0 0.0
      %3169 = vmatpush.msra.mxu0 0.0
      %3170 = vmatpush.msra.mxu0 0.0
      %3171 = vmatpush.msra.mxu0 0.0
      %3172 = vmatpush.msra.mxu0 0.0
      %3173 = vmatpush.msra.mxu0 0.0
      %3174 = vmatpush.msra.mxu0 0.0
      %3175 = vmatpush.msra.mxu0 0.0
      %3176 = vmatpush.msra.mxu0 0.0
      %3177 = vmatpush.msra.mxu0 %v3161
      %3178 = vmatpush.msra.mxu0 %v3062
      %3179 = vmatmul.f32.gmra.mxu0 %v3065
      %v3180 = vpop.f32.mrf.mxu0
      %v3181 = vadd.f32 0.0, %v3180
      %3182 = vmatmul.f32.gmra.mxu0 %v3068
      %v3183 = vpop.f32.mrf.mxu0
      %v3184 = vadd.f32 0.0, %v3183
      %3185 = vmatmul.f32.gmra.mxu0 %v3071
      %v3186 = vpop.f32.mrf.mxu0
      %v3187 = vadd.f32 0.0, %v3186
      %3188 = vmatmul.f32.gmra.mxu0 %v3074
      %v3189 = vpop.f32.mrf.mxu0
      %v3190 = vadd.f32 0.0, %v3189
      %3191 = vmatmul.f32.gmra.mxu0 %v3077
      %v3192 = vpop.f32.mrf.mxu0
      %v3193 = vadd.f32 0.0, %v3192
      %3194 = vmatmul.f32.gmra.mxu0 %v3080
      %v3195 = vpop.f32.mrf.mxu0
      %v3196 = vadd.f32 0.0, %v3195
      %3197 = vmatmul.f32.gmra.mxu0 %v3083
      %v3198 = vpop.f32.mrf.mxu0
      %v3199 = vadd.f32 0.0, %v3198
      %3200 = vmatmul.f32.gmra.mxu0 %v3086
      %v3201 = vpop.f32.mrf.mxu0
      %v3202 = vadd.f32 0.0, %v3201
      %3203 = vmatmul.f32.gmra.mxu0 %v3089
      %v3204 = vpop.f32.mrf.mxu0
      %v3205 = vadd.f32 0.0, %v3204
      %3206 = vmatmul.f32.gmra.mxu0 %v3092
      %v3207 = vpop.f32.mrf.mxu0
      %v3208 = vadd.f32 0.0, %v3207
      %3209 = vmatmul.f32.gmra.mxu0 %v3095
      %v3210 = vpop.f32.mrf.mxu0
      %v3211 = vadd.f32 0.0, %v3210
      %3212 = vmatmul.f32.gmra.mxu0 %v3098
      %v3213 = vpop.f32.mrf.mxu0
      %v3214 = vadd.f32 0.0, %v3213
      %3215 = vmatmul.f32.gmra.mxu0 %v3101
      %v3216 = vpop.f32.mrf.mxu0
      %v3217 = vadd.f32 0.0, %v3216
      %3218 = vmatmul.f32.gmra.mxu0 %v3104
      %v3219 = vpop.f32.mrf.mxu0
      %v3220 = vadd.f32 0.0, %v3219
      %3221 = vmatmul.f32.gmra.mxu0 %v3107
      %v3222 = vpop.f32.mrf.mxu0
      %v3223 = vadd.f32 0.0, %v3222
      %3224 = vmatmul.f32.gmra.mxu0 %v3110
      %v3225 = vpop.f32.mrf.mxu0
      %v3226 = vadd.f32 0.0, %v3225
      %3227 = vmatmul.f32.gmra.mxu0 %v3113
      %v3228 = vpop.f32.mrf.mxu0
      %v3229 = vadd.f32 0.0, %v3228
      %3230 = vmatmul.f32.gmra.mxu0 %v3116
      %v3231 = vpop.f32.mrf.mxu0
      %v3232 = vadd.f32 0.0, %v3231
      %3233 = vmatmul.f32.gmra.mxu0 %v3119
      %v3234 = vpop.f32.mrf.mxu0
      %v3235 = vadd.f32 0.0, %v3234
      %3236 = vmatmul.f32.gmra.mxu0 %v3122
      %v3237 = vpop.f32.mrf.mxu0
      %v3238 = vadd.f32 0.0, %v3237
      %3239 = vmatmul.f32.gmra.mxu0 %v3125
      %v3240 = vpop.f32.mrf.mxu0
      %v3241 = vadd.f32 0.0, %v3240
      %3242 = vmatmul.f32.gmra.mxu0 %v3128
      %v3243 = vpop.f32.mrf.mxu0
      %v3244 = vadd.f32 0.0, %v3243
      %3245 = vmatmul.f32.gmra.mxu0 %v3131
      %v3246 = vpop.f32.mrf.mxu0
      %v3247 = vadd.f32 0.0, %v3246
      %3248 = vmatmul.f32.gmra.mxu0 %v3134
      %v3249 = vpop.f32.mrf.mxu0
      %v3250 = vadd.f32 0.0, %v3249
      %3251 = vmatmul.f32.gmra.mxu0 %v3137
      %v3252 = vpop.f32.mrf.mxu0
      %v3253 = vadd.f32 0.0, %v3252
      %3254 = vmatmul.f32.gmra.mxu0 %v3140
      %v3255 = vpop.f32.mrf.mxu0
      %v3256 = vadd.f32 0.0, %v3255
      %3257 = vmatmul.f32.gmra.mxu0 %v3143
      %v3258 = vpop.f32.mrf.mxu0
      %v3259 = vadd.f32 0.0, %v3258
      %3260 = vmatmul.f32.gmra.mxu0 %v3146
      %v3261 = vpop.f32.mrf.mxu0
      %v3262 = vadd.f32 0.0, %v3261
      %3263 = vmatmul.f32.gmra.mxu0 %v3149
      %v3264 = vpop.f32.mrf.mxu0
      %v3265 = vadd.f32 0.0, %v3264
      %3266 = vmatmul.f32.gmra.mxu0 %v3152
      %v3267 = vpop.f32.mrf.mxu0
      %v3268 = vadd.f32 0.0, %v3267
      %3269 = vmatmul.f32.gmra.mxu0 %v3155
      %v3270 = vpop.f32.mrf.mxu0
      %v3271 = vadd.f32 0.0, %v3270
      %3272 = vmatmul.f32.gmra.mxu0 %v3158
      %v3273 = vpop.f32.mrf.mxu0
      %v3274 = vadd.f32 0.0, %v3273
      %3275 = vdwg.mxu0
      %3308 = vrot.lane.b32.xlu0 %v3181, 10
      %v3309 = vpop.permute.xlu0 %3308
      %3310 = vrot.lane.b32.xlu0 %v3184, 10
      %v3311 = vpop.permute.xlu0 %3310
      %3312 = vrot.lane.b32.xlu0 %v3187, 10
      %v3313 = vpop.permute.xlu0 %3312
      %3314 = vrot.lane.b32.xlu0 %v3190, 10
      %v3315 = vpop.permute.xlu0 %3314
      %3316 = vrot.lane.b32.xlu0 %v3193, 10
      %v3317 = vpop.permute.xlu0 %3316
      %3318 = vrot.lane.b32.xlu0 %v3196, 10
      %v3319 = vpop.permute.xlu0 %3318
      %3320 = vrot.lane.b32.xlu0 %v3199, 10
      %v3321 = vpop.permute.xlu0 %3320
      %3322 = vrot.lane.b32.xlu0 %v3202, 10
      %v3323 = vpop.permute.xlu0 %3322
      %3324 = vrot.lane.b32.xlu0 %v3205, 10
      %v3325 = vpop.permute.xlu0 %3324
      %3326 = vrot.lane.b32.xlu0 %v3208, 10
      %v3327 = vpop.permute.xlu0 %3326
      %3328 = vrot.lane.b32.xlu0 %v3211, 10
      %v3329 = vpop.permute.xlu0 %3328
      %3330 = vrot.lane.b32.xlu0 %v3214, 10
      %v3331 = vpop.permute.xlu0 %3330
      %3332 = vrot.lane.b32.xlu0 %v3217, 10
      %v3333 = vpop.permute.xlu0 %3332
      %3334 = vrot.lane.b32.xlu0 %v3220, 10
      %v3335 = vpop.permute.xlu0 %3334
      %3336 = vrot.lane.b32.xlu0 %v3223, 10
      %v3337 = vpop.permute.xlu0 %3336
      %3338 = vrot.lane.b32.xlu0 %v3226, 10
      %v3339 = vpop.permute.xlu0 %3338
      %3340 = vrot.lane.b32.xlu0 %v3229, 10
      %v3341 = vpop.permute.xlu0 %3340
      %3342 = vrot.lane.b32.xlu0 %v3232, 10
      %v3343 = vpop.permute.xlu0 %3342
      %3344 = vrot.lane.b32.xlu0 %v3235, 10
      %v3345 = vpop.permute.xlu0 %3344
      %3346 = vrot.lane.b32.xlu0 %v3238, 10
      %v3347 = vpop.permute.xlu0 %3346
      %3348 = vrot.lane.b32.xlu0 %v3241, 10
      %v3349 = vpop.permute.xlu0 %3348
      %3350 = vrot.lane.b32.xlu0 %v3244, 10
      %v3351 = vpop.permute.xlu0 %3350
      %3352 = vrot.lane.b32.xlu0 %v3247, 10
      %v3353 = vpop.permute.xlu0 %3352
      %3354 = vrot.lane.b32.xlu0 %v3250, 10
      %v3355 = vpop.permute.xlu0 %3354
      %3356 = vrot.lane.b32.xlu0 %v3253, 10
      %v3357 = vpop.permute.xlu0 %3356
      %3358 = vrot.lane.b32.xlu0 %v3256, 10
      %v3359 = vpop.permute.xlu0 %3358
      %3360 = vrot.lane.b32.xlu0 %v3259, 10
      %v3361 = vpop.permute.xlu0 %3360
      %3362 = vrot.lane.b32.xlu0 %v3262, 10
      %v3363 = vpop.permute.xlu0 %3362
      %3364 = vrot.lane.b32.xlu0 %v3265, 10
      %v3365 = vpop.permute.xlu0 %3364
      %3366 = vrot.lane.b32.xlu0 %v3268, 10
      %v3367 = vpop.permute.xlu0 %3366
      %3368 = vrot.lane.b32.xlu0 %v3271, 10
      %v3369 = vpop.permute.xlu0 %3368
      %3370 = vrot.lane.b32.xlu0 %v3274, 10
      %v3371 = vpop.permute.xlu0 %3370
      %v3404 = vadd.f32 %v2901, %v3309
      %v3405 = vadd.f32 %v2902, %v3311
      %v3406 = vadd.f32 %v2903, %v3313
      %v3407 = vadd.f32 %v2904, %v3315
      %v3408 = vadd.f32 %v2905, %v3317
      %v3409 = vadd.f32 %v2906, %v3319
      %v3410 = vadd.f32 %v2907, %v3321
      %v3411 = vadd.f32 %v2908, %v3323
      %v3412 = vadd.f32 %v2909, %v3325
      %v3413 = vadd.f32 %v2910, %v3327
      %v3414 = vadd.f32 %v2911, %v3329
      %v3415 = vadd.f32 %v2912, %v3331
      %v3416 = vadd.f32 %v2913, %v3333
      %v3417 = vadd.f32 %v2914, %v3335
      %v3418 = vadd.f32 %v2915, %v3337
      %v3419 = vadd.f32 %v2916, %v3339
      %v3420 = vadd.f32 %v2917, %v3341
      %v3421 = vadd.f32 %v2918, %v3343
      %v3422 = vadd.f32 %v2919, %v3345
      %v3423 = vadd.f32 %v2920, %v3347
      %v3424 = vadd.f32 %v2921, %v3349
      %v3425 = vadd.f32 %v2922, %v3351
      %v3426 = vadd.f32 %v2923, %v3353
      %v3427 = vadd.f32 %v2924, %v3355
      %v3428 = vadd.f32 %v2925, %v3357
      %v3429 = vadd.f32 %v2926, %v3359
      %v3430 = vadd.f32 %v2927, %v3361
      %v3431 = vadd.f32 %v2928, %v3363
      %v3432 = vadd.f32 %v2929, %v3365
      %v3433 = vadd.f32 %v2930, %v3367
      %v3434 = vadd.f32 %v2931, %v3369
      %v3435 = vadd.f32 %v2932, %v3371
      %vm3436 = vcmp.lt.s32.totalorder %v512, 208
      %vm3437 = vcmp.lt.s32.totalorder %v513, 208
      %vm3438 = vcmp.lt.s32.totalorder %v514, 208
      %vm3439 = vcmp.lt.s32.totalorder %v515, 208
      %vm3440 = vcmp.lt.s32.totalorder %v516, 208
      %vm3441 = vcmp.lt.s32.totalorder %v517, 208
      %vm3442 = vcmp.lt.s32.totalorder %v518, 208
      %vm3443 = vcmp.lt.s32.totalorder %v519, 208
      %vm3444 = vcmp.lt.s32.totalorder %v520, 208
      %vm3445 = vcmp.lt.s32.totalorder %v521, 208
      %vm3446 = vcmp.lt.s32.totalorder %v522, 208
      %vm3447 = vcmp.lt.s32.totalorder %v523, 208
      %vm3448 = vcmp.lt.s32.totalorder %v524, 208
      %vm3449 = vcmp.lt.s32.totalorder %v525, 208
      %vm3450 = vcmp.lt.s32.totalorder %v526, 208
      %vm3451 = vcmp.lt.s32.totalorder %v527, 208
      %vm3452 = vcmp.lt.s32.totalorder %v528, 208
      %vm3453 = vcmp.lt.s32.totalorder %v529, 208
      %vm3454 = vcmp.lt.s32.totalorder %v530, 208
      %vm3455 = vcmp.lt.s32.totalorder %v531, 208
      %vm3456 = vcmp.lt.s32.totalorder %v532, 208
      %vm3457 = vcmp.lt.s32.totalorder %v533, 208
      %vm3458 = vcmp.lt.s32.totalorder %v534, 208
      %vm3459 = vcmp.lt.s32.totalorder %v535, 208
      %vm3460 = vcmp.lt.s32.totalorder %v536, 208
      %vm3461 = vcmp.lt.s32.totalorder %v537, 208
      %vm3462 = vcmp.lt.s32.totalorder %v538, 208
      %vm3463 = vcmp.lt.s32.totalorder %v539, 208
      %vm3464 = vcmp.lt.s32.totalorder %v540, 208
      %vm3465 = vcmp.lt.s32.totalorder %v541, 208
      %vm3466 = vcmp.lt.s32.totalorder %v542, 208
      %vm3467 = vcmp.lt.s32.totalorder %v543, 208
      %v3468 = vsel %vm3436, 1, 0
      %v3469 = vsel %vm3437, 1, 0
      %v3470 = vsel %vm3438, 1, 0
      %v3471 = vsel %vm3439, 1, 0
      %v3472 = vsel %vm3440, 1, 0
      %v3473 = vsel %vm3441, 1, 0
      %v3474 = vsel %vm3442, 1, 0
      %v3475 = vsel %vm3443, 1, 0
      %v3476 = vsel %vm3444, 1, 0
      %v3477 = vsel %vm3445, 1, 0
      %v3478 = vsel %vm3446, 1, 0
      %v3479 = vsel %vm3447, 1, 0
      %v3480 = vsel %vm3448, 1, 0
      %v3481 = vsel %vm3449, 1, 0
      %v3482 = vsel %vm3450, 1, 0
      %v3483 = vsel %vm3451, 1, 0
      %v3484 = vsel %vm3452, 1, 0
      %v3485 = vsel %vm3453, 1, 0
      %v3486 = vsel %vm3454, 1, 0
      %v3487 = vsel %vm3455, 1, 0
      %v3488 = vsel %vm3456, 1, 0
      %v3489 = vsel %vm3457, 1, 0
      %v3490 = vsel %vm3458, 1, 0
      %v3491 = vsel %vm3459, 1, 0
      %v3492 = vsel %vm3460, 1, 0
      %v3493 = vsel %vm3461, 1, 0
      %v3494 = vsel %vm3462, 1, 0
      %v3495 = vsel %vm3463, 1, 0
      %v3496 = vsel %vm3464, 1, 0
      %v3497 = vsel %vm3465, 1, 0
      %v3498 = vsel %vm3466, 1, 0
      %v3499 = vsel %vm3467, 1, 0
      %vm3500 = vcmp.eq.s32.totalorder %v3468, 1
      %vm3501 = vcmp.eq.s32.totalorder %v3469, 1
      %vm3502 = vcmp.eq.s32.totalorder %v3470, 1
      %vm3503 = vcmp.eq.s32.totalorder %v3471, 1
      %vm3504 = vcmp.eq.s32.totalorder %v3472, 1
      %vm3505 = vcmp.eq.s32.totalorder %v3473, 1
      %vm3506 = vcmp.eq.s32.totalorder %v3474, 1
      %vm3507 = vcmp.eq.s32.totalorder %v3475, 1
      %vm3508 = vcmp.eq.s32.totalorder %v3476, 1
      %vm3509 = vcmp.eq.s32.totalorder %v3477, 1
      %vm3510 = vcmp.eq.s32.totalorder %v3478, 1
      %vm3511 = vcmp.eq.s32.totalorder %v3479, 1
      %vm3512 = vcmp.eq.s32.totalorder %v3480, 1
      %vm3513 = vcmp.eq.s32.totalorder %v3481, 1
      %vm3514 = vcmp.eq.s32.totalorder %v3482, 1
      %vm3515 = vcmp.eq.s32.totalorder %v3483, 1
      %vm3516 = vcmp.eq.s32.totalorder %v3484, 1
      %vm3517 = vcmp.eq.s32.totalorder %v3485, 1
      %vm3518 = vcmp.eq.s32.totalorder %v3486, 1
      %vm3519 = vcmp.eq.s32.totalorder %v3487, 1
      %vm3520 = vcmp.eq.s32.totalorder %v3488, 1
      %vm3521 = vcmp.eq.s32.totalorder %v3489, 1
      %vm3522 = vcmp.eq.s32.totalorder %v3490, 1
      %vm3523 = vcmp.eq.s32.totalorder %v3491, 1
      %vm3524 = vcmp.eq.s32.totalorder %v3492, 1
      %vm3525 = vcmp.eq.s32.totalorder %v3493, 1
      %vm3526 = vcmp.eq.s32.totalorder %v3494, 1
      %vm3527 = vcmp.eq.s32.totalorder %v3495, 1
      %vm3528 = vcmp.eq.s32.totalorder %v3496, 1
      %vm3529 = vcmp.eq.s32.totalorder %v3497, 1
      %vm3530 = vcmp.eq.s32.totalorder %v3498, 1
      %vm3531 = vcmp.eq.s32.totalorder %v3499, 1
      %v3532 = vsel %vm3500, %v485, 0.0
      %v3533 = vsel %vm3501, %v486, 0.0
      %v3534 = vsel %vm3502, %v487, 0.0
      %v3535 = vsel %vm3503, %v488, 0.0
      %v3536 = vsel %vm3504, %v489, 0.0
      %v3537 = vsel %vm3505, %v490, 0.0
      %v3538 = vsel %vm3506, %v491, 0.0
      %v3539 = vsel %vm3507, %v492, 0.0
      %v3540 = vsel %vm3508, %v493, 0.0
      %v3541 = vsel %vm3509, %v494, 0.0
      %v3542 = vsel %vm3510, %v495, 0.0
      %v3543 = vsel %vm3511, %v496, 0.0
      %v3544 = vsel %vm3512, %v497, 0.0
      %v3545 = vsel %vm3513, %v498, 0.0
      %v3546 = vsel %vm3514, %v499, 0.0
      %v3547 = vsel %vm3515, %v500, 0.0
      %v3548 = vsel %vm3516, %v501, 0.0
      %v3549 = vsel %vm3517, %v502, 0.0
      %v3550 = vsel %vm3518, %v503, 0.0
      %v3551 = vsel %vm3519, %v504, 0.0
      %v3552 = vsel %vm3520, %v505, 0.0
      %v3553 = vsel %vm3521, %v506, 0.0
      %v3554 = vsel %vm3522, %v507, 0.0
      %v3555 = vsel %vm3523, %v508, 0.0
      %v3556 = vsel %vm3524, %v509, 0.0
      %v3557 = vsel %vm3525, %v510, 0.0
      %v3558 = vsel %vm3526, %v479, 0.0
      %v3559 = vsel %vm3527, %v480, 0.0
      %v3560 = vsel %vm3528, %v481, 0.0
      %v3561 = vsel %vm3529, %v482, 0.0
      %v3562 = vsel %vm3530, %v483, 0.0
      %v3563 = vsel %vm3531, %v484, 0.0
      %s3564 = scalar_lea.vmem %s3, 112
      %v3565 = vld [vmem:[%s3564] sm:$0xff]
      %v3566 = vld [vmem:[%s3564 + $0x8] sm:$0x3]
      %v3568 = vsel %vm547, %v3532, 0
      %v3571 = vsel %vm547, %v3533, 0
      %v3574 = vsel %vm547, %v3534, 0
      %v3577 = vsel %vm547, %v3535, 0
      %v3580 = vsel %vm547, %v3536, 0
      %v3583 = vsel %vm547, %v3537, 0
      %v3586 = vsel %vm547, %v3538, 0
      %v3589 = vsel %vm547, %v3539, 0
      %v3592 = vsel %vm547, %v3540, 0
      %v3595 = vsel %vm547, %v3541, 0
      %v3598 = vsel %vm547, %v3542, 0
      %v3601 = vsel %vm547, %v3543, 0
      %v3604 = vsel %vm547, %v3544, 0
      %v3607 = vsel %vm547, %v3545, 0
      %v3610 = vsel %vm547, %v3546, 0
      %v3613 = vsel %vm547, %v3547, 0
      %v3616 = vsel %vm547, %v3548, 0
      %v3619 = vsel %vm547, %v3549, 0
      %v3622 = vsel %vm547, %v3550, 0
      %v3625 = vsel %vm547, %v3551, 0
      %v3628 = vsel %vm547, %v3552, 0
      %v3631 = vsel %vm547, %v3553, 0
      %v3634 = vsel %vm547, %v3554, 0
      %v3637 = vsel %vm547, %v3555, 0
      %v3640 = vsel %vm547, %v3556, 0
      %v3643 = vsel %vm547, %v3557, 0
      %v3646 = vsel %vm547, %v3558, 0
      %v3649 = vsel %vm547, %v3559, 0
      %v3652 = vsel %vm547, %v3560, 0
      %v3655 = vsel %vm547, %v3561, 0
      %v3658 = vsel %vm547, %v3562, 0
      %v3661 = vsel %vm547, %v3563, 0
      %v3664 = vsel %vm644, %v3566, 0
      %3666 = vmatpush.msra.mxu0 0.0
      %3667 = vmatpush.msra.mxu0 0.0
      %3668 = vmatpush.msra.mxu0 0.0
      %3669 = vmatpush.msra.mxu0 0.0
      %3670 = vmatpush.msra.mxu0 0.0
      %3671 = vmatpush.msra.mxu0 0.0
      %3672 = vmatpush.msra.mxu0 0.0
      %3673 = vmatpush.msra.mxu0 0.0
      %3674 = vmatpush.msra.mxu0 0.0
      %3675 = vmatpush.msra.mxu0 0.0
      %3676 = vmatpush.msra.mxu0 0.0
      %3677 = vmatpush.msra.mxu0 0.0
      %3678 = vmatpush.msra.mxu0 0.0
      %3679 = vmatpush.msra.mxu0 0.0
      %3680 = vmatpush.msra.mxu0 %v3664
      %3681 = vmatpush.msra.mxu0 %v3565
      %3682 = vmatmul.f32.gmra.mxu0 %v3568
      %v3683 = vpop.f32.mrf.mxu0
      %v3684 = vadd.f32 0.0, %v3683
      %3685 = vmatmul.f32.gmra.mxu0 %v3571
      %v3686 = vpop.f32.mrf.mxu0
      %v3687 = vadd.f32 0.0, %v3686
      %3688 = vmatmul.f32.gmra.mxu0 %v3574
      %v3689 = vpop.f32.mrf.mxu0
      %v3690 = vadd.f32 0.0, %v3689
      %3691 = vmatmul.f32.gmra.mxu0 %v3577
      %v3692 = vpop.f32.mrf.mxu0
      %v3693 = vadd.f32 0.0, %v3692
      %3694 = vmatmul.f32.gmra.mxu0 %v3580
      %v3695 = vpop.f32.mrf.mxu0
      %v3696 = vadd.f32 0.0, %v3695
      %3697 = vmatmul.f32.gmra.mxu0 %v3583
      %v3698 = vpop.f32.mrf.mxu0
      %v3699 = vadd.f32 0.0, %v3698
      %3700 = vmatmul.f32.gmra.mxu0 %v3586
      %v3701 = vpop.f32.mrf.mxu0
      %v3702 = vadd.f32 0.0, %v3701
      %3703 = vmatmul.f32.gmra.mxu0 %v3589
      %v3704 = vpop.f32.mrf.mxu0
      %v3705 = vadd.f32 0.0, %v3704
      %3706 = vmatmul.f32.gmra.mxu0 %v3592
      %v3707 = vpop.f32.mrf.mxu0
      %v3708 = vadd.f32 0.0, %v3707
      %3709 = vmatmul.f32.gmra.mxu0 %v3595
      %v3710 = vpop.f32.mrf.mxu0
      %v3711 = vadd.f32 0.0, %v3710
      %3712 = vmatmul.f32.gmra.mxu0 %v3598
      %v3713 = vpop.f32.mrf.mxu0
      %v3714 = vadd.f32 0.0, %v3713
      %3715 = vmatmul.f32.gmra.mxu0 %v3601
      %v3716 = vpop.f32.mrf.mxu0
      %v3717 = vadd.f32 0.0, %v3716
      %3718 = vmatmul.f32.gmra.mxu0 %v3604
      %v3719 = vpop.f32.mrf.mxu0
      %v3720 = vadd.f32 0.0, %v3719
      %3721 = vmatmul.f32.gmra.mxu0 %v3607
      %v3722 = vpop.f32.mrf.mxu0
      %v3723 = vadd.f32 0.0, %v3722
      %3724 = vmatmul.f32.gmra.mxu0 %v3610
      %v3725 = vpop.f32.mrf.mxu0
      %v3726 = vadd.f32 0.0, %v3725
      %3727 = vmatmul.f32.gmra.mxu0 %v3613
      %v3728 = vpop.f32.mrf.mxu0
      %v3729 = vadd.f32 0.0, %v3728
      %3730 = vmatmul.f32.gmra.mxu0 %v3616
      %v3731 = vpop.f32.mrf.mxu0
      %v3732 = vadd.f32 0.0, %v3731
      %3733 = vmatmul.f32.gmra.mxu0 %v3619
      %v3734 = vpop.f32.mrf.mxu0
      %v3735 = vadd.f32 0.0, %v3734
      %3736 = vmatmul.f32.gmra.mxu0 %v3622
      %v3737 = vpop.f32.mrf.mxu0
      %v3738 = vadd.f32 0.0, %v3737
      %3739 = vmatmul.f32.gmra.mxu0 %v3625
      %v3740 = vpop.f32.mrf.mxu0
      %v3741 = vadd.f32 0.0, %v3740
      %3742 = vmatmul.f32.gmra.mxu0 %v3628
      %v3743 = vpop.f32.mrf.mxu0
      %v3744 = vadd.f32 0.0, %v3743
      %3745 = vmatmul.f32.gmra.mxu0 %v3631
      %v3746 = vpop.f32.mrf.mxu0
      %v3747 = vadd.f32 0.0, %v3746
      %3748 = vmatmul.f32.gmra.mxu0 %v3634
      %v3749 = vpop.f32.mrf.mxu0
      %v3750 = vadd.f32 0.0, %v3749
      %3751 = vmatmul.f32.gmra.mxu0 %v3637
      %v3752 = vpop.f32.mrf.mxu0
      %v3753 = vadd.f32 0.0, %v3752
      %3754 = vmatmul.f32.gmra.mxu0 %v3640
      %v3755 = vpop.f32.mrf.mxu0
      %v3756 = vadd.f32 0.0, %v3755
      %3757 = vmatmul.f32.gmra.mxu0 %v3643
      %v3758 = vpop.f32.mrf.mxu0
      %v3759 = vadd.f32 0.0, %v3758
      %3760 = vmatmul.f32.gmra.mxu0 %v3646
      %v3761 = vpop.f32.mrf.mxu0
      %v3762 = vadd.f32 0.0, %v3761
      %3763 = vmatmul.f32.gmra.mxu0 %v3649
      %v3764 = vpop.f32.mrf.mxu0
      %v3765 = vadd.f32 0.0, %v3764
      %3766 = vmatmul.f32.gmra.mxu0 %v3652
      %v3767 = vpop.f32.mrf.mxu0
      %v3768 = vadd.f32 0.0, %v3767
      %3769 = vmatmul.f32.gmra.mxu0 %v3655
      %v3770 = vpop.f32.mrf.mxu0
      %v3771 = vadd.f32 0.0, %v3770
      %3772 = vmatmul.f32.gmra.mxu0 %v3658
      %v3773 = vpop.f32.mrf.mxu0
      %v3774 = vadd.f32 0.0, %v3773
      %3775 = vmatmul.f32.gmra.mxu0 %v3661
      %v3776 = vpop.f32.mrf.mxu0
      %v3777 = vadd.f32 0.0, %v3776
      %3778 = vdwg.mxu0
      %3811 = vrot.lane.b32.xlu0 %v3684, 10
      %v3812 = vpop.permute.xlu0 %3811
      %3813 = vrot.lane.b32.xlu0 %v3687, 10
      %v3814 = vpop.permute.xlu0 %3813
      %3815 = vrot.lane.b32.xlu0 %v3690, 10
      %v3816 = vpop.permute.xlu0 %3815
      %3817 = vrot.lane.b32.xlu0 %v3693, 10
      %v3818 = vpop.permute.xlu0 %3817
      %3819 = vrot.lane.b32.xlu0 %v3696, 10
      %v3820 = vpop.permute.xlu0 %3819
      %3821 = vrot.lane.b32.xlu0 %v3699, 10
      %v3822 = vpop.permute.xlu0 %3821
      %3823 = vrot.lane.b32.xlu0 %v3702, 10
      %v3824 = vpop.permute.xlu0 %3823
      %3825 = vrot.lane.b32.xlu0 %v3705, 10
      %v3826 = vpop.permute.xlu0 %3825
      %3827 = vrot.lane.b32.xlu0 %v3708, 10
      %v3828 = vpop.permute.xlu0 %3827
      %3829 = vrot.lane.b32.xlu0 %v3711, 10
      %v3830 = vpop.permute.xlu0 %3829
      %3831 = vrot.lane.b32.xlu0 %v3714, 10
      %v3832 = vpop.permute.xlu0 %3831
      %3833 = vrot.lane.b32.xlu0 %v3717, 10
      %v3834 = vpop.permute.xlu0 %3833
      %3835 = vrot.lane.b32.xlu0 %v3720, 10
      %v3836 = vpop.permute.xlu0 %3835
      %3837 = vrot.lane.b32.xlu0 %v3723, 10
      %v3838 = vpop.permute.xlu0 %3837
      %3839 = vrot.lane.b32.xlu0 %v3726, 10
      %v3840 = vpop.permute.xlu0 %3839
      %3841 = vrot.lane.b32.xlu0 %v3729, 10
      %v3842 = vpop.permute.xlu0 %3841
      %3843 = vrot.lane.b32.xlu0 %v3732, 10
      %v3844 = vpop.permute.xlu0 %3843
      %3845 = vrot.lane.b32.xlu0 %v3735, 10
      %v3846 = vpop.permute.xlu0 %3845
      %3847 = vrot.lane.b32.xlu0 %v3738, 10
      %v3848 = vpop.permute.xlu0 %3847
      %3849 = vrot.lane.b32.xlu0 %v3741, 10
      %v3850 = vpop.permute.xlu0 %3849
      %3851 = vrot.lane.b32.xlu0 %v3744, 10
      %v3852 = vpop.permute.xlu0 %3851
      %3853 = vrot.lane.b32.xlu0 %v3747, 10
      %v3854 = vpop.permute.xlu0 %3853
      %3855 = vrot.lane.b32.xlu0 %v3750, 10
      %v3856 = vpop.permute.xlu0 %3855
      %3857 = vrot.lane.b32.xlu0 %v3753, 10
      %v3858 = vpop.permute.xlu0 %3857
      %3859 = vrot.lane.b32.xlu0 %v3756, 10
      %v3860 = vpop.permute.xlu0 %3859
      %3861 = vrot.lane.b32.xlu0 %v3759, 10
      %v3862 = vpop.permute.xlu0 %3861
      %3863 = vrot.lane.b32.xlu0 %v3762, 10
      %v3864 = vpop.permute.xlu0 %3863
      %3865 = vrot.lane.b32.xlu0 %v3765, 10
      %v3866 = vpop.permute.xlu0 %3865
      %3867 = vrot.lane.b32.xlu0 %v3768, 10
      %v3868 = vpop.permute.xlu0 %3867
      %3869 = vrot.lane.b32.xlu0 %v3771, 10
      %v3870 = vpop.permute.xlu0 %3869
      %3871 = vrot.lane.b32.xlu0 %v3774, 10
      %v3872 = vpop.permute.xlu0 %3871
      %3873 = vrot.lane.b32.xlu0 %v3777, 10
      %v3874 = vpop.permute.xlu0 %3873
      %v3907 = vadd.f32 %v3404, %v3812
      %v3908 = vadd.f32 %v3405, %v3814
      %v3909 = vadd.f32 %v3406, %v3816
      %v3910 = vadd.f32 %v3407, %v3818
      %v3911 = vadd.f32 %v3408, %v3820
      %v3912 = vadd.f32 %v3409, %v3822
      %v3913 = vadd.f32 %v3410, %v3824
      %v3914 = vadd.f32 %v3411, %v3826
      %v3915 = vadd.f32 %v3412, %v3828
      %v3916 = vadd.f32 %v3413, %v3830
      %v3917 = vadd.f32 %v3414, %v3832
      %v3918 = vadd.f32 %v3415, %v3834
      %v3919 = vadd.f32 %v3416, %v3836
      %v3920 = vadd.f32 %v3417, %v3838
      %v3921 = vadd.f32 %v3418, %v3840
      %v3922 = vadd.f32 %v3419, %v3842
      %v3923 = vadd.f32 %v3420, %v3844
      %v3924 = vadd.f32 %v3421, %v3846
      %v3925 = vadd.f32 %v3422, %v3848
      %v3926 = vadd.f32 %v3423, %v3850
      %v3927 = vadd.f32 %v3424, %v3852
      %v3928 = vadd.f32 %v3425, %v3854
      %v3929 = vadd.f32 %v3426, %v3856
      %v3930 = vadd.f32 %v3427, %v3858
      %v3931 = vadd.f32 %v3428, %v3860
      %v3932 = vadd.f32 %v3429, %v3862
      %v3933 = vadd.f32 %v3430, %v3864
      %v3934 = vadd.f32 %v3431, %v3866
      %v3935 = vadd.f32 %v3432, %v3868
      %v3936 = vadd.f32 %v3433, %v3870
      %v3937 = vadd.f32 %v3434, %v3872
      %v3938 = vadd.f32 %v3435, %v3874
      %vm3939 = vcmp.ge.s32.totalorder %v512, 64
      %vm3940 = vcmp.ge.s32.totalorder %v513, 64
      %vm3941 = vcmp.ge.s32.totalorder %v514, 64
      %vm3942 = vcmp.ge.s32.totalorder %v515, 64
      %vm3943 = vcmp.ge.s32.totalorder %v516, 64
      %vm3944 = vcmp.ge.s32.totalorder %v517, 64
      %vm3945 = vcmp.ge.s32.totalorder %v518, 64
      %vm3946 = vcmp.ge.s32.totalorder %v519, 64
      %vm3947 = vcmp.ge.s32.totalorder %v520, 64
      %vm3948 = vcmp.ge.s32.totalorder %v521, 64
      %vm3949 = vcmp.ge.s32.totalorder %v522, 64
      %vm3950 = vcmp.ge.s32.totalorder %v523, 64
      %vm3951 = vcmp.ge.s32.totalorder %v524, 64
      %vm3952 = vcmp.ge.s32.totalorder %v525, 64
      %vm3953 = vcmp.ge.s32.totalorder %v526, 64
      %vm3954 = vcmp.ge.s32.totalorder %v527, 64
      %vm3955 = vcmp.ge.s32.totalorder %v528, 64
      %vm3956 = vcmp.ge.s32.totalorder %v529, 64
      %vm3957 = vcmp.ge.s32.totalorder %v530, 64
      %vm3958 = vcmp.ge.s32.totalorder %v531, 64
      %vm3959 = vcmp.ge.s32.totalorder %v532, 64
      %vm3960 = vcmp.ge.s32.totalorder %v533, 64
      %vm3961 = vcmp.ge.s32.totalorder %v534, 64
      %vm3962 = vcmp.ge.s32.totalorder %v535, 64
      %vm3963 = vcmp.ge.s32.totalorder %v536, 64
      %vm3964 = vcmp.ge.s32.totalorder %v537, 64
      %vm3965 = vcmp.ge.s32.totalorder %v538, 64
      %vm3966 = vcmp.ge.s32.totalorder %v539, 64
      %vm3967 = vcmp.ge.s32.totalorder %v540, 64
      %vm3968 = vcmp.ge.s32.totalorder %v541, 64
      %vm3969 = vcmp.ge.s32.totalorder %v542, 64
      %vm3970 = vcmp.ge.s32.totalorder %v543, 64
      %v3971 = vsel %vm3939, 1, 0
      %v3972 = vsel %vm3940, 1, 0
      %v3973 = vsel %vm3941, 1, 0
      %v3974 = vsel %vm3942, 1, 0
      %v3975 = vsel %vm3943, 1, 0
      %v3976 = vsel %vm3944, 1, 0
      %v3977 = vsel %vm3945, 1, 0
      %v3978 = vsel %vm3946, 1, 0
      %v3979 = vsel %vm3947, 1, 0
      %v3980 = vsel %vm3948, 1, 0
      %v3981 = vsel %vm3949, 1, 0
      %v3982 = vsel %vm3950, 1, 0
      %v3983 = vsel %vm3951, 1, 0
      %v3984 = vsel %vm3952, 1, 0
      %v3985 = vsel %vm3953, 1, 0
      %v3986 = vsel %vm3954, 1, 0
      %v3987 = vsel %vm3955, 1, 0
      %v3988 = vsel %vm3956, 1, 0
      %v3989 = vsel %vm3957, 1, 0
      %v3990 = vsel %vm3958, 1, 0
      %v3991 = vsel %vm3959, 1, 0
      %v3992 = vsel %vm3960, 1, 0
      %v3993 = vsel %vm3961, 1, 0
      %v3994 = vsel %vm3962, 1, 0
      %v3995 = vsel %vm3963, 1, 0
      %v3996 = vsel %vm3964, 1, 0
      %v3997 = vsel %vm3965, 1, 0
      %v3998 = vsel %vm3966, 1, 0
      %v3999 = vsel %vm3967, 1, 0
      %v4000 = vsel %vm3968, 1, 0
      %v4001 = vsel %vm3969, 1, 0
      %v4002 = vsel %vm3970, 1, 0
      %vm4003 = vcmp.eq.s32.totalorder %v3971, 1
      %vm4004 = vcmp.eq.s32.totalorder %v3972, 1
      %vm4005 = vcmp.eq.s32.totalorder %v3973, 1
      %vm4006 = vcmp.eq.s32.totalorder %v3974, 1
      %vm4007 = vcmp.eq.s32.totalorder %v3975, 1
      %vm4008 = vcmp.eq.s32.totalorder %v3976, 1
      %vm4009 = vcmp.eq.s32.totalorder %v3977, 1
      %vm4010 = vcmp.eq.s32.totalorder %v3978, 1
      %vm4011 = vcmp.eq.s32.totalorder %v3979, 1
      %vm4012 = vcmp.eq.s32.totalorder %v3980, 1
      %vm4013 = vcmp.eq.s32.totalorder %v3981, 1
      %vm4014 = vcmp.eq.s32.totalorder %v3982, 1
      %vm4015 = vcmp.eq.s32.totalorder %v3983, 1
      %vm4016 = vcmp.eq.s32.totalorder %v3984, 1
      %vm4017 = vcmp.eq.s32.totalorder %v3985, 1
      %vm4018 = vcmp.eq.s32.totalorder %v3986, 1
      %vm4019 = vcmp.eq.s32.totalorder %v3987, 1
      %vm4020 = vcmp.eq.s32.totalorder %v3988, 1
      %vm4021 = vcmp.eq.s32.totalorder %v3989, 1
      %vm4022 = vcmp.eq.s32.totalorder %v3990, 1
      %vm4023 = vcmp.eq.s32.totalorder %v3991, 1
      %vm4024 = vcmp.eq.s32.totalorder %v3992, 1
      %vm4025 = vcmp.eq.s32.totalorder %v3993, 1
      %vm4026 = vcmp.eq.s32.totalorder %v3994, 1
      %vm4027 = vcmp.eq.s32.totalorder %v3995, 1
      %vm4028 = vcmp.eq.s32.totalorder %v3996, 1
      %vm4029 = vcmp.eq.s32.totalorder %v3997, 1
      %vm4030 = vcmp.eq.s32.totalorder %v3998, 1
      %vm4031 = vcmp.eq.s32.totalorder %v3999, 1
      %vm4032 = vcmp.eq.s32.totalorder %v4000, 1
      %vm4033 = vcmp.eq.s32.totalorder %v4001, 1
      %vm4034 = vcmp.eq.s32.totalorder %v4002, 1
      %v4035 = vsel %vm4003, %v503, 0.0
      %v4036 = vsel %vm4004, %v504, 0.0
      %v4037 = vsel %vm4005, %v505, 0.0
      %v4038 = vsel %vm4006, %v506, 0.0
      %v4039 = vsel %vm4007, %v507, 0.0
      %v4040 = vsel %vm4008, %v508, 0.0
      %v4041 = vsel %vm4009, %v509, 0.0
      %v4042 = vsel %vm4010, %v510, 0.0
      %v4043 = vsel %vm4011, %v479, 0.0
      %v4044 = vsel %vm4012, %v480, 0.0
      %v4045 = vsel %vm4013, %v481, 0.0
      %v4046 = vsel %vm4014, %v482, 0.0
      %v4047 = vsel %vm4015, %v483, 0.0
      %v4048 = vsel %vm4016, %v484, 0.0
      %v4049 = vsel %vm4017, %v485, 0.0
      %v4050 = vsel %vm4018, %v486, 0.0
      %v4051 = vsel %vm4019, %v487, 0.0
      %v4052 = vsel %vm4020, %v488, 0.0
      %v4053 = vsel %vm4021, %v489, 0.0
      %v4054 = vsel %vm4022, %v490, 0.0
      %v4055 = vsel %vm4023, %v491, 0.0
      %v4056 = vsel %vm4024, %v492, 0.0
      %v4057 = vsel %vm4025, %v493, 0.0
      %v4058 = vsel %vm4026, %v494, 0.0
      %v4059 = vsel %vm4027, %v495, 0.0
      %v4060 = vsel %vm4028, %v496, 0.0
      %v4061 = vsel %vm4029, %v497, 0.0
      %v4062 = vsel %vm4030, %v498, 0.0
      %v4063 = vsel %vm4031, %v499, 0.0
      %v4064 = vsel %vm4032, %v500, 0.0
      %v4065 = vsel %vm4033, %v501, 0.0
      %v4066 = vsel %vm4034, %v502, 0.0
      %v4067 = vld [vmem:[%s3] sm:$0xff]
      %v4068 = vld [vmem:[%s3 + $0x8] sm:$0x3]
      %v4070 = vsel %vm547, %v4035, 0
      %v4073 = vsel %vm547, %v4036, 0
      %v4076 = vsel %vm547, %v4037, 0
      %v4079 = vsel %vm547, %v4038, 0
      %v4082 = vsel %vm547, %v4039, 0
      %v4085 = vsel %vm547, %v4040, 0
      %v4088 = vsel %vm547, %v4041, 0
      %v4091 = vsel %vm547, %v4042, 0
      %v4094 = vsel %vm547, %v4043, 0
      %v4097 = vsel %vm547, %v4044, 0
      %v4100 = vsel %vm547, %v4045, 0
      %v4103 = vsel %vm547, %v4046, 0
      %v4106 = vsel %vm547, %v4047, 0
      %v4109 = vsel %vm547, %v4048, 0
      %v4112 = vsel %vm547, %v4049, 0
      %v4115 = vsel %vm547, %v4050, 0
      %v4118 = vsel %vm547, %v4051, 0
      %v4121 = vsel %vm547, %v4052, 0
      %v4124 = vsel %vm547, %v4053, 0
      %v4127 = vsel %vm547, %v4054, 0
      %v4130 = vsel %vm547, %v4055, 0
      %v4133 = vsel %vm547, %v4056, 0
      %v4136 = vsel %vm547, %v4057, 0
      %v4139 = vsel %vm547, %v4058, 0
      %v4142 = vsel %vm547, %v4059, 0
      %v4145 = vsel %vm547, %v4060, 0
      %v4148 = vsel %vm547, %v4061, 0
      %v4151 = vsel %vm547, %v4062, 0
      %v4154 = vsel %vm547, %v4063, 0
      %v4157 = vsel %vm547, %v4064, 0
      %v4160 = vsel %vm547, %v4065, 0
      %v4163 = vsel %vm547, %v4066, 0
      %v4166 = vsel %vm644, %v4068, 0
      %4168 = vmatpush.msra.mxu0 0.0
      %4169 = vmatpush.msra.mxu0 0.0
      %4170 = vmatpush.msra.mxu0 0.0
      %4171 = vmatpush.msra.mxu0 0.0
      %4172 = vmatpush.msra.mxu0 0.0
      %4173 = vmatpush.msra.mxu0 0.0
      %4174 = vmatpush.msra.mxu0 0.0
      %4175 = vmatpush.msra.mxu0 0.0
      %4176 = vmatpush.msra.mxu0 0.0
      %4177 = vmatpush.msra.mxu0 0.0
      %4178 = vmatpush.msra.mxu0 0.0
      %4179 = vmatpush.msra.mxu0 0.0
      %4180 = vmatpush.msra.mxu0 0.0
      %4181 = vmatpush.msra.mxu0 0.0
      %4182 = vmatpush.msra.mxu0 %v4166
      %4183 = vmatpush.msra.mxu0 %v4067
      %4184 = vmatmul.f32.gmra.mxu0 %v4070
      %v4185 = vpop.f32.mrf.mxu0
      %v4186 = vadd.f32 0.0, %v4185
      %4187 = vmatmul.f32.gmra.mxu0 %v4073
      %v4188 = vpop.f32.mrf.mxu0
      %v4189 = vadd.f32 0.0, %v4188
      %4190 = vmatmul.f32.gmra.mxu0 %v4076
      %v4191 = vpop.f32.mrf.mxu0
      %v4192 = vadd.f32 0.0, %v4191
      %4193 = vmatmul.f32.gmra.mxu0 %v4079
      %v4194 = vpop.f32.mrf.mxu0
      %v4195 = vadd.f32 0.0, %v4194
      %4196 = vmatmul.f32.gmra.mxu0 %v4082
      %v4197 = vpop.f32.mrf.mxu0
      %v4198 = vadd.f32 0.0, %v4197
      %4199 = vmatmul.f32.gmra.mxu0 %v4085
      %v4200 = vpop.f32.mrf.mxu0
      %v4201 = vadd.f32 0.0, %v4200
      %4202 = vmatmul.f32.gmra.mxu0 %v4088
      %v4203 = vpop.f32.mrf.mxu0
      %v4204 = vadd.f32 0.0, %v4203
      %4205 = vmatmul.f32.gmra.mxu0 %v4091
      %v4206 = vpop.f32.mrf.mxu0
      %v4207 = vadd.f32 0.0, %v4206
      %4208 = vmatmul.f32.gmra.mxu0 %v4094
      %v4209 = vpop.f32.mrf.mxu0
      %v4210 = vadd.f32 0.0, %v4209
      %4211 = vmatmul.f32.gmra.mxu0 %v4097
      %v4212 = vpop.f32.mrf.mxu0
      %v4213 = vadd.f32 0.0, %v4212
      %4214 = vmatmul.f32.gmra.mxu0 %v4100
      %v4215 = vpop.f32.mrf.mxu0
      %v4216 = vadd.f32 0.0, %v4215
      %4217 = vmatmul.f32.gmra.mxu0 %v4103
      %v4218 = vpop.f32.mrf.mxu0
      %v4219 = vadd.f32 0.0, %v4218
      %4220 = vmatmul.f32.gmra.mxu0 %v4106
      %v4221 = vpop.f32.mrf.mxu0
      %v4222 = vadd.f32 0.0, %v4221
      %4223 = vmatmul.f32.gmra.mxu0 %v4109
      %v4224 = vpop.f32.mrf.mxu0
      %v4225 = vadd.f32 0.0, %v4224
      %4226 = vmatmul.f32.gmra.mxu0 %v4112
      %v4227 = vpop.f32.mrf.mxu0
      %v4228 = vadd.f32 0.0, %v4227
      %4229 = vmatmul.f32.gmra.mxu0 %v4115
      %v4230 = vpop.f32.mrf.mxu0
      %v4231 = vadd.f32 0.0, %v4230
      %4232 = vmatmul.f32.gmra.mxu0 %v4118
      %v4233 = vpop.f32.mrf.mxu0
      %v4234 = vadd.f32 0.0, %v4233
      %4235 = vmatmul.f32.gmra.mxu0 %v4121
      %v4236 = vpop.f32.mrf.mxu0
      %v4237 = vadd.f32 0.0, %v4236
      %4238 = vmatmul.f32.gmra.mxu0 %v4124
      %v4239 = vpop.f32.mrf.mxu0
      %v4240 = vadd.f32 0.0, %v4239
      %4241 = vmatmul.f32.gmra.mxu0 %v4127
      %v4242 = vpop.f32.mrf.mxu0
      %v4243 = vadd.f32 0.0, %v4242
      %4244 = vmatmul.f32.gmra.mxu0 %v4130
      %v4245 = vpop.f32.mrf.mxu0
      %v4246 = vadd.f32 0.0, %v4245
      %4247 = vmatmul.f32.gmra.mxu0 %v4133
      %v4248 = vpop.f32.mrf.mxu0
      %v4249 = vadd.f32 0.0, %v4248
      %4250 = vmatmul.f32.gmra.mxu0 %v4136
      %v4251 = vpop.f32.mrf.mxu0
      %v4252 = vadd.f32 0.0, %v4251
      %4253 = vmatmul.f32.gmra.mxu0 %v4139
      %v4254 = vpop.f32.mrf.mxu0
      %v4255 = vadd.f32 0.0, %v4254
      %4256 = vmatmul.f32.gmra.mxu0 %v4142
      %v4257 = vpop.f32.mrf.mxu0
      %v4258 = vadd.f32 0.0, %v4257
      %4259 = vmatmul.f32.gmra.mxu0 %v4145
      %v4260 = vpop.f32.mrf.mxu0
      %v4261 = vadd.f32 0.0, %v4260
      %4262 = vmatmul.f32.gmra.mxu0 %v4148
      %v4263 = vpop.f32.mrf.mxu0
      %v4264 = vadd.f32 0.0, %v4263
      %4265 = vmatmul.f32.gmra.mxu0 %v4151
      %v4266 = vpop.f32.mrf.mxu0
      %v4267 = vadd.f32 0.0, %v4266
      %4268 = vmatmul.f32.gmra.mxu0 %v4154
      %v4269 = vpop.f32.mrf.mxu0
      %v4270 = vadd.f32 0.0, %v4269
      %4271 = vmatmul.f32.gmra.mxu0 %v4157
      %v4272 = vpop.f32.mrf.mxu0
      %v4273 = vadd.f32 0.0, %v4272
      %4274 = vmatmul.f32.gmra.mxu0 %v4160
      %v4275 = vpop.f32.mrf.mxu0
      %v4276 = vadd.f32 0.0, %v4275
      %4277 = vmatmul.f32.gmra.mxu0 %v4163
      %v4278 = vpop.f32.mrf.mxu0
      %v4279 = vadd.f32 0.0, %v4278
      %4280 = vdwg.mxu0
      %4313 = vrot.lane.b32.xlu0 %v4186, 10
      %v4314 = vpop.permute.xlu0 %4313
      %4315 = vrot.lane.b32.xlu0 %v4189, 10
      %v4316 = vpop.permute.xlu0 %4315
      %4317 = vrot.lane.b32.xlu0 %v4192, 10
      %v4318 = vpop.permute.xlu0 %4317
      %4319 = vrot.lane.b32.xlu0 %v4195, 10
      %v4320 = vpop.permute.xlu0 %4319
      %4321 = vrot.lane.b32.xlu0 %v4198, 10
      %v4322 = vpop.permute.xlu0 %4321
      %4323 = vrot.lane.b32.xlu0 %v4201, 10
      %v4324 = vpop.permute.xlu0 %4323
      %4325 = vrot.lane.b32.xlu0 %v4204, 10
      %v4326 = vpop.permute.xlu0 %4325
      %4327 = vrot.lane.b32.xlu0 %v4207, 10
      %v4328 = vpop.permute.xlu0 %4327
      %4329 = vrot.lane.b32.xlu0 %v4210, 10
      %v4330 = vpop.permute.xlu0 %4329
      %4331 = vrot.lane.b32.xlu0 %v4213, 10
      %v4332 = vpop.permute.xlu0 %4331
      %4333 = vrot.lane.b32.xlu0 %v4216, 10
      %v4334 = vpop.permute.xlu0 %4333
      %4335 = vrot.lane.b32.xlu0 %v4219, 10
      %v4336 = vpop.permute.xlu0 %4335
      %4337 = vrot.lane.b32.xlu0 %v4222, 10
      %v4338 = vpop.permute.xlu0 %4337
      %4339 = vrot.lane.b32.xlu0 %v4225, 10
      %v4340 = vpop.permute.xlu0 %4339
      %4341 = vrot.lane.b32.xlu0 %v4228, 10
      %v4342 = vpop.permute.xlu0 %4341
      %4343 = vrot.lane.b32.xlu0 %v4231, 10
      %v4344 = vpop.permute.xlu0 %4343
      %4345 = vrot.lane.b32.xlu0 %v4234, 10
      %v4346 = vpop.permute.xlu0 %4345
      %4347 = vrot.lane.b32.xlu0 %v4237, 10
      %v4348 = vpop.permute.xlu0 %4347
      %4349 = vrot.lane.b32.xlu0 %v4240, 10
      %v4350 = vpop.permute.xlu0 %4349
      %4351 = vrot.lane.b32.xlu0 %v4243, 10
      %v4352 = vpop.permute.xlu0 %4351
      %4353 = vrot.lane.b32.xlu0 %v4246, 10
      %v4354 = vpop.permute.xlu0 %4353
      %4355 = vrot.lane.b32.xlu0 %v4249, 10
      %v4356 = vpop.permute.xlu0 %4355
      %4357 = vrot.lane.b32.xlu0 %v4252, 10
      %v4358 = vpop.permute.xlu0 %4357
      %4359 = vrot.lane.b32.xlu0 %v4255, 10
      %v4360 = vpop.permute.xlu0 %4359
      %4361 = vrot.lane.b32.xlu0 %v4258, 10
      %v4362 = vpop.permute.xlu0 %4361
      %4363 = vrot.lane.b32.xlu0 %v4261, 10
      %v4364 = vpop.permute.xlu0 %4363
      %4365 = vrot.lane.b32.xlu0 %v4264, 10
      %v4366 = vpop.permute.xlu0 %4365
      %4367 = vrot.lane.b32.xlu0 %v4267, 10
      %v4368 = vpop.permute.xlu0 %4367
      %4369 = vrot.lane.b32.xlu0 %v4270, 10
      %v4370 = vpop.permute.xlu0 %4369
      %4371 = vrot.lane.b32.xlu0 %v4273, 10
      %v4372 = vpop.permute.xlu0 %4371
      %4373 = vrot.lane.b32.xlu0 %v4276, 10
      %v4374 = vpop.permute.xlu0 %4373
      %4375 = vrot.lane.b32.xlu0 %v4279, 10
      %v4376 = vpop.permute.xlu0 %4375
      %v4409 = vadd.f32 %v3907, %v4314
      %v4410 = vadd.f32 %v3908, %v4316
      %v4411 = vadd.f32 %v3909, %v4318
      %v4412 = vadd.f32 %v3910, %v4320
      %v4413 = vadd.f32 %v3911, %v4322
      %v4414 = vadd.f32 %v3912, %v4324
      %v4415 = vadd.f32 %v3913, %v4326
      %v4416 = vadd.f32 %v3914, %v4328
      %v4417 = vadd.f32 %v3915, %v4330
      %v4418 = vadd.f32 %v3916, %v4332
      %v4419 = vadd.f32 %v3917, %v4334
      %v4420 = vadd.f32 %v3918, %v4336
      %v4421 = vadd.f32 %v3919, %v4338
      %v4422 = vadd.f32 %v3920, %v4340
      %v4423 = vadd.f32 %v3921, %v4342
      %v4424 = vadd.f32 %v3922, %v4344
      %v4425 = vadd.f32 %v3923, %v4346
      %v4426 = vadd.f32 %v3924, %v4348
      %v4427 = vadd.f32 %v3925, %v4350
      %v4428 = vadd.f32 %v3926, %v4352
      %v4429 = vadd.f32 %v3927, %v4354
      %v4430 = vadd.f32 %v3928, %v4356
      %v4431 = vadd.f32 %v3929, %v4358
      %v4432 = vadd.f32 %v3930, %v4360
      %v4433 = vadd.f32 %v3931, %v4362
      %v4434 = vadd.f32 %v3932, %v4364
      %v4435 = vadd.f32 %v3933, %v4366
      %v4436 = vadd.f32 %v3934, %v4368
      %v4437 = vadd.f32 %v3935, %v4370
      %v4438 = vadd.f32 %v3936, %v4372
      %v4439 = vadd.f32 %v3937, %v4374
      %v4440 = vadd.f32 %v3938, %v4376
      %vm4441 = vcmp.lt.s32.totalorder %v512, 192
      %vm4442 = vcmp.lt.s32.totalorder %v513, 192
      %vm4443 = vcmp.lt.s32.totalorder %v514, 192
      %vm4444 = vcmp.lt.s32.totalorder %v515, 192
      %vm4445 = vcmp.lt.s32.totalorder %v516, 192
      %vm4446 = vcmp.lt.s32.totalorder %v517, 192
      %vm4447 = vcmp.lt.s32.totalorder %v518, 192
      %vm4448 = vcmp.lt.s32.totalorder %v519, 192
      %vm4449 = vcmp.lt.s32.totalorder %v520, 192
      %vm4450 = vcmp.lt.s32.totalorder %v521, 192
      %vm4451 = vcmp.lt.s32.totalorder %v522, 192
      %vm4452 = vcmp.lt.s32.totalorder %v523, 192
      %vm4453 = vcmp.lt.s32.totalorder %v524, 192
      %vm4454 = vcmp.lt.s32.totalorder %v525, 192
      %vm4455 = vcmp.lt.s32.totalorder %v526, 192
      %vm4456 = vcmp.lt.s32.totalorder %v527, 192
      %vm4457 = vcmp.lt.s32.totalorder %v528, 192
      %vm4458 = vcmp.lt.s32.totalorder %v529, 192
      %vm4459 = vcmp.lt.s32.totalorder %v530, 192
      %vm4460 = vcmp.lt.s32.totalorder %v531, 192
      %vm4461 = vcmp.lt.s32.totalorder %v532, 192
      %vm4462 = vcmp.lt.s32.totalorder %v533, 192
      %vm4463 = vcmp.lt.s32.totalorder %v534, 192
      %vm4464 = vcmp.lt.s32.totalorder %v535, 192
      %vm4465 = vcmp.lt.s32.totalorder %v536, 192
      %vm4466 = vcmp.lt.s32.totalorder %v537, 192
      %vm4467 = vcmp.lt.s32.totalorder %v538, 192
      %vm4468 = vcmp.lt.s32.totalorder %v539, 192
      %vm4469 = vcmp.lt.s32.totalorder %v540, 192
      %vm4470 = vcmp.lt.s32.totalorder %v541, 192
      %vm4471 = vcmp.lt.s32.totalorder %v542, 192
      %vm4472 = vcmp.lt.s32.totalorder %v543, 192
      %v4473 = vsel %vm4441, 1, 0
      %v4474 = vsel %vm4442, 1, 0
      %v4475 = vsel %vm4443, 1, 0
      %v4476 = vsel %vm4444, 1, 0
      %v4477 = vsel %vm4445, 1, 0
      %v4478 = vsel %vm4446, 1, 0
      %v4479 = vsel %vm4447, 1, 0
      %v4480 = vsel %vm4448, 1, 0
      %v4481 = vsel %vm4449, 1, 0
      %v4482 = vsel %vm4450, 1, 0
      %v4483 = vsel %vm4451, 1, 0
      %v4484 = vsel %vm4452, 1, 0
      %v4485 = vsel %vm4453, 1, 0
      %v4486 = vsel %vm4454, 1, 0
      %v4487 = vsel %vm4455, 1, 0
      %v4488 = vsel %vm4456, 1, 0
      %v4489 = vsel %vm4457, 1, 0
      %v4490 = vsel %vm4458, 1, 0
      %v4491 = vsel %vm4459, 1, 0
      %v4492 = vsel %vm4460, 1, 0
      %v4493 = vsel %vm4461, 1, 0
      %v4494 = vsel %vm4462, 1, 0
      %v4495 = vsel %vm4463, 1, 0
      %v4496 = vsel %vm4464, 1, 0
      %v4497 = vsel %vm4465, 1, 0
      %v4498 = vsel %vm4466, 1, 0
      %v4499 = vsel %vm4467, 1, 0
      %v4500 = vsel %vm4468, 1, 0
      %v4501 = vsel %vm4469, 1, 0
      %v4502 = vsel %vm4470, 1, 0
      %v4503 = vsel %vm4471, 1, 0
      %v4504 = vsel %vm4472, 1, 0
      %vm4505 = vcmp.eq.s32.totalorder %v4473, 1
      %vm4506 = vcmp.eq.s32.totalorder %v4474, 1
      %vm4507 = vcmp.eq.s32.totalorder %v4475, 1
      %vm4508 = vcmp.eq.s32.totalorder %v4476, 1
      %vm4509 = vcmp.eq.s32.totalorder %v4477, 1
      %vm4510 = vcmp.eq.s32.totalorder %v4478, 1
      %vm4511 = vcmp.eq.s32.totalorder %v4479, 1
      %vm4512 = vcmp.eq.s32.totalorder %v4480, 1
      %vm4513 = vcmp.eq.s32.totalorder %v4481, 1
      %vm4514 = vcmp.eq.s32.totalorder %v4482, 1
      %vm4515 = vcmp.eq.s32.totalorder %v4483, 1
      %vm4516 = vcmp.eq.s32.totalorder %v4484, 1
      %vm4517 = vcmp.eq.s32.totalorder %v4485, 1
      %vm4518 = vcmp.eq.s32.totalorder %v4486, 1
      %vm4519 = vcmp.eq.s32.totalorder %v4487, 1
      %vm4520 = vcmp.eq.s32.totalorder %v4488, 1
      %vm4521 = vcmp.eq.s32.totalorder %v4489, 1
      %vm4522 = vcmp.eq.s32.totalorder %v4490, 1
      %vm4523 = vcmp.eq.s32.totalorder %v4491, 1
      %vm4524 = vcmp.eq.s32.totalorder %v4492, 1
      %vm4525 = vcmp.eq.s32.totalorder %v4493, 1
      %vm4526 = vcmp.eq.s32.totalorder %v4494, 1
      %vm4527 = vcmp.eq.s32.totalorder %v4495, 1
      %vm4528 = vcmp.eq.s32.totalorder %v4496, 1
      %vm4529 = vcmp.eq.s32.totalorder %v4497, 1
      %vm4530 = vcmp.eq.s32.totalorder %v4498, 1
      %vm4531 = vcmp.eq.s32.totalorder %v4499, 1
      %vm4532 = vcmp.eq.s32.totalorder %v4500, 1
      %vm4533 = vcmp.eq.s32.totalorder %v4501, 1
      %vm4534 = vcmp.eq.s32.totalorder %v4502, 1
      %vm4535 = vcmp.eq.s32.totalorder %v4503, 1
      %vm4536 = vcmp.eq.s32.totalorder %v4504, 1
      %v4537 = vsel %vm4505, %v487, 0.0
      %v4538 = vsel %vm4506, %v488, 0.0
      %v4539 = vsel %vm4507, %v489, 0.0
      %v4540 = vsel %vm4508, %v490, 0.0
      %v4541 = vsel %vm4509, %v491, 0.0
      %v4542 = vsel %vm4510, %v492, 0.0
      %v4543 = vsel %vm4511, %v493, 0.0
      %v4544 = vsel %vm4512, %v494, 0.0
      %v4545 = vsel %vm4513, %v495, 0.0
      %v4546 = vsel %vm4514, %v496, 0.0
      %v4547 = vsel %vm4515, %v497, 0.0
      %v4548 = vsel %vm4516, %v498, 0.0
      %v4549 = vsel %vm4517, %v499, 0.0
      %v4550 = vsel %vm4518, %v500, 0.0
      %v4551 = vsel %vm4519, %v501, 0.0
      %v4552 = vsel %vm4520, %v502, 0.0
      %v4553 = vsel %vm4521, %v503, 0.0
      %v4554 = vsel %vm4522, %v504, 0.0
      %v4555 = vsel %vm4523, %v505, 0.0
      %v4556 = vsel %vm4524, %v506, 0.0
      %v4557 = vsel %vm4525, %v507, 0.0
      %v4558 = vsel %vm4526, %v508, 0.0
      %v4559 = vsel %vm4527, %v509, 0.0
      %v4560 = vsel %vm4528, %v510, 0.0
      %v4561 = vsel %vm4529, %v479, 0.0
      %v4562 = vsel %vm4530, %v480, 0.0
      %v4563 = vsel %vm4531, %v481, 0.0
      %v4564 = vsel %vm4532, %v482, 0.0
      %v4565 = vsel %vm4533, %v483, 0.0
      %v4566 = vsel %vm4534, %v484, 0.0
      %v4567 = vsel %vm4535, %v485, 0.0
      %v4568 = vsel %vm4536, %v486, 0.0
      %s4569 = scalar_lea.vmem %s3, 128
      %v4570 = vld [vmem:[%s4569] sm:$0xff]
      %v4571 = vld [vmem:[%s4569 + $0x8] sm:$0x3]
      %v4573 = vsel %vm547, %v4537, 0
      %v4576 = vsel %vm547, %v4538, 0
      %v4579 = vsel %vm547, %v4539, 0
      %v4582 = vsel %vm547, %v4540, 0
      %v4585 = vsel %vm547, %v4541, 0
      %v4588 = vsel %vm547, %v4542, 0
      %v4591 = vsel %vm547, %v4543, 0
      %v4594 = vsel %vm547, %v4544, 0
      %v4597 = vsel %vm547, %v4545, 0
      %v4600 = vsel %vm547, %v4546, 0
      %v4603 = vsel %vm547, %v4547, 0
      %v4606 = vsel %vm547, %v4548, 0
      %v4609 = vsel %vm547, %v4549, 0
      %v4612 = vsel %vm547, %v4550, 0
      %v4615 = vsel %vm547, %v4551, 0
      %v4618 = vsel %vm547, %v4552, 0
      %v4621 = vsel %vm547, %v4553, 0
      %v4624 = vsel %vm547, %v4554, 0
      %v4627 = vsel %vm547, %v4555, 0
      %v4630 = vsel %vm547, %v4556, 0
      %v4633 = vsel %vm547, %v4557, 0
      %v4636 = vsel %vm547, %v4558, 0
      %v4639 = vsel %vm547, %v4559, 0
      %v4642 = vsel %vm547, %v4560, 0
      %v4645 = vsel %vm547, %v4561, 0
      %v4648 = vsel %vm547, %v4562, 0
      %v4651 = vsel %vm547, %v4563, 0
      %v4654 = vsel %vm547, %v4564, 0
      %v4657 = vsel %vm547, %v4565, 0
      %v4660 = vsel %vm547, %v4566, 0
      %v4663 = vsel %vm547, %v4567, 0
      %v4666 = vsel %vm547, %v4568, 0
      %v4669 = vsel %vm644, %v4571, 0
      %4671 = vmatpush.msra.mxu0 0.0
      %4672 = vmatpush.msra.mxu0 0.0
      %4673 = vmatpush.msra.mxu0 0.0
      %4674 = vmatpush.msra.mxu0 0.0
      %4675 = vmatpush.msra.mxu0 0.0
      %4676 = vmatpush.msra.mxu0 0.0
      %4677 = vmatpush.msra.mxu0 0.0
      %4678 = vmatpush.msra.mxu0 0.0
      %4679 = vmatpush.msra.mxu0 0.0
      %4680 = vmatpush.msra.mxu0 0.0
      %4681 = vmatpush.msra.mxu0 0.0
      %4682 = vmatpush.msra.mxu0 0.0
      %4683 = vmatpush.msra.mxu0 0.0
      %4684 = vmatpush.msra.mxu0 0.0
      %4685 = vmatpush.msra.mxu0 %v4669
      %4686 = vmatpush.msra.mxu0 %v4570
      %4687 = vmatmul.f32.gmra.mxu0 %v4573
      %v4688 = vpop.f32.mrf.mxu0
      %v4689 = vadd.f32 0.0, %v4688
      %4690 = vmatmul.f32.gmra.mxu0 %v4576
      %v4691 = vpop.f32.mrf.mxu0
      %v4692 = vadd.f32 0.0, %v4691
      %4693 = vmatmul.f32.gmra.mxu0 %v4579
      %v4694 = vpop.f32.mrf.mxu0
      %v4695 = vadd.f32 0.0, %v4694
      %4696 = vmatmul.f32.gmra.mxu0 %v4582
      %v4697 = vpop.f32.mrf.mxu0
      %v4698 = vadd.f32 0.0, %v4697
      %4699 = vmatmul.f32.gmra.mxu0 %v4585
      %v4700 = vpop.f32.mrf.mxu0
      %v4701 = vadd.f32 0.0, %v4700
      %4702 = vmatmul.f32.gmra.mxu0 %v4588
      %v4703 = vpop.f32.mrf.mxu0
      %v4704 = vadd.f32 0.0, %v4703
      %4705 = vmatmul.f32.gmra.mxu0 %v4591
      %v4706 = vpop.f32.mrf.mxu0
      %v4707 = vadd.f32 0.0, %v4706
      %4708 = vmatmul.f32.gmra.mxu0 %v4594
      %v4709 = vpop.f32.mrf.mxu0
      %v4710 = vadd.f32 0.0, %v4709
      %4711 = vmatmul.f32.gmra.mxu0 %v4597
      %v4712 = vpop.f32.mrf.mxu0
      %v4713 = vadd.f32 0.0, %v4712
      %4714 = vmatmul.f32.gmra.mxu0 %v4600
      %v4715 = vpop.f32.mrf.mxu0
      %v4716 = vadd.f32 0.0, %v4715
      %4717 = vmatmul.f32.gmra.mxu0 %v4603
      %v4718 = vpop.f32.mrf.mxu0
      %v4719 = vadd.f32 0.0, %v4718
      %4720 = vmatmul.f32.gmra.mxu0 %v4606
      %v4721 = vpop.f32.mrf.mxu0
      %v4722 = vadd.f32 0.0, %v4721
      %4723 = vmatmul.f32.gmra.mxu0 %v4609
      %v4724 = vpop.f32.mrf.mxu0
      %v4725 = vadd.f32 0.0, %v4724
      %4726 = vmatmul.f32.gmra.mxu0 %v4612
      %v4727 = vpop.f32.mrf.mxu0
      %v4728 = vadd.f32 0.0, %v4727
      %4729 = vmatmul.f32.gmra.mxu0 %v4615
      %v4730 = vpop.f32.mrf.mxu0
      %v4731 = vadd.f32 0.0, %v4730
      %4732 = vmatmul.f32.gmra.mxu0 %v4618
      %v4733 = vpop.f32.mrf.mxu0
      %v4734 = vadd.f32 0.0, %v4733
      %4735 = vmatmul.f32.gmra.mxu0 %v4621
      %v4736 = vpop.f32.mrf.mxu0
      %v4737 = vadd.f32 0.0, %v4736
      %4738 = vmatmul.f32.gmra.mxu0 %v4624
      %v4739 = vpop.f32.mrf.mxu0
      %v4740 = vadd.f32 0.0, %v4739
      %4741 = vmatmul.f32.gmra.mxu0 %v4627
      %v4742 = vpop.f32.mrf.mxu0
      %v4743 = vadd.f32 0.0, %v4742
      %4744 = vmatmul.f32.gmra.mxu0 %v4630
      %v4745 = vpop.f32.mrf.mxu0
      %v4746 = vadd.f32 0.0, %v4745
      %4747 = vmatmul.f32.gmra.mxu0 %v4633
      %v4748 = vpop.f32.mrf.mxu0
      %v4749 = vadd.f32 0.0, %v4748
      %4750 = vmatmul.f32.gmra.mxu0 %v4636
      %v4751 = vpop.f32.mrf.mxu0
      %v4752 = vadd.f32 0.0, %v4751
      %4753 = vmatmul.f32.gmra.mxu0 %v4639
      %v4754 = vpop.f32.mrf.mxu0
      %v4755 = vadd.f32 0.0, %v4754
      %4756 = vmatmul.f32.gmra.mxu0 %v4642
      %v4757 = vpop.f32.mrf.mxu0
      %v4758 = vadd.f32 0.0, %v4757
      %4759 = vmatmul.f32.gmra.mxu0 %v4645
      %v4760 = vpop.f32.mrf.mxu0
      %v4761 = vadd.f32 0.0, %v4760
      %4762 = vmatmul.f32.gmra.mxu0 %v4648
      %v4763 = vpop.f32.mrf.mxu0
      %v4764 = vadd.f32 0.0, %v4763
      %4765 = vmatmul.f32.gmra.mxu0 %v4651
      %v4766 = vpop.f32.mrf.mxu0
      %v4767 = vadd.f32 0.0, %v4766
      %4768 = vmatmul.f32.gmra.mxu0 %v4654
      %v4769 = vpop.f32.mrf.mxu0
      %v4770 = vadd.f32 0.0, %v4769
      %4771 = vmatmul.f32.gmra.mxu0 %v4657
      %v4772 = vpop.f32.mrf.mxu0
      %v4773 = vadd.f32 0.0, %v4772
      %4774 = vmatmul.f32.gmra.mxu0 %v4660
      %v4775 = vpop.f32.mrf.mxu0
      %v4776 = vadd.f32 0.0, %v4775
      %4777 = vmatmul.f32.gmra.mxu0 %v4663
      %v4778 = vpop.f32.mrf.mxu0
      %v4779 = vadd.f32 0.0, %v4778
      %4780 = vmatmul.f32.gmra.mxu0 %v4666
      %v4781 = vpop.f32.mrf.mxu0
      %v4782 = vadd.f32 0.0, %v4781
      %4783 = vdwg.mxu0
      %4816 = vrot.lane.b32.xlu0 %v4689, 10
      %v4817 = vpop.permute.xlu0 %4816
      %4818 = vrot.lane.b32.xlu0 %v4692, 10
      %v4819 = vpop.permute.xlu0 %4818
      %4820 = vrot.lane.b32.xlu0 %v4695, 10
      %v4821 = vpop.permute.xlu0 %4820
      %4822 = vrot.lane.b32.xlu0 %v4698, 10
      %v4823 = vpop.permute.xlu0 %4822
      %4824 = vrot.lane.b32.xlu0 %v4701, 10
      %v4825 = vpop.permute.xlu0 %4824
      %4826 = vrot.lane.b32.xlu0 %v4704, 10
      %v4827 = vpop.permute.xlu0 %4826
      %4828 = vrot.lane.b32.xlu0 %v4707, 10
      %v4829 = vpop.permute.xlu0 %4828
      %4830 = vrot.lane.b32.xlu0 %v4710, 10
      %v4831 = vpop.permute.xlu0 %4830
      %4832 = vrot.lane.b32.xlu0 %v4713, 10
      %v4833 = vpop.permute.xlu0 %4832
      %4834 = vrot.lane.b32.xlu0 %v4716, 10
      %v4835 = vpop.permute.xlu0 %4834
      %4836 = vrot.lane.b32.xlu0 %v4719, 10
      %v4837 = vpop.permute.xlu0 %4836
      %4838 = vrot.lane.b32.xlu0 %v4722, 10
      %v4839 = vpop.permute.xlu0 %4838
      %4840 = vrot.lane.b32.xlu0 %v4725, 10
      %v4841 = vpop.permute.xlu0 %4840
      %4842 = vrot.lane.b32.xlu0 %v4728, 10
      %v4843 = vpop.permute.xlu0 %4842
      %4844 = vrot.lane.b32.xlu0 %v4731, 10
      %v4845 = vpop.permute.xlu0 %4844
      %4846 = vrot.lane.b32.xlu0 %v4734, 10
      %v4847 = vpop.permute.xlu0 %4846
      %4848 = vrot.lane.b32.xlu0 %v4737, 10
      %v4849 = vpop.permute.xlu0 %4848
      %4850 = vrot.lane.b32.xlu0 %v4740, 10
      %v4851 = vpop.permute.xlu0 %4850
      %4852 = vrot.lane.b32.xlu0 %v4743, 10
      %v4853 = vpop.permute.xlu0 %4852
      %4854 = vrot.lane.b32.xlu0 %v4746, 10
      %v4855 = vpop.permute.xlu0 %4854
      %4856 = vrot.lane.b32.xlu0 %v4749, 10
      %v4857 = vpop.permute.xlu0 %4856
      %4858 = vrot.lane.b32.xlu0 %v4752, 10
      %v4859 = vpop.permute.xlu0 %4858
      %4860 = vrot.lane.b32.xlu0 %v4755, 10
      %v4861 = vpop.permute.xlu0 %4860
      %4862 = vrot.lane.b32.xlu0 %v4758, 10
      %v4863 = vpop.permute.xlu0 %4862
      %4864 = vrot.lane.b32.xlu0 %v4761, 10
      %v4865 = vpop.permute.xlu0 %4864
      %4866 = vrot.lane.b32.xlu0 %v4764, 10
      %v4867 = vpop.permute.xlu0 %4866
      %4868 = vrot.lane.b32.xlu0 %v4767, 10
      %v4869 = vpop.permute.xlu0 %4868
      %4870 = vrot.lane.b32.xlu0 %v4770, 10
      %v4871 = vpop.permute.xlu0 %4870
      %4872 = vrot.lane.b32.xlu0 %v4773, 10
      %v4873 = vpop.permute.xlu0 %4872
      %4874 = vrot.lane.b32.xlu0 %v4776, 10
      %v4875 = vpop.permute.xlu0 %4874
      %4876 = vrot.lane.b32.xlu0 %v4779, 10
      %v4877 = vpop.permute.xlu0 %4876
      %4878 = vrot.lane.b32.xlu0 %v4782, 10
      %v4879 = vpop.permute.xlu0 %4878
      %v4912 = vadd.f32 %v4409, %v4817
      %v4913 = vadd.f32 %v4410, %v4819
      %v4914 = vadd.f32 %v4411, %v4821
      %v4915 = vadd.f32 %v4412, %v4823
      %v4916 = vadd.f32 %v4413, %v4825
      %v4917 = vadd.f32 %v4414, %v4827
      %v4918 = vadd.f32 %v4415, %v4829
      %v4919 = vadd.f32 %v4416, %v4831
      %v4920 = vadd.f32 %v4417, %v4833
      %v4921 = vadd.f32 %v4418, %v4835
      %v4922 = vadd.f32 %v4419, %v4837
      %v4923 = vadd.f32 %v4420, %v4839
      %v4924 = vadd.f32 %v4421, %v4841
      %v4925 = vadd.f32 %v4422, %v4843
      %v4926 = vadd.f32 %v4423, %v4845
      %v4927 = vadd.f32 %v4424, %v4847
      %v4928 = vadd.f32 %v4425, %v4849
      %v4929 = vadd.f32 %v4426, %v4851
      %v4930 = vadd.f32 %v4427, %v4853
      %v4931 = vadd.f32 %v4428, %v4855
      %v4932 = vadd.f32 %v4429, %v4857
      %v4933 = vadd.f32 %v4430, %v4859
      %v4934 = vadd.f32 %v4431, %v4861
      %v4935 = vadd.f32 %v4432, %v4863
      %v4936 = vadd.f32 %v4433, %v4865
      %v4937 = vadd.f32 %v4434, %v4867
      %v4938 = vadd.f32 %v4435, %v4869
      %v4939 = vadd.f32 %v4436, %v4871
      %v4940 = vadd.f32 %v4437, %v4873
      %v4941 = vadd.f32 %v4438, %v4875
      %v4942 = vadd.f32 %v4439, %v4877
      %v4943 = vadd.f32 %v4440, %v4879
      %v4944 = vmax.f32 %v1017, %v479
      %v4945 = vmax.f32 %v1018, %v480
      %v4946 = vmax.f32 %v1019, %v481
      %v4947 = vmax.f32 %v1020, %v482
      %v4948 = vmax.f32 %v1021, %v483
      %v4949 = vmax.f32 %v1022, %v484
      %v4950 = vmax.f32 %v1023, %v485
      %v4951 = vmax.f32 %v1024, %v486
      %v4952 = vmax.f32 %v1025, %v487
      %v4953 = vmax.f32 %v1026, %v488
      %v4954 = vmax.f32 %v1027, %v489
      %v4955 = vmax.f32 %v1028, %v490
      %v4956 = vmax.f32 %v1029, %v491
      %v4957 = vmax.f32 %v1030, %v492
      %v4958 = vmax.f32 %v1031, %v493
      %v4959 = vmax.f32 %v1032, %v494
      %v4960 = vmax.f32 %v1033, %v495
      %v4961 = vmax.f32 %v1034, %v496
      %v4962 = vmax.f32 %v1035, %v497
      %v4963 = vmax.f32 %v1036, %v498
      %v4964 = vmax.f32 %v1037, %v499
      %v4965 = vmax.f32 %v1038, %v500
      %v4966 = vmax.f32 %v1039, %v501
      %v4967 = vmax.f32 %v1040, %v502
      %v4968 = vmax.f32 %v1041, %v503
      %v4969 = vmax.f32 %v1042, %v504
      %v4970 = vmax.f32 %v1043, %v505
      %v4971 = vmax.f32 %v1044, %v506
      %v4972 = vmax.f32 %v1045, %v507
      %v4973 = vmax.f32 %v1046, %v508
      %v4974 = vmax.f32 %v1047, %v509
      %v4975 = vmax.f32 %v1048, %v510
      %v4976 = vmax.f32 %v4944, %v1145
      %v4977 = vmax.f32 %v4945, %v1146
      %v4978 = vmax.f32 %v4946, %v1147
      %v4979 = vmax.f32 %v4947, %v1148
      %v4980 = vmax.f32 %v4948, %v1149
      %v4981 = vmax.f32 %v4949, %v1150
      %v4982 = vmax.f32 %v4950, %v1151
      %v4983 = vmax.f32 %v4951, %v1152
      %v4984 = vmax.f32 %v4952, %v1153
      %v4985 = vmax.f32 %v4953, %v1154
      %v4986 = vmax.f32 %v4954, %v1155
      %v4987 = vmax.f32 %v4955, %v1156
      %v4988 = vmax.f32 %v4956, %v1157
      %v4989 = vmax.f32 %v4957, %v1158
      %v4990 = vmax.f32 %v4958, %v1159
      %v4991 = vmax.f32 %v4959, %v1160
      %v4992 = vmax.f32 %v4960, %v1161
      %v4993 = vmax.f32 %v4961, %v1162
      %v4994 = vmax.f32 %v4962, %v1163
      %v4995 = vmax.f32 %v4963, %v1164
      %v4996 = vmax.f32 %v4964, %v1165
      %v4997 = vmax.f32 %v4965, %v1166
      %v4998 = vmax.f32 %v4966, %v1167
      %v4999 = vmax.f32 %v4967, %v1168
      %v5000 = vmax.f32 %v4968, %v1169
      %v5001 = vmax.f32 %v4969, %v1170
      %v5002 = vmax.f32 %v4970, %v1171
      %v5003 = vmax.f32 %v4971, %v1172
      %v5004 = vmax.f32 %v4972, %v1173
      %v5005 = vmax.f32 %v4973, %v1174
      %v5006 = vmax.f32 %v4974, %v1175
      %v5007 = vmax.f32 %v4975, %v1176
      %v5008 = vld [vmem:[%s4] sm:$0x3]
      %5041 = vrot.lane.b32.xlu0 %v4976, 120
      %v5042 = vpop.permute.xlu0 %5041
      %5043 = vrot.lane.b32.xlu0 %v4977, 120
      %v5044 = vpop.permute.xlu0 %5043
      %5045 = vrot.lane.b32.xlu0 %v4978, 120
      %v5046 = vpop.permute.xlu0 %5045
      %5047 = vrot.lane.b32.xlu0 %v4979, 120
      %v5048 = vpop.permute.xlu0 %5047
      %5049 = vrot.lane.b32.xlu0 %v4980, 120
      %v5050 = vpop.permute.xlu0 %5049
      %5051 = vrot.lane.b32.xlu0 %v4981, 120
      %v5052 = vpop.permute.xlu0 %5051
      %5053 = vrot.lane.b32.xlu0 %v4982, 120
      %v5054 = vpop.permute.xlu0 %5053
      %5055 = vrot.lane.b32.xlu0 %v4983, 120
      %v5056 = vpop.permute.xlu0 %5055
      %5057 = vrot.lane.b32.xlu0 %v4984, 120
      %v5058 = vpop.permute.xlu0 %5057
      %5059 = vrot.lane.b32.xlu0 %v4985, 120
      %v5060 = vpop.permute.xlu0 %5059
      %5061 = vrot.lane.b32.xlu0 %v4986, 120
      %v5062 = vpop.permute.xlu0 %5061
      %5063 = vrot.lane.b32.xlu0 %v4987, 120
      %v5064 = vpop.permute.xlu0 %5063
      %5065 = vrot.lane.b32.xlu0 %v4988, 120
      %v5066 = vpop.permute.xlu0 %5065
      %5067 = vrot.lane.b32.xlu0 %v4989, 120
      %v5068 = vpop.permute.xlu0 %5067
      %5069 = vrot.lane.b32.xlu0 %v4990, 120
      %v5070 = vpop.permute.xlu0 %5069
      %5071 = vrot.lane.b32.xlu0 %v4991, 120
      %v5072 = vpop.permute.xlu0 %5071
      %5073 = vrot.lane.b32.xlu0 %v4992, 120
      %v5074 = vpop.permute.xlu0 %5073
      %5075 = vrot.lane.b32.xlu0 %v4993, 120
      %v5076 = vpop.permute.xlu0 %5075
      %5077 = vrot.lane.b32.xlu0 %v4994, 120
      %v5078 = vpop.permute.xlu0 %5077
      %5079 = vrot.lane.b32.xlu0 %v4995, 120
      %v5080 = vpop.permute.xlu0 %5079
      %5081 = vrot.lane.b32.xlu0 %v4996, 120
      %v5082 = vpop.permute.xlu0 %5081
      %5083 = vrot.lane.b32.xlu0 %v4997, 120
      %v5084 = vpop.permute.xlu0 %5083
      %5085 = vrot.lane.b32.xlu0 %v4998, 120
      %v5086 = vpop.permute.xlu0 %5085
      %5087 = vrot.lane.b32.xlu0 %v4999, 120
      %v5088 = vpop.permute.xlu0 %5087
      %5089 = vrot.lane.b32.xlu0 %v5000, 120
      %v5090 = vpop.permute.xlu0 %5089
      %5091 = vrot.lane.b32.xlu0 %v5001, 120
      %v5092 = vpop.permute.xlu0 %5091
      %5093 = vrot.lane.b32.xlu0 %v5002, 120
      %v5094 = vpop.permute.xlu0 %5093
      %5095 = vrot.lane.b32.xlu0 %v5003, 120
      %v5096 = vpop.permute.xlu0 %5095
      %5097 = vrot.lane.b32.xlu0 %v5004, 120
      %v5098 = vpop.permute.xlu0 %5097
      %5099 = vrot.lane.b32.xlu0 %v5005, 120
      %v5100 = vpop.permute.xlu0 %5099
      %5101 = vrot.lane.b32.xlu0 %v5006, 120
      %v5102 = vpop.permute.xlu0 %5101
      %5103 = vrot.lane.b32.xlu0 %v5007, 120
      %v5104 = vpop.permute.xlu0 %5103
      %vm5105 = vcmask 15360
      %v5106 = vsel %vm5105, %v5042, 0
      %v5108 = vsel %vm5105, %v5044, 0
      %v5110 = vsel %vm5105, %v5046, 0
      %v5112 = vsel %vm5105, %v5048, 0
      %v5114 = vsel %vm5105, %v5050, 0
      %v5116 = vsel %vm5105, %v5052, 0
      %v5118 = vsel %vm5105, %v5054, 0
      %v5120 = vsel %vm5105, %v5056, 0
      %v5122 = vsel %vm5105, %v5058, 0
      %v5124 = vsel %vm5105, %v5060, 0
      %v5126 = vsel %vm5105, %v5062, 0
      %v5128 = vsel %vm5105, %v5064, 0
      %v5130 = vsel %vm5105, %v5066, 0
      %v5132 = vsel %vm5105, %v5068, 0
      %v5134 = vsel %vm5105, %v5070, 0
      %v5136 = vsel %vm5105, %v5072, 0
      %v5138 = vsel %vm5105, %v5074, 0
      %v5140 = vsel %vm5105, %v5076, 0
      %v5142 = vsel %vm5105, %v5078, 0
      %v5144 = vsel %vm5105, %v5080, 0
      %v5146 = vsel %vm5105, %v5082, 0
      %v5148 = vsel %vm5105, %v5084, 0
      %v5150 = vsel %vm5105, %v5086, 0
      %v5152 = vsel %vm5105, %v5088, 0
      %v5154 = vsel %vm5105, %v5090, 0
      %v5156 = vsel %vm5105, %v5092, 0
      %v5158 = vsel %vm5105, %v5094, 0
      %v5160 = vsel %vm5105, %v5096, 0
      %v5162 = vsel %vm5105, %v5098, 0
      %v5164 = vsel %vm5105, %v5100, 0
      %v5166 = vsel %vm5105, %v5102, 0
      %v5168 = vsel %vm5105, %v5104, 0
      %v5171 = vsel %vm644, %v5008, 0
      %5173 = vmatpush.msra.mxu0 0.0
      %5174 = vmatpush.msra.mxu0 0.0
      %5175 = vmatpush.msra.mxu0 0.0
      %5176 = vmatpush.msra.mxu0 0.0
      %5177 = vmatpush.msra.mxu0 0.0
      %5178 = vmatpush.msra.mxu0 0.0
      %5179 = vmatpush.msra.mxu0 0.0
      %5180 = vmatpush.msra.mxu0 0.0
      %5181 = vmatpush.msra.mxu0 0.0
      %5182 = vmatpush.msra.mxu0 0.0
      %5183 = vmatpush.msra.mxu0 0.0
      %5184 = vmatpush.msra.mxu0 0.0
      %5185 = vmatpush.msra.mxu0 0.0
      %5186 = vmatpush.msra.mxu0 0.0
      %5187 = vmatpush.msra.mxu0 0.0
      %5188 = vmatpush.msra.mxu0 %v5171
      %5189 = vmatmul.f32.gmra.mxu0 %v5106
      %v5190 = vpop.f32.mrf.mxu0
      %v5191 = vadd.f32 0.0, %v5190
      %5192 = vmatmul.f32.gmra.mxu0 %v5108
      %v5193 = vpop.f32.mrf.mxu0
      %v5194 = vadd.f32 0.0, %v5193
      %5195 = vmatmul.f32.gmra.mxu0 %v5110
      %v5196 = vpop.f32.mrf.mxu0
      %v5197 = vadd.f32 0.0, %v5196
      %5198 = vmatmul.f32.gmra.mxu0 %v5112
      %v5199 = vpop.f32.mrf.mxu0
      %v5200 = vadd.f32 0.0, %v5199
      %5201 = vmatmul.f32.gmra.mxu0 %v5114
      %v5202 = vpop.f32.mrf.mxu0
      %v5203 = vadd.f32 0.0, %v5202
      %5204 = vmatmul.f32.gmra.mxu0 %v5116
      %v5205 = vpop.f32.mrf.mxu0
      %v5206 = vadd.f32 0.0, %v5205
      %5207 = vmatmul.f32.gmra.mxu0 %v5118
      %v5208 = vpop.f32.mrf.mxu0
      %v5209 = vadd.f32 0.0, %v5208
      %5210 = vmatmul.f32.gmra.mxu0 %v5120
      %v5211 = vpop.f32.mrf.mxu0
      %v5212 = vadd.f32 0.0, %v5211
      %5213 = vmatmul.f32.gmra.mxu0 %v5122
      %v5214 = vpop.f32.mrf.mxu0
      %v5215 = vadd.f32 0.0, %v5214
      %5216 = vmatmul.f32.gmra.mxu0 %v5124
      %v5217 = vpop.f32.mrf.mxu0
      %v5218 = vadd.f32 0.0, %v5217
      %5219 = vmatmul.f32.gmra.mxu0 %v5126
      %v5220 = vpop.f32.mrf.mxu0
      %v5221 = vadd.f32 0.0, %v5220
      %5222 = vmatmul.f32.gmra.mxu0 %v5128
      %v5223 = vpop.f32.mrf.mxu0
      %v5224 = vadd.f32 0.0, %v5223
      %5225 = vmatmul.f32.gmra.mxu0 %v5130
      %v5226 = vpop.f32.mrf.mxu0
      %v5227 = vadd.f32 0.0, %v5226
      %5228 = vmatmul.f32.gmra.mxu0 %v5132
      %v5229 = vpop.f32.mrf.mxu0
      %v5230 = vadd.f32 0.0, %v5229
      %5231 = vmatmul.f32.gmra.mxu0 %v5134
      %v5232 = vpop.f32.mrf.mxu0
      %v5233 = vadd.f32 0.0, %v5232
      %5234 = vmatmul.f32.gmra.mxu0 %v5136
      %v5235 = vpop.f32.mrf.mxu0
      %v5236 = vadd.f32 0.0, %v5235
      %5237 = vmatmul.f32.gmra.mxu0 %v5138
      %v5238 = vpop.f32.mrf.mxu0
      %v5239 = vadd.f32 0.0, %v5238
      %5240 = vmatmul.f32.gmra.mxu0 %v5140
      %v5241 = vpop.f32.mrf.mxu0
      %v5242 = vadd.f32 0.0, %v5241
      %5243 = vmatmul.f32.gmra.mxu0 %v5142
      %v5244 = vpop.f32.mrf.mxu0
      %v5245 = vadd.f32 0.0, %v5244
      %5246 = vmatmul.f32.gmra.mxu0 %v5144
      %v5247 = vpop.f32.mrf.mxu0
      %v5248 = vadd.f32 0.0, %v5247
      %5249 = vmatmul.f32.gmra.mxu0 %v5146
      %v5250 = vpop.f32.mrf.mxu0
      %v5251 = vadd.f32 0.0, %v5250
      %5252 = vmatmul.f32.gmra.mxu0 %v5148
      %v5253 = vpop.f32.mrf.mxu0
      %v5254 = vadd.f32 0.0, %v5253
      %5255 = vmatmul.f32.gmra.mxu0 %v5150
      %v5256 = vpop.f32.mrf.mxu0
      %v5257 = vadd.f32 0.0, %v5256
      %5258 = vmatmul.f32.gmra.mxu0 %v5152
      %v5259 = vpop.f32.mrf.mxu0
      %v5260 = vadd.f32 0.0, %v5259
      %5261 = vmatmul.f32.gmra.mxu0 %v5154
      %v5262 = vpop.f32.mrf.mxu0
      %v5263 = vadd.f32 0.0, %v5262
      %5264 = vmatmul.f32.gmra.mxu0 %v5156
      %v5265 = vpop.f32.mrf.mxu0
      %v5266 = vadd.f32 0.0, %v5265
      %5267 = vmatmul.f32.gmra.mxu0 %v5158
      %v5268 = vpop.f32.mrf.mxu0
      %v5269 = vadd.f32 0.0, %v5268
      %5270 = vmatmul.f32.gmra.mxu0 %v5160
      %v5271 = vpop.f32.mrf.mxu0
      %v5272 = vadd.f32 0.0, %v5271
      %5273 = vmatmul.f32.gmra.mxu0 %v5162
      %v5274 = vpop.f32.mrf.mxu0
      %v5275 = vadd.f32 0.0, %v5274
      %5276 = vmatmul.f32.gmra.mxu0 %v5164
      %v5277 = vpop.f32.mrf.mxu0
      %v5278 = vadd.f32 0.0, %v5277
      %5279 = vmatmul.f32.gmra.mxu0 %v5166
      %v5280 = vpop.f32.mrf.mxu0
      %v5281 = vadd.f32 0.0, %v5280
      %5282 = vmatmul.f32.gmra.mxu0 %v5168
      %v5283 = vpop.f32.mrf.mxu0
      %v5284 = vadd.f32 0.0, %v5283
      %5285 = vdwg.mxu0
      %5318 = vrot.lane.b32.xlu0 %v5191, 10
      %v5319 = vpop.permute.xlu0 %5318
      %5320 = vrot.lane.b32.xlu0 %v5194, 10
      %v5321 = vpop.permute.xlu0 %5320
      %5322 = vrot.lane.b32.xlu0 %v5197, 10
      %v5323 = vpop.permute.xlu0 %5322
      %5324 = vrot.lane.b32.xlu0 %v5200, 10
      %v5325 = vpop.permute.xlu0 %5324
      %5326 = vrot.lane.b32.xlu0 %v5203, 10
      %v5327 = vpop.permute.xlu0 %5326
      %5328 = vrot.lane.b32.xlu0 %v5206, 10
      %v5329 = vpop.permute.xlu0 %5328
      %5330 = vrot.lane.b32.xlu0 %v5209, 10
      %v5331 = vpop.permute.xlu0 %5330
      %5332 = vrot.lane.b32.xlu0 %v5212, 10
      %v5333 = vpop.permute.xlu0 %5332
      %5334 = vrot.lane.b32.xlu0 %v5215, 10
      %v5335 = vpop.permute.xlu0 %5334
      %5336 = vrot.lane.b32.xlu0 %v5218, 10
      %v5337 = vpop.permute.xlu0 %5336
      %5338 = vrot.lane.b32.xlu0 %v5221, 10
      %v5339 = vpop.permute.xlu0 %5338
      %5340 = vrot.lane.b32.xlu0 %v5224, 10
      %v5341 = vpop.permute.xlu0 %5340
      %5342 = vrot.lane.b32.xlu0 %v5227, 10
      %v5343 = vpop.permute.xlu0 %5342
      %5344 = vrot.lane.b32.xlu0 %v5230, 10
      %v5345 = vpop.permute.xlu0 %5344
      %5346 = vrot.lane.b32.xlu0 %v5233, 10
      %v5347 = vpop.permute.xlu0 %5346
      %5348 = vrot.lane.b32.xlu0 %v5236, 10
      %v5349 = vpop.permute.xlu0 %5348
      %5350 = vrot.lane.b32.xlu0 %v5239, 10
      %v5351 = vpop.permute.xlu0 %5350
      %5352 = vrot.lane.b32.xlu0 %v5242, 10
      %v5353 = vpop.permute.xlu0 %5352
      %5354 = vrot.lane.b32.xlu0 %v5245, 10
      %v5355 = vpop.permute.xlu0 %5354
      %5356 = vrot.lane.b32.xlu0 %v5248, 10
      %v5357 = vpop.permute.xlu0 %5356
      %5358 = vrot.lane.b32.xlu0 %v5251, 10
      %v5359 = vpop.permute.xlu0 %5358
      %5360 = vrot.lane.b32.xlu0 %v5254, 10
      %v5361 = vpop.permute.xlu0 %5360
      %5362 = vrot.lane.b32.xlu0 %v5257, 10
      %v5363 = vpop.permute.xlu0 %5362
      %5364 = vrot.lane.b32.xlu0 %v5260, 10
      %v5365 = vpop.permute.xlu0 %5364
      %5366 = vrot.lane.b32.xlu0 %v5263, 10
      %v5367 = vpop.permute.xlu0 %5366
      %5368 = vrot.lane.b32.xlu0 %v5266, 10
      %v5369 = vpop.permute.xlu0 %5368
      %5370 = vrot.lane.b32.xlu0 %v5269, 10
      %v5371 = vpop.permute.xlu0 %5370
      %5372 = vrot.lane.b32.xlu0 %v5272, 10
      %v5373 = vpop.permute.xlu0 %5372
      %5374 = vrot.lane.b32.xlu0 %v5275, 10
      %v5375 = vpop.permute.xlu0 %5374
      %5376 = vrot.lane.b32.xlu0 %v5278, 10
      %v5377 = vpop.permute.xlu0 %5376
      %5378 = vrot.lane.b32.xlu0 %v5281, 10
      %v5379 = vpop.permute.xlu0 %5378
      %5380 = vrot.lane.b32.xlu0 %v5284, 10
      %v5381 = vpop.permute.xlu0 %5380
      %v5414 = vadd.f32 %v4912, %v5319
      %v5415 = vadd.f32 %v4913, %v5321
      %v5416 = vadd.f32 %v4914, %v5323
      %v5417 = vadd.f32 %v4915, %v5325
      %v5418 = vadd.f32 %v4916, %v5327
      %v5419 = vadd.f32 %v4917, %v5329
      %v5420 = vadd.f32 %v4918, %v5331
      %v5421 = vadd.f32 %v4919, %v5333
      %v5422 = vadd.f32 %v4920, %v5335
      %v5423 = vadd.f32 %v4921, %v5337
      %v5424 = vadd.f32 %v4922, %v5339
      %v5425 = vadd.f32 %v4923, %v5341
      %v5426 = vadd.f32 %v4924, %v5343
      %v5427 = vadd.f32 %v4925, %v5345
      %v5428 = vadd.f32 %v4926, %v5347
      %v5429 = vadd.f32 %v4927, %v5349
      %v5430 = vadd.f32 %v4928, %v5351
      %v5431 = vadd.f32 %v4929, %v5353
      %v5432 = vadd.f32 %v4930, %v5355
      %v5433 = vadd.f32 %v4931, %v5357
      %v5434 = vadd.f32 %v4932, %v5359
      %v5435 = vadd.f32 %v4933, %v5361
      %v5436 = vadd.f32 %v4934, %v5363
      %v5437 = vadd.f32 %v4935, %v5365
      %v5438 = vadd.f32 %v4936, %v5367
      %v5439 = vadd.f32 %v4937, %v5369
      %v5440 = vadd.f32 %v4938, %v5371
      %v5441 = vadd.f32 %v4939, %v5373
      %v5442 = vadd.f32 %v4940, %v5375
      %v5443 = vadd.f32 %v4941, %v5377
      %v5444 = vadd.f32 %v4942, %v5379
      %v5445 = vadd.f32 %v4943, %v5381
      %5478 = vrot.lane.b32.xlu0 %v5414, 118
      %v5479 = vpop.permute.xlu0 %5478
      %5480 = vrot.lane.b32.xlu0 %v5415, 118
      %v5481 = vpop.permute.xlu0 %5480
      %5482 = vrot.lane.b32.xlu0 %v5416, 118
      %v5483 = vpop.permute.xlu0 %5482
      %5484 = vrot.lane.b32.xlu0 %v5417, 118
      %v5485 = vpop.permute.xlu0 %5484
      %5486 = vrot.lane.b32.xlu0 %v5418, 118
      %v5487 = vpop.permute.xlu0 %5486
      %5488 = vrot.lane.b32.xlu0 %v5419, 118
      %v5489 = vpop.permute.xlu0 %5488
      %5490 = vrot.lane.b32.xlu0 %v5420, 118
      %v5491 = vpop.permute.xlu0 %5490
      %5492 = vrot.lane.b32.xlu0 %v5421, 118
      %v5493 = vpop.permute.xlu0 %5492
      %5494 = vrot.lane.b32.xlu0 %v5422, 118
      %v5495 = vpop.permute.xlu0 %5494
      %5496 = vrot.lane.b32.xlu0 %v5423, 118
      %v5497 = vpop.permute.xlu0 %5496
      %5498 = vrot.lane.b32.xlu0 %v5424, 118
      %v5499 = vpop.permute.xlu0 %5498
      %5500 = vrot.lane.b32.xlu0 %v5425, 118
      %v5501 = vpop.permute.xlu0 %5500
      %5502 = vrot.lane.b32.xlu0 %v5426, 118
      %v5503 = vpop.permute.xlu0 %5502
      %5504 = vrot.lane.b32.xlu0 %v5427, 118
      %v5505 = vpop.permute.xlu0 %5504
      %5506 = vrot.lane.b32.xlu0 %v5428, 118
      %v5507 = vpop.permute.xlu0 %5506
      %5508 = vrot.lane.b32.xlu0 %v5429, 118
      %v5509 = vpop.permute.xlu0 %5508
      %5510 = vrot.lane.b32.xlu0 %v5430, 118
      %v5511 = vpop.permute.xlu0 %5510
      %5512 = vrot.lane.b32.xlu0 %v5431, 118
      %v5513 = vpop.permute.xlu0 %5512
      %5514 = vrot.lane.b32.xlu0 %v5432, 118
      %v5515 = vpop.permute.xlu0 %5514
      %5516 = vrot.lane.b32.xlu0 %v5433, 118
      %v5517 = vpop.permute.xlu0 %5516
      %5518 = vrot.lane.b32.xlu0 %v5434, 118
      %v5519 = vpop.permute.xlu0 %5518
      %5520 = vrot.lane.b32.xlu0 %v5435, 118
      %v5521 = vpop.permute.xlu0 %5520
      %5522 = vrot.lane.b32.xlu0 %v5436, 118
      %v5523 = vpop.permute.xlu0 %5522
      %5524 = vrot.lane.b32.xlu0 %v5437, 118
      %v5525 = vpop.permute.xlu0 %5524
      %5526 = vrot.lane.b32.xlu0 %v5438, 118
      %v5527 = vpop.permute.xlu0 %5526
      %5528 = vrot.lane.b32.xlu0 %v5439, 118
      %v5529 = vpop.permute.xlu0 %5528
      %5530 = vrot.lane.b32.xlu0 %v5440, 118
      %v5531 = vpop.permute.xlu0 %5530
      %5532 = vrot.lane.b32.xlu0 %v5441, 118
      %v5533 = vpop.permute.xlu0 %5532
      %5534 = vrot.lane.b32.xlu0 %v5442, 118
      %v5535 = vpop.permute.xlu0 %5534
      %5536 = vrot.lane.b32.xlu0 %v5443, 118
      %v5537 = vpop.permute.xlu0 %5536
      %5538 = vrot.lane.b32.xlu0 %v5444, 118
      %v5539 = vpop.permute.xlu0 %5538
      %5540 = vrot.lane.b32.xlu0 %v5445, 118
      %v5541 = vpop.permute.xlu0 %5540
      %vm5574 = vcmask 97280
      %5575 = vst.msk [vmem:[%s226] sm:$0xff] %vm5574, %v5479
      %5576 = vst.msk [vmem:[%s226 + $0x8] sm:$0xff] %vm5574, %v5481
      %5577 = vst.msk [vmem:[%s226 + $0x10] sm:$0xff] %vm5574, %v5483
      %5578 = vst.msk [vmem:[%s226 + $0x18] sm:$0xff] %vm5574, %v5485
      %5579 = vst.msk [vmem:[%s226 + $0x20] sm:$0xff] %vm5574, %v5487
      %5580 = vst.msk [vmem:[%s226 + $0x28] sm:$0xff] %vm5574, %v5489
      %5581 = vst.msk [vmem:[%s226 + $0x30] sm:$0xff] %vm5574, %v5491
      %5582 = vst.msk [vmem:[%s226 + $0x38] sm:$0xff] %vm5574, %v5493
      %5583 = vst.msk [vmem:[%s226 + $0x40] sm:$0xff] %vm5574, %v5495
      %5584 = vst.msk [vmem:[%s226 + $0x48] sm:$0xff] %vm5574, %v5497
      %5585 = vst.msk [vmem:[%s226 + $0x50] sm:$0xff] %vm5574, %v5499
      %5586 = vst.msk [vmem:[%s226 + $0x58] sm:$0xff] %vm5574, %v5501
      %5587 = vst.msk [vmem:[%s226 + $0x60] sm:$0xff] %vm5574, %v5503
      %5588 = vst.msk [vmem:[%s226 + $0x68] sm:$0xff] %vm5574, %v5505
      %5589 = vst.msk [vmem:[%s226 + $0x70] sm:$0xff] %vm5574, %v5507
      %5590 = vst.msk [vmem:[%s226 + $0x78] sm:$0xff] %vm5574, %v5509
      %5591 = vst.msk [vmem:[%s226 + $0x80] sm:$0xff] %vm5574, %v5511
      %5592 = vst.msk [vmem:[%s226 + $0x88] sm:$0xff] %vm5574, %v5513
      %5593 = vst.msk [vmem:[%s226 + $0x90] sm:$0xff] %vm5574, %v5515
      %5594 = vst.msk [vmem:[%s226 + $0x98] sm:$0xff] %vm5574, %v5517
      %5595 = vst.msk [vmem:[%s226 + $0xa0] sm:$0xff] %vm5574, %v5519
      %5596 = vst.msk [vmem:[%s226 + $0xa8] sm:$0xff] %vm5574, %v5521
      %5597 = vst.msk [vmem:[%s226 + $0xb0] sm:$0xff] %vm5574, %v5523
      %5598 = vst.msk [vmem:[%s226 + $0xb8] sm:$0xff] %vm5574, %v5525
      %5599 = vst.msk [vmem:[%s226 + $0xc0] sm:$0xff] %vm5574, %v5527
      %5600 = vst.msk [vmem:[%s226 + $0xc8] sm:$0xff] %vm5574, %v5529
      %5601 = vst.msk [vmem:[%s226 + $0xd0] sm:$0xff] %vm5574, %v5531
      %5602 = vst.msk [vmem:[%s226 + $0xd8] sm:$0xff] %vm5574, %v5533
      %5603 = vst.msk [vmem:[%s226 + $0xe0] sm:$0xff] %vm5574, %v5535
      %5604 = vst.msk [vmem:[%s226 + $0xe8] sm:$0xff] %vm5574, %v5537
      %5605 = vst.msk [vmem:[%s226 + $0xf0] sm:$0xff] %vm5574, %v5539
      %5606 = vst.msk [vmem:[%s226 + $0xf8] sm:$0xff] %vm5574, %v5541
      %s5607 = smul.u32 32, %s16
      %p5608 = scmp.lt.s32.totalorder %s5607, 63
      %s5609 = scalar_select %p5608, %s5607, 63
      %s5610 = smul.addr %s5609, 8
      %s5611 = scalar_lea.vmem %s5, %s5610
      // Predicated region
      $region41: #{tpu_custom_call.1} parent=39 // pred_check
        %p5612 = pneg %p144
      $region42: #{tpu_custom_call.1} parent=39 // pred_check_branch
        %5614 = sbr.rel (%p5612) target = $region44
      $region43: #{tpu_custom_call.1} parent=39 // pred_region
        %s5615 = smul.u32 32, %s16
      $region44: #{tpu_custom_call.1} parent=39 // pred_fallthru
        _
    $region40: #{tpu_custom_call.1} parent=5 // pred_fallthru
      _
    %p5616 = scmp.le.s32.totalorder 2, %s11
    // Predicated region
    $region45: #{tpu_custom_call.1} parent=5 // pred_check
      %p5617 = pneg %p5616
    $region46: #{tpu_custom_call.1} parent=5 // pred_check_branch
      %5619 = sbr.rel (%p5617) target = $region48
    $region47: #{tpu_custom_call.1} parent=5 // pred_region
      %s5620 = ssub.s32 %s11, 2
      // Predicated region
      $region49: #{tpu_custom_call.1} parent=47 // pred_check
        %p5621 = pneg %p150
      $region50: #{tpu_custom_call.1} parent=47 // pred_check_branch
        %5623 = sbr.rel (%p5621) target = $region52
      $region51: #{tpu_custom_call.1} parent=47 // pred_region
        %s5624 = smul.u32 32, %s17
        %p5625 = scmp.lt.s32.totalorder %s5624, 63
        %s5626 = scalar_select %p5625, %s5624, 63
        %s5627 = smul.addr %s5626, 8
        %s5628 = scalar_lea.vmem %s5, %s5627
      $region52: #{tpu_custom_call.1} parent=47 // pred_fallthru
        _
    $region48: #{tpu_custom_call.1} parent=5 // pred_fallthru
      _
  $region6: #{tpu_custom_call.1} parent=0 // loop_footer
    %s15 = sadd.s32 1, %s11
  $region7: #{tpu_custom_call.1} parent=0 // loop_footer_branch
    %10 = sbr.rel target = $region3
  $region8: #{tpu_custom_call.1} parent=0 // loop_exit
    _

</llo_original>
